<compile_context>
chip_gen: v6e
topology: v6e:2x2x1
jax: 0.10.0
libtpu: 0.0.40
codegen_flags: <defaults>
</compile_context>

<pallas_src>
import jax
import jax.numpy as jnp
from jax.experimental import pallas as pl
from jax.experimental.pallas import tpu as pltpu


# ------------------------------- Model config -------------------------------

B = 2            # batch
C_IN = 3         # image channels (NCHW input)
IMG = 16         # image H = W
PATCH = 8        # patch size -> 2x2 = 4 patches
NP = (IMG // PATCH) ** 2
SEQ = NP + 1     # +1 CLS token  (= 5)
SEQ_PAD = 8      # token dim padded to the f32 sublane tile (power of two!)
HID = 32         # ViT hidden_size
NH = 4           # attention heads
DH = HID // NH
MLP = 64         # intermediate size
NLAYERS = 2      # encoder layers
HIDDEN_CH = 16   # CustomCNN hidden_channels
CNN_LAYERS = 2   # CustomCNN depth
NUM_CLASSES = 2
LN_EPS = 1e-12

BT = B * SEQ_PAD                  # stacked (batch, padded-token) rows = 16
VEC_LNF = NLAYERS * 8             # row index of final-LN gamma in the vec table
VEC_CNNB = VEC_LNF + 2            # first CNN bias row
VEC_FCB = VEC_CNNB + CNN_LAYERS   # classifier bias row
VEC_WIDTH = 128                   # lane width of the vector table


# --------------------------- In-kernel math helpers --------------------------

def _layernorm(x, g, b):
    mu = jnp.mean(x, axis=-1, keepdims=True)
    var = jnp.mean(jnp.square(x - mu), axis=-1, keepdims=True)
    return (x - mu) * jax.lax.rsqrt(var + LN_EPS) * g + b


def _erf(x):
    # Abramowitz & Stegun 7.1.26 (|err| < 1.5e-7): abs/exp/where only, which
    # lower cleanly in Mosaic (no dependence on an erf primitive).
    p = 0.3275911
    a1, a2, a3, a4, a5 = (0.254829592, -0.284496736, 1.421413741,
                          -1.453152027, 1.061405429)
    ax = jnp.abs(x)
    t = 1.0 / (1.0 + p * ax)
    poly = ((((a5 * t + a4) * t + a3) * t + a2) * t + a1) * t
    y = 1.0 - poly * jnp.exp(-ax * ax)
    return jnp.where(x < 0.0, -y, y)


def _gelu_exact(x):
    # Matches PyTorch / HF ViT default hidden_act='gelu' (exact erf form).
    return 0.5 * x * (1.0 + _erf(x * 0.7071067811865476))


# ------------------------------ The fused kernel ------------------------------

def _fused_forward_kernel(patches_ref, patch_w_ref, add0_ref, wstack_ref,
                          w2_ref, vecs_ref, cnn_ref, out_ref):
    f32 = jnp.float32

    def vec(i, w):
        # one padded row of the packed vector table -> [1, w]
        return vecs_ref[i:i + 1, 0:w].astype(f32)

    # --- patch embedding + CLS token + position embeddings (one MXU matmul) ---
    h = (jnp.dot(patches_ref[...].astype(f32), patch_w_ref[...].astype(f32),
                 preferred_element_type=f32)
         + add0_ref[...].astype(f32))                     # [BT, HID]

    scale = 1.0 / (DH ** 0.5)

    # Static attention mask over the stacked (batch, padded-token) rows:
    # a query may attend a key iff same batch block AND the key is a real token.
    # SEQ_PAD is a power of two, so "same block of 8" == (qi ^ ki) < 8 and
    # "token index" == ki & 7 (bitwise ops only; no vector int div/mod).
    qi = jax.lax.broadcasted_iota(jnp.int32, (BT, BT), 0)
    ki = jax.lax.broadcasted_iota(jnp.int32, (BT, BT), 1)
    attn_mask = (jnp.bitwise_xor(qi, ki) < SEQ_PAD) & \
                (jnp.bitwise_and(ki, SEQ_PAD - 1) < SEQ)

    for l in range(NLAYERS):
        r0 = l * HID
        wqkv = wstack_ref[r0:r0 + HID, 0:3 * HID].astype(f32)              # [HID, 3*HID]
        wo = wstack_ref[r0:r0 + HID, 3 * HID:4 * HID].astype(f32)          # [HID, HID]
        w1 = wstack_ref[r0:r0 + HID, 4 * HID:4 * HID + MLP].astype(f32)    # [HID, MLP]
        w2 = w2_ref[l * MLP:(l + 1) * MLP, :].astype(f32)                  # [MLP, HID]
        vb = l * 8
        ln1_g, ln1_b = vec(vb + 0, HID), vec(vb + 1, HID)
        bqkv = vec(vb + 2, 3 * HID)
        bo = vec(vb + 3, HID)
        ln2_g, ln2_b = vec(vb + 4, HID), vec(vb + 5, HID)
        b1 = vec(vb + 6, MLP)
        b2 = vec(vb + 7, HID)

        # ---------------- self-attention (pre-LN, fused QKV) ----------------
        hn = _layernorm(h, ln1_g, ln1_b)
        qkv = jnp.dot(hn, wqkv, preferred_element_type=f32) + bqkv         # [BT, 3*HID]
        q = qkv[:, 0 * HID:1 * HID]
        k = qkv[:, 1 * HID:2 * HID]
        v = qkv[:, 2 * HID:3 * HID]

        heads = []
        for hd in range(NH):                      # static unroll: NH=4
            c = hd * DH
            qh = q[:, c:c + DH]                   # [BT, DH] (both batches at once)
            kh = k[:, c:c + DH]
            vh = v[:, c:c + DH]
            s = jax.lax.dot_general(              # q @ k^T (NT dot) -> [BT, BT]
                qh, kh, (((1,), (1,)), ((), ())),
                preferred_element_type=f32) * scale
            s = jnp.where(attn_mask, s, -1e30)
            s = s - jnp.max(s, axis=-1, keepdims=True)
            e = jnp.exp(s)
            e = e * pl.reciprocal(jnp.sum(e, axis=-1, keepdims=True),
                                  approx=True)
            heads.append(jnp.dot(e, vh, preferred_element_type=f32))       # [BT, DH]
        attn = jnp.concatenate(heads, axis=-1)                             # [BT, HID]

        h = h + jnp.dot(attn, wo, preferred_element_type=f32) + bo

        # --------------------------- MLP (pre-LN) ----------------------------
        hn2 = _layernorm(h, ln2_g, ln2_b)
        m = _gelu_exact(jnp.dot(hn2, w1, preferred_element_type=f32) + b1)
        h = h + jnp.dot(m, w2, preferred_element_type=f32) + b2

    lnf_g, lnf_b = vec(VEC_LNF, HID), vec(VEC_LNF + 1, HID)
    hf = _layernorm(h, lnf_g, lnf_b)              # ViT last_hidden_state (pad rows junk)

    # --- CustomCNN tail: a 3x3 conv (pad 1) on an H=1 map is exactly a 1x3
    #     conv over the token axis.  Both batches are processed together on the
    #     stacked [BT, C] activation; pad rows are kept at zero so the +/-1
    #     token shifts see correct zero padding at both batch boundaries. ---
    ti = jax.lax.broadcasted_iota(jnp.int32, (BT, 1), 0)
    row_valid = (jnp.bitwise_and(ti, SEQ_PAD - 1) < SEQ).astype(f32)       # [BT, 1]
    xb = hf * row_valid

    base = 0
    cin = HID
    for li in range(CNN_LAYERS):
        wk_m1 = cnn_ref[base + 0 * cin:base + 1 * cin, 0:HIDDEN_CH].astype(f32)
        wk_0 = cnn_ref[base + 1 * cin:base + 2 * cin, 0:HIDDEN_CH].astype(f32)
        wk_p1 = cnn_ref[base + 2 * cin:base + 3 * cin, 0:HIDDEN_CH].astype(f32)
        cb = vec(VEC_CNNB + li, HIDDEN_CH)
        base += 3 * cin

        zrow = jnp.zeros((1, cin), f32)
        x_prev = jnp.concatenate([zrow, xb[:-1, :]], axis=0)   # token w-1
        x_next = jnp.concatenate([xb[1:, :], zrow], axis=0)    # token w+1
        y = (jnp.dot(x_prev, wk_m1, preferred_element_type=f32)
             + jnp.dot(xb, wk_0, preferred_element_type=f32)
             + jnp.dot(x_next, wk_p1, preferred_element_type=f32)
             + cb)
        xb = jnp.maximum(y, 0.0) * row_valid                   # ReLU + re-zero pad rows
        cin = HIDDEN_CH

    fc_w = cnn_ref[base:base + HIDDEN_CH, 0:NUM_CLASSES].astype(f32)       # [HIDDEN_CH, NC]
    fc_b = vec(VEC_FCB, NUM_CLASSES)

    # AdaptiveAvgPool2d(1) over real tokens as a tiny pooling matmul [B, BT] @ [BT, C].
    pr = jax.lax.broadcasted_iota(jnp.int32, (B, BT), 0)
    pc = jax.lax.broadcasted_iota(jnp.int32, (B, BT), 1)
    in_batch = (pc >= pr * SEQ_PAD) & (pc < pr * SEQ_PAD + SEQ)
    pool_w = jnp.where(in_batch, 1.0 / SEQ, 0.0).astype(f32)               # [B, BT]
    pooled = jnp.dot(pool_w, xb, preferred_element_type=f32)               # [B, HIDDEN_CH]

    logits = jnp.dot(pooled, fc_w, preferred_element_type=f32) + fc_b
    out_ref[...] = logits.astype(out_ref.dtype)                            # only HBM store


# ------------------------------ Params / wrapper ------------------------------

def init_params(key):
    def nrm(k, shape, scale=0.02):
        return (scale * jax.random.normal(k, shape)).astype(jnp.float32)

    keys = iter(jax.random.split(key, 64))
    p = {
        "patch_w": nrm(next(keys), (C_IN * PATCH * PATCH, HID)),
        "patch_b": nrm(next(keys), (HID,)),
        "cls": nrm(next(keys), (HID,)),
        "pos": nrm(next(keys), (SEQ, HID)),
        "lnf_g": jnp.ones((HID,), jnp.float32),
        "lnf_b": jnp.zeros((HID,), jnp.float32),
        "layers": [],
        "cnn": [],
    }
    for _ in range(NLAYERS):
        p["layers"].append({
            "ln1_g": jnp.ones((HID,), jnp.float32),
            "ln1_b": jnp.zeros((HID,), jnp.float32),
            "wq": nrm(next(keys), (HID, HID)), "bq": nrm(next(keys), (HID,)),
            "wk": nrm(next(keys), (HID, HID)), "bk": nrm(next(keys), (HID,)),
            "wv": nrm(next(keys), (HID, HID)), "bv": nrm(next(keys), (HID,)),
            "wo": nrm(next(keys), (HID, HID)), "bo": nrm(next(keys), (HID,)),
            "ln2_g": jnp.ones((HID,), jnp.float32),
            "ln2_b": jnp.zeros((HID,), jnp.float32),
            "w1": nrm(next(keys), (HID, MLP)), "b1": nrm(next(keys), (MLP,)),
            "w2": nrm(next(keys), (MLP, HID)), "b2": nrm(next(keys), (HID,)),
        })
    # TODO(synk): CustomCNN_0x definitions were not provided with the module;
    # this reproduces a standard Conv2d(3x3, pad 1)+ReLU stack followed by
    # AdaptiveAvgPool2d(1) + Linear(hidden_channels, num_classes).
    cin = HID
    for _ in range(CNN_LAYERS):
        p["cnn"].append({
            "w": nrm(next(keys), (HIDDEN_CH, cin, 3, 3)),   # [Cout, Cin, kh, kw]
            "b": nrm(next(keys), (HIDDEN_CH,)),
        })
        cin = HIDDEN_CH
    p["fc_w"] = nrm(next(keys), (HIDDEN_CH, NUM_CLASSES))
    p["fc_b"] = jnp.zeros((NUM_CLASSES,), jnp.float32)
    return p


def _build_kernel_args(x, p):
    """Host-side glue: patch im2col, padding to SEQ_PAD, and weight packing
    into 7 VMEM-resident arrays (minimizes per-input DMA setup overhead)."""
    nph = IMG // PATCH
    # Patch extraction (Conv2d(k=PATCH, stride=PATCH) as an im2col matmul);
    # channel-major [C, ph, pw] flattening matches Conv2d weight layout.
    patches = (x.reshape(B, C_IN, nph, PATCH, nph, PATCH)
                .transpose(0, 2, 4, 1, 3, 5)
                .reshape(B, NP, C_IN * PATCH * PATCH))
    # Per batch: [CLS slot (zero row), NP patch rows, pad rows] -> SEQ_PAD rows.
    patches_padded = jnp.pad(patches, ((0, 0), (1, SEQ_PAD - SEQ), (0, 0)))
    patches_padded = patches_padded.reshape(BT, C_IN * PATCH * PATCH)

    # Additive tensor: row0 = cls + pos[0]; rows 1..NP = patch_b + pos[s]; pad = 0.
    add_rows = jnp.concatenate([
        (p["cls"] + p["pos"][0])[None, :],
        p["pos"][1:] + p["patch_b"][None, :],
        jnp.zeros((SEQ_PAD - SEQ, HID), jnp.float32),
    ], axis=0)
    add0 = jnp.broadcast_to(add_rows[None], (B, SEQ_PAD, HID)).reshape(BT, HID)

    # Per-layer HIDxN weights packed along lanes [wqkv | wo | w1], layers stacked
    # along sublanes -> [NLAYERS*HID, 4*HID + MLP].
    wstack = jnp.concatenate([
        jnp.concatenate([jnp.concatenate([lyr["wq"], lyr["wk"], lyr["wv"]], axis=1),
                         lyr["wo"], lyr["w1"]], axis=1)
        for lyr in p["layers"]], axis=0)

    # Second MLP matrices stacked along sublanes -> [NLAYERS*MLP, HID].
    w2stack = jnp.concatenate([lyr["w2"] for lyr in p["layers"]], axis=0)

    # Every 1-D vector (LN gamma/beta, biases) packed into one [*, 128] table.
    def row(v):
        v = v.astype(jnp.float32)
        return jnp.pad(v, (0, VEC_WIDTH - v.shape[0]))
    vec_rows = []
    for lyr in p["layers"]:
        vec_rows += [row(lyr["ln1_g"]), row(lyr["ln1_b"]),
                     row(jnp.concatenate([lyr["bq"], lyr["bk"], lyr["bv"]])),
                     row(lyr["bo"]),
                     row(lyr["ln2_g"]), row(lyr["ln2_b"]),
                     row(lyr["b1"]), row(lyr["b2"])]
    vec_rows += [row(p["lnf_g"]), row(p["lnf_b"])]
    vec_rows += [row(lyr["b"]) for lyr in p["cnn"]]
    vec_rows += [row(p["fc_b"])]
    while len(vec_rows) % 8:
        vec_rows.append(jnp.zeros((VEC_WIDTH,), jnp.float32))
    vecs = jnp.stack(vec_rows, axis=0)

    # CNN 1x3 kernels (H=1 map -> only the middle conv row sees data) + fc_w,
    # all stacked along sublanes with lane width HIDDEN_CH.
    cnn_rows = []
    for lyr in p["cnn"]:
        w = lyr["w"]                                    # [Cout, Cin, 3, 3]
        for j in range(3):
            cnn_rows.append(jnp.transpose(w[:, :, 1, j]))   # [Cin, Cout]
    cnn_rows.append(jnp.pad(p["fc_w"], ((0, 0), (0, HIDDEN_CH - NUM_CLASSES))))
    cnnstack = jnp.concatenate(cnn_rows, axis=0)

    return [patches_padded, p["patch_w"], add0, wstack, w2stack, vecs, cnnstack]


@jax.jit
def vit_with_custom_cnn_forward(x, p):
    args = _build_kernel_args(x, p)
    return pl.pallas_call(
        _fused_forward_kernel,
        out_shape=jax.ShapeDtypeStruct((B, NUM_CLASSES), jnp.float32),
        in_specs=[pl.BlockSpec(memory_space=pltpu.MemorySpace.VMEM)] * len(args),
        out_specs=pl.BlockSpec(memory_space=pltpu.MemorySpace.VMEM),
    )(*args)


# -------------------------- Pure-JAX reference (check) ------------------------

@jax.jit
def reference_forward(x, p):
    nph = IMG // PATCH
    patches = (x.reshape(B, C_IN, nph, PATCH, nph, PATCH)
                .transpose(0, 2, 4, 1, 3, 5)
                .reshape(B, NP, C_IN * PATCH * PATCH))
    emb = patches @ p["patch_w"] + p["patch_b"]
    cls = jnp.broadcast_to(p["cls"][None, None, :], (B, 1, HID))
    h = jnp.concatenate([cls, emb], axis=1) + p["pos"][None]

    def ln(t, g, bb):
        mu = t.mean(-1, keepdims=True)
        var = ((t - mu) ** 2).mean(-1, keepdims=True)
        return (t - mu) * jax.lax.rsqrt(var + LN_EPS) * g + bb

    scale = 1.0 / (DH ** 0.5)
    for lyr in p["layers"]:
        hn = ln(h, lyr["ln1_g"], lyr["ln1_b"])
        q = (hn @ lyr["wq"] + lyr["bq"]).reshape(B, SEQ, NH, DH).transpose(0, 2, 1, 3)
        k = (hn @ lyr["wk"] + lyr["bk"]).reshape(B, SEQ, NH, DH).transpose(0, 2, 1, 3)
        v = (hn @ lyr["wv"] + lyr["bv"]).reshape(B, SEQ, NH, DH).transpose(0, 2, 1, 3)
        s = jnp.einsum("bhqd,bhkd->bhqk", q, k) * scale
        a = jax.nn.softmax(s, axis=-1)
        o = jnp.einsum("bhqk,bhkd->bhqd", a, v).transpose(0, 2, 1, 3).reshape(B, SEQ, HID)
        h = h + o @ lyr["wo"] + lyr["bo"]
        hn2 = ln(h, lyr["ln2_g"], lyr["ln2_b"])
        m = jax.nn.gelu(hn2 @ lyr["w1"] + lyr["b1"], approximate=False)
        h = h + m @ lyr["w2"] + lyr["b2"]
    h = ln(h, p["lnf_g"], p["lnf_b"])

    feat = h.transpose(0, 2, 1)[:, :, None, :]          # [B, HID, 1, SEQ] (NCHW)
    for lyr in p["cnn"]:
        feat = jax.lax.conv_general_dilated(
            feat, lyr["w"], window_strides=(1, 1), padding=((1, 1), (1, 1)),
            dimension_numbers=("NCHW", "OIHW", "NCHW"))
        feat = jnp.maximum(feat + lyr["b"][None, :, None, None], 0.0)
    pooled = feat.mean(axis=(2, 3))
    return pooled @ p["fc_w"] + p["fc_b"]


# ----------------------------------- Main -----------------------------------

if __name__ == "__main__":
    key = jax.random.PRNGKey(0)
    kx, kp = jax.random.split(key)
    x = jax.random.normal(kx, (B, C_IN, IMG, IMG), dtype=jnp.float32)  # NCHW
    params = init_params(kp)

    out = jax.block_until_ready(vit_with_custom_cnn_forward(x, params))
    assert out.shape == (B, NUM_CLASSES), out.shape
    assert bool(jnp.all(jnp.isfinite(out)))

    ref = jax.block_until_ready(reference_forward(x, params))
    rel = float(jnp.max(jnp.abs(out - ref)) / jnp.maximum(jnp.max(jnp.abs(ref)), 1e-6))
    assert rel < 1e-2, f"kernel vs reference mismatch: rel={rel}"

    print("KERNEL_OK")
</pallas_src>

<mosaic_0001>
module attributes {stable_mosaic.version = 11 : i64} {
  func.func @_fused_forward_kernel(%arg0: memref<16x192xf32, #tpu.memory_space<vmem>>, %arg1: memref<192x32xf32, #tpu.memory_space<vmem>>, %arg2: memref<16x32xf32, #tpu.memory_space<vmem>>, %arg3: memref<64x192xf32, #tpu.memory_space<vmem>>, %arg4: memref<128x32xf32, #tpu.memory_space<vmem>>, %arg5: memref<24x128xf32, #tpu.memory_space<vmem>>, %arg6: memref<160x16xf32, #tpu.memory_space<vmem>>, %arg7: memref<2x2xf32, #tpu.memory_space<vmem>>) attributes {dimension_semantics = [], scalar_prefetch = 0 : i64, scratch_operands = 0 : i64, tpu.core_type = #tpu.core_type<tc>} {
    %c0 = arith.constant 0 : index
    %c0_0 = arith.constant 0 : index
    %0 = vector.load %arg0[%c0, %c0_0] : memref<16x192xf32, #tpu.memory_space<vmem>>, vector<16x192xf32>
    %c0_1 = arith.constant 0 : index
    %c0_2 = arith.constant 0 : index
    %1 = vector.load %arg1[%c0_1, %c0_2] : memref<192x32xf32, #tpu.memory_space<vmem>>, vector<192x32xf32>
    %cst = arith.constant dense<0.000000e+00> : vector<16x32xf32>
    %2 = tpu.matmul %0, %1, %cst {dimension_numbers = #tpu.dot_dimension_numbers<[1], [0], [0], [1], [0, 0, 1, 1], [], []>} : vector<16x192xf32>, vector<192x32xf32>, vector<16x32xf32> -> vector<16x32xf32>
    %c0_3 = arith.constant 0 : index
    %c0_4 = arith.constant 0 : index
    %3 = vector.load %arg2[%c0_3, %c0_4] : memref<16x32xf32, #tpu.memory_space<vmem>>, vector<16x32xf32>
    %4 = arith.addf %2, %3 : vector<16x32xf32>
    %5 = tpu.iota {dimensions = array<i32: 0>} : vector<16x16xi32>
    %6 = tpu.iota {dimensions = array<i32: 1>} : vector<16x16xi32>
    %7 = arith.xori %5, %6 : vector<16x16xi32>
    %c8_i32 = arith.constant 8 : i32
    %8 = vector.broadcast %c8_i32 : i32 to vector<16x16xi32>
    %9 = arith.cmpi slt, %7, %8 : vector<16x16xi32>
    %c7_i32 = arith.constant 7 : i32
    %10 = vector.broadcast %c7_i32 : i32 to vector<16x16xi32>
    %11 = arith.andi %6, %10 : vector<16x16xi32>
    %c5_i32 = arith.constant 5 : i32
    %12 = vector.broadcast %c5_i32 : i32 to vector<16x16xi32>
    %13 = arith.cmpi slt, %11, %12 : vector<16x16xi32>
    %14 = arith.andi %9, %13 : vector<16x16xi1>
    %c0_5 = arith.constant 0 : index
    %c0_6 = arith.constant 0 : index
    %15 = vector.load %arg3[%c0_5, %c0_6] : memref<64x192xf32, #tpu.memory_space<vmem>>, vector<32x96xf32>
    %c0_7 = arith.constant 0 : index
    %c96 = arith.constant 96 : index
    %16 = vector.load %arg3[%c0_7, %c96] : memref<64x192xf32, #tpu.memory_space<vmem>>, vector<32x32xf32>
    %c0_8 = arith.constant 0 : index
    %c128 = arith.constant 128 : index
    %17 = vector.load %arg3[%c0_8, %c128] : memref<64x192xf32, #tpu.memory_space<vmem>>, vector<32x64xf32>
    %c0_9 = arith.constant 0 : index
    %c0_10 = arith.constant 0 : index
    %18 = vector.load %arg4[%c0_9, %c0_10] : memref<128x32xf32, #tpu.memory_space<vmem>>, vector<64x32xf32>
    %c0_11 = arith.constant 0 : index
    %c0_12 = arith.constant 0 : index
    %19 = vector.load %arg5[%c0_11, %c0_12] : memref<24x128xf32, #tpu.memory_space<vmem>>, vector<1x32xf32>
    %c1 = arith.constant 1 : index
    %c0_13 = arith.constant 0 : index
    %20 = vector.load %arg5[%c1, %c0_13] : memref<24x128xf32, #tpu.memory_space<vmem>>, vector<1x32xf32>
    %c2 = arith.constant 2 : index
    %c0_14 = arith.constant 0 : index
    %21 = vector.load %arg5[%c2, %c0_14] : memref<24x128xf32, #tpu.memory_space<vmem>>, vector<1x96xf32>
    %c3 = arith.constant 3 : index
    %c0_15 = arith.constant 0 : index
    %22 = vector.load %arg5[%c3, %c0_15] : memref<24x128xf32, #tpu.memory_space<vmem>>, vector<1x32xf32>
    %c4 = arith.constant 4 : index
    %c0_16 = arith.constant 0 : index
    %23 = vector.load %arg5[%c4, %c0_16] : memref<24x128xf32, #tpu.memory_space<vmem>>, vector<1x32xf32>
    %c5 = arith.constant 5 : index
    %c0_17 = arith.constant 0 : index
    %24 = vector.load %arg5[%c5, %c0_17] : memref<24x128xf32, #tpu.memory_space<vmem>>, vector<1x32xf32>
    %c6 = arith.constant 6 : index
    %c0_18 = arith.constant 0 : index
    %25 = vector.load %arg5[%c6, %c0_18] : memref<24x128xf32, #tpu.memory_space<vmem>>, vector<1x64xf32>
    %c7 = arith.constant 7 : index
    %c0_19 = arith.constant 0 : index
    %26 = vector.load %arg5[%c7, %c0_19] : memref<24x128xf32, #tpu.memory_space<vmem>>, vector<1x32xf32>
    %cst_20 = arith.constant dense<0.000000e+00> : vector<16xf32>
    %27 = vector.multi_reduction <add>, %4, %cst_20 [1] : vector<16x32xf32> to vector<16xf32>
    %28 = vector.shape_cast %27 : vector<16xf32> to vector<16x1xf32>
    %cst_21 = arith.constant 3.200000e+01 : f32
    %29 = vector.broadcast %cst_21 : f32 to vector<16x1xf32>
    %30 = arith.divf %28, %29 : vector<16x1xf32>
    %31 = vector.broadcast %30 : vector<16x1xf32> to vector<16x32xf32>
    %32 = arith.subf %4, %31 : vector<16x32xf32>
    %33 = arith.mulf %32, %32 : vector<16x32xf32>
    %cst_22 = arith.constant dense<0.000000e+00> : vector<16xf32>
    %34 = vector.multi_reduction <add>, %33, %cst_22 [1] : vector<16x32xf32> to vector<16xf32>
    %35 = vector.shape_cast %34 : vector<16xf32> to vector<16x1xf32>
    %cst_23 = arith.constant 3.200000e+01 : f32
    %36 = vector.broadcast %cst_23 : f32 to vector<16x1xf32>
    %37 = arith.divf %35, %36 : vector<16x1xf32>
    %38 = vector.broadcast %30 : vector<16x1xf32> to vector<16x32xf32>
    %39 = arith.subf %4, %38 : vector<16x32xf32>
    %cst_24 = arith.constant 9.99999996E-13 : f32
    %40 = vector.broadcast %cst_24 : f32 to vector<16x1xf32>
    %41 = arith.addf %37, %40 : vector<16x1xf32>
    %42 = math.rsqrt %41 : vector<16x1xf32>
    %43 = vector.broadcast %42 : vector<16x1xf32> to vector<16x32xf32>
    %44 = arith.mulf %39, %43 : vector<16x32xf32>
    %45 = vector.broadcast %19 : vector<1x32xf32> to vector<16x32xf32>
    %46 = arith.mulf %44, %45 : vector<16x32xf32>
    %47 = vector.broadcast %20 : vector<1x32xf32> to vector<16x32xf32>
    %48 = arith.addf %46, %47 : vector<16x32xf32>
    %cst_25 = arith.constant dense<0.000000e+00> : vector<16x96xf32>
    %49 = tpu.matmul %48, %15, %cst_25 {dimension_numbers = #tpu.dot_dimension_numbers<[1], [0], [0], [1], [0, 0, 1, 1], [], []>} : vector<16x32xf32>, vector<32x96xf32>, vector<16x96xf32> -> vector<16x96xf32>
    %50 = vector.broadcast %21 : vector<1x96xf32> to vector<16x96xf32>
    %51 = arith.addf %49, %50 : vector<16x96xf32>
    %52 = vector.extract_strided_slice %51 {offsets = [0, 0], sizes = [16, 32], strides = [1, 1]} : vector<16x96xf32> to vector<16x32xf32>
    %53 = vector.extract_strided_slice %51 {offsets = [0, 32], sizes = [16, 32], strides = [1, 1]} : vector<16x96xf32> to vector<16x32xf32>
    %54 = vector.extract_strided_slice %51 {offsets = [0, 64], sizes = [16, 32], strides = [1, 1]} : vector<16x96xf32> to vector<16x32xf32>
    %55 = vector.extract_strided_slice %52 {offsets = [0, 0], sizes = [16, 8], strides = [1, 1]} : vector<16x32xf32> to vector<16x8xf32>
    %56 = vector.extract_strided_slice %53 {offsets = [0, 0], sizes = [16, 8], strides = [1, 1]} : vector<16x32xf32> to vector<16x8xf32>
    %57 = vector.extract_strided_slice %54 {offsets = [0, 0], sizes = [16, 8], strides = [1, 1]} : vector<16x32xf32> to vector<16x8xf32>
    %cst_26 = arith.constant dense<0.000000e+00> : vector<16x16xf32>
    %58 = tpu.matmul %55, %56, %cst_26 {dimension_numbers = #tpu.dot_dimension_numbers<[1], [1], [0], [0], [0, 0, 1, 0], [], []>} : vector<16x8xf32>, vector<16x8xf32>, vector<16x16xf32> -> vector<16x16xf32>
    %cst_27 = arith.constant 0.353553385 : f32
    %59 = vector.broadcast %cst_27 : f32 to vector<16x16xf32>
    %60 = arith.mulf %58, %59 : vector<16x16xf32>
    %cst_28 = arith.constant -1.000000e+30 : f32
    %61 = vector.broadcast %cst_28 : f32 to vector<16x16xf32>
    %62 = arith.select %14, %60, %61 : vector<16x16xi1>, vector<16x16xf32>
    %cst_29 = arith.constant dense<0xFF800000> : vector<16xf32>
    %63 = vector.multi_reduction <maximumf>, %62, %cst_29 [1] : vector<16x16xf32> to vector<16xf32>
    %64 = vector.shape_cast %63 : vector<16xf32> to vector<16x1xf32>
    %65 = vector.broadcast %64 : vector<16x1xf32> to vector<16x16xf32>
    %66 = arith.subf %62, %65 : vector<16x16xf32>
    %67 = math.exp %66 : vector<16x16xf32>
    %cst_30 = arith.constant dense<0.000000e+00> : vector<16xf32>
    %68 = vector.multi_reduction <add>, %67, %cst_30 [1] : vector<16x16xf32> to vector<16xf32>
    %69 = vector.shape_cast %68 : vector<16xf32> to vector<16x1xf32>
    %70 = tpu.reciprocal %69 {approx = true} : vector<16x1xf32> -> vector<16x1xf32>
    %71 = vector.broadcast %70 : vector<16x1xf32> to vector<16x16xf32>
    %72 = arith.mulf %67, %71 : vector<16x16xf32>
    %cst_31 = arith.constant dense<0.000000e+00> : vector<16x8xf32>
    %73 = tpu.matmul %72, %57, %cst_31 {dimension_numbers = #tpu.dot_dimension_numbers<[1], [0], [0], [1], [0, 0, 1, 1], [], []>} : vector<16x16xf32>, vector<16x8xf32>, vector<16x8xf32> -> vector<16x8xf32>
    %74 = vector.extract_strided_slice %52 {offsets = [0, 8], sizes = [16, 8], strides = [1, 1]} : vector<16x32xf32> to vector<16x8xf32>
    %75 = vector.extract_strided_slice %53 {offsets = [0, 8], sizes = [16, 8], strides = [1, 1]} : vector<16x32xf32> to vector<16x8xf32>
    %76 = vector.extract_strided_slice %54 {offsets = [0, 8], sizes = [16, 8], strides = [1, 1]} : vector<16x32xf32> to vector<16x8xf32>
    %cst_32 = arith.constant dense<0.000000e+00> : vector<16x16xf32>
    %77 = tpu.matmul %74, %75, %cst_32 {dimension_numbers = #tpu.dot_dimension_numbers<[1], [1], [0], [0], [0, 0, 1, 0], [], []>} : vector<16x8xf32>, vector<16x8xf32>, vector<16x16xf32> -> vector<16x16xf32>
    %cst_33 = arith.constant 0.353553385 : f32
    %78 = vector.broadcast %cst_33 : f32 to vector<16x16xf32>
    %79 = arith.mulf %77, %78 : vector<16x16xf32>
    %cst_34 = arith.constant -1.000000e+30 : f32
    %80 = vector.broadcast %cst_34 : f32 to vector<16x16xf32>
    %81 = arith.select %14, %79, %80 : vector<16x16xi1>, vector<16x16xf32>
    %cst_35 = arith.constant dense<0xFF800000> : vector<16xf32>
    %82 = vector.multi_reduction <maximumf>, %81, %cst_35 [1] : vector<16x16xf32> to vector<16xf32>
    %83 = vector.shape_cast %82 : vector<16xf32> to vector<16x1xf32>
    %84 = vector.broadcast %83 : vector<16x1xf32> to vector<16x16xf32>
    %85 = arith.subf %81, %84 : vector<16x16xf32>
    %86 = math.exp %85 : vector<16x16xf32>
    %cst_36 = arith.constant dense<0.000000e+00> : vector<16xf32>
    %87 = vector.multi_reduction <add>, %86, %cst_36 [1] : vector<16x16xf32> to vector<16xf32>
    %88 = vector.shape_cast %87 : vector<16xf32> to vector<16x1xf32>
    %89 = tpu.reciprocal %88 {approx = true} : vector<16x1xf32> -> vector<16x1xf32>
    %90 = vector.broadcast %89 : vector<16x1xf32> to vector<16x16xf32>
    %91 = arith.mulf %86, %90 : vector<16x16xf32>
    %cst_37 = arith.constant dense<0.000000e+00> : vector<16x8xf32>
    %92 = tpu.matmul %91, %76, %cst_37 {dimension_numbers = #tpu.dot_dimension_numbers<[1], [0], [0], [1], [0, 0, 1, 1], [], []>} : vector<16x16xf32>, vector<16x8xf32>, vector<16x8xf32> -> vector<16x8xf32>
    %93 = vector.extract_strided_slice %52 {offsets = [0, 16], sizes = [16, 8], strides = [1, 1]} : vector<16x32xf32> to vector<16x8xf32>
    %94 = vector.extract_strided_slice %53 {offsets = [0, 16], sizes = [16, 8], strides = [1, 1]} : vector<16x32xf32> to vector<16x8xf32>
    %95 = vector.extract_strided_slice %54 {offsets = [0, 16], sizes = [16, 8], strides = [1, 1]} : vector<16x32xf32> to vector<16x8xf32>
    %cst_38 = arith.constant dense<0.000000e+00> : vector<16x16xf32>
    %96 = tpu.matmul %93, %94, %cst_38 {dimension_numbers = #tpu.dot_dimension_numbers<[1], [1], [0], [0], [0, 0, 1, 0], [], []>} : vector<16x8xf32>, vector<16x8xf32>, vector<16x16xf32> -> vector<16x16xf32>
    %cst_39 = arith.constant 0.353553385 : f32
    %97 = vector.broadcast %cst_39 : f32 to vector<16x16xf32>
    %98 = arith.mulf %96, %97 : vector<16x16xf32>
    %cst_40 = arith.constant -1.000000e+30 : f32
    %99 = vector.broadcast %cst_40 : f32 to vector<16x16xf32>
    %100 = arith.select %14, %98, %99 : vector<16x16xi1>, vector<16x16xf32>
    %cst_41 = arith.constant dense<0xFF800000> : vector<16xf32>
    %101 = vector.multi_reduction <maximumf>, %100, %cst_41 [1] : vector<16x16xf32> to vector<16xf32>
    %102 = vector.shape_cast %101 : vector<16xf32> to vector<16x1xf32>
    %103 = vector.broadcast %102 : vector<16x1xf32> to vector<16x16xf32>
    %104 = arith.subf %100, %103 : vector<16x16xf32>
    %105 = math.exp %104 : vector<16x16xf32>
    %cst_42 = arith.constant dense<0.000000e+00> : vector<16xf32>
    %106 = vector.multi_reduction <add>, %105, %cst_42 [1] : vector<16x16xf32> to vector<16xf32>
    %107 = vector.shape_cast %106 : vector<16xf32> to vector<16x1xf32>
    %108 = tpu.reciprocal %107 {approx = true} : vector<16x1xf32> -> vector<16x1xf32>
    %109 = vector.broadcast %108 : vector<16x1xf32> to vector<16x16xf32>
    %110 = arith.mulf %105, %109 : vector<16x16xf32>
    %cst_43 = arith.constant dense<0.000000e+00> : vector<16x8xf32>
    %111 = tpu.matmul %110, %95, %cst_43 {dimension_numbers = #tpu.dot_dimension_numbers<[1], [0], [0], [1], [0, 0, 1, 1], [], []>} : vector<16x16xf32>, vector<16x8xf32>, vector<16x8xf32> -> vector<16x8xf32>
    %112 = vector.extract_strided_slice %52 {offsets = [0, 24], sizes = [16, 8], strides = [1, 1]} : vector<16x32xf32> to vector<16x8xf32>
    %113 = vector.extract_strided_slice %53 {offsets = [0, 24], sizes = [16, 8], strides = [1, 1]} : vector<16x32xf32> to vector<16x8xf32>
    %114 = vector.extract_strided_slice %54 {offsets = [0, 24], sizes = [16, 8], strides = [1, 1]} : vector<16x32xf32> to vector<16x8xf32>
    %cst_44 = arith.constant dense<0.000000e+00> : vector<16x16xf32>
    %115 = tpu.matmul %112, %113, %cst_44 {dimension_numbers = #tpu.dot_dimension_numbers<[1], [1], [0], [0], [0, 0, 1, 0], [], []>} : vector<16x8xf32>, vector<16x8xf32>, vector<16x16xf32> -> vector<16x16xf32>
    %cst_45 = arith.constant 0.353553385 : f32
    %116 = vector.broadcast %cst_45 : f32 to vector<16x16xf32>
    %117 = arith.mulf %115, %116 : vector<16x16xf32>
    %cst_46 = arith.constant -1.000000e+30 : f32
    %118 = vector.broadcast %cst_46 : f32 to vector<16x16xf32>
    %119 = arith.select %14, %117, %118 : vector<16x16xi1>, vector<16x16xf32>
    %cst_47 = arith.constant dense<0xFF800000> : vector<16xf32>
    %120 = vector.multi_reduction <maximumf>, %119, %cst_47 [1] : vector<16x16xf32> to vector<16xf32>
    %121 = vector.shape_cast %120 : vector<16xf32> to vector<16x1xf32>
    %122 = vector.broadcast %121 : vector<16x1xf32> to vector<16x16xf32>
    %123 = arith.subf %119, %122 : vector<16x16xf32>
    %124 = math.exp %123 : vector<16x16xf32>
    %cst_48 = arith.constant dense<0.000000e+00> : vector<16xf32>
    %125 = vector.multi_reduction <add>, %124, %cst_48 [1] : vector<16x16xf32> to vector<16xf32>
    %126 = vector.shape_cast %125 : vector<16xf32> to vector<16x1xf32>
    %127 = tpu.reciprocal %126 {approx = true} : vector<16x1xf32> -> vector<16x1xf32>
    %128 = vector.broadcast %127 : vector<16x1xf32> to vector<16x16xf32>
    %129 = arith.mulf %124, %128 : vector<16x16xf32>
    %cst_49 = arith.constant dense<0.000000e+00> : vector<16x8xf32>
    %130 = tpu.matmul %129, %114, %cst_49 {dimension_numbers = #tpu.dot_dimension_numbers<[1], [0], [0], [1], [0, 0, 1, 1], [], []>} : vector<16x16xf32>, vector<16x8xf32>, vector<16x8xf32> -> vector<16x8xf32>
    %131 = tpu.concatenate %73, %92, %111, %130 in 1 : vector<16x8xf32>, vector<16x8xf32>, vector<16x8xf32>, vector<16x8xf32> -> vector<16x32xf32>
    %cst_50 = arith.constant dense<0.000000e+00> : vector<16x32xf32>
    %132 = tpu.matmul %131, %16, %cst_50 {dimension_numbers = #tpu.dot_dimension_numbers<[1], [0], [0], [1], [0, 0, 1, 1], [], []>} : vector<16x32xf32>, vector<32x32xf32>, vector<16x32xf32> -> vector<16x32xf32>
    %133 = arith.addf %4, %132 : vector<16x32xf32>
    %134 = vector.broadcast %22 : vector<1x32xf32> to vector<16x32xf32>
    %135 = arith.addf %133, %134 : vector<16x32xf32>
    %cst_51 = arith.constant dense<0.000000e+00> : vector<16xf32>
    %136 = vector.multi_reduction <add>, %135, %cst_51 [1] : vector<16x32xf32> to vector<16xf32>
    %137 = vector.shape_cast %136 : vector<16xf32> to vector<16x1xf32>
    %cst_52 = arith.constant 3.200000e+01 : f32
    %138 = vector.broadcast %cst_52 : f32 to vector<16x1xf32>
    %139 = arith.divf %137, %138 : vector<16x1xf32>
    %140 = vector.broadcast %139 : vector<16x1xf32> to vector<16x32xf32>
    %141 = arith.subf %135, %140 : vector<16x32xf32>
    %142 = arith.mulf %141, %141 : vector<16x32xf32>
    %cst_53 = arith.constant dense<0.000000e+00> : vector<16xf32>
    %143 = vector.multi_reduction <add>, %142, %cst_53 [1] : vector<16x32xf32> to vector<16xf32>
    %144 = vector.shape_cast %143 : vector<16xf32> to vector<16x1xf32>
    %cst_54 = arith.constant 3.200000e+01 : f32
    %145 = vector.broadcast %cst_54 : f32 to vector<16x1xf32>
    %146 = arith.divf %144, %145 : vector<16x1xf32>
    %147 = vector.broadcast %139 : vector<16x1xf32> to vector<16x32xf32>
    %148 = arith.subf %135, %147 : vector<16x32xf32>
    %cst_55 = arith.constant 9.99999996E-13 : f32
    %149 = vector.broadcast %cst_55 : f32 to vector<16x1xf32>
    %150 = arith.addf %146, %149 : vector<16x1xf32>
    %151 = math.rsqrt %150 : vector<16x1xf32>
    %152 = vector.broadcast %151 : vector<16x1xf32> to vector<16x32xf32>
    %153 = arith.mulf %148, %152 : vector<16x32xf32>
    %154 = vector.broadcast %23 : vector<1x32xf32> to vector<16x32xf32>
    %155 = arith.mulf %153, %154 : vector<16x32xf32>
    %156 = vector.broadcast %24 : vector<1x32xf32> to vector<16x32xf32>
    %157 = arith.addf %155, %156 : vector<16x32xf32>
    %cst_56 = arith.constant dense<0.000000e+00> : vector<16x64xf32>
    %158 = tpu.matmul %157, %17, %cst_56 {dimension_numbers = #tpu.dot_dimension_numbers<[1], [0], [0], [1], [0, 0, 1, 1], [], []>} : vector<16x32xf32>, vector<32x64xf32>, vector<16x64xf32> -> vector<16x64xf32>
    %159 = vector.broadcast %25 : vector<1x64xf32> to vector<16x64xf32>
    %160 = arith.addf %158, %159 : vector<16x64xf32>
    %cst_57 = arith.constant 5.000000e-01 : f32
    %161 = vector.broadcast %cst_57 : f32 to vector<16x64xf32>
    %162 = arith.mulf %161, %160 : vector<16x64xf32>
    %cst_58 = arith.constant 0.707106769 : f32
    %163 = vector.broadcast %cst_58 : f32 to vector<16x64xf32>
    %164 = arith.mulf %160, %163 : vector<16x64xf32>
    %165 = math.absf %164 : vector<16x64xf32>
    %cst_59 = arith.constant 0.327591091 : f32
    %166 = vector.broadcast %cst_59 : f32 to vector<16x64xf32>
    %167 = arith.mulf %166, %165 : vector<16x64xf32>
    %cst_60 = arith.constant 1.000000e+00 : f32
    %168 = vector.broadcast %cst_60 : f32 to vector<16x64xf32>
    %169 = arith.addf %168, %167 : vector<16x64xf32>
    %cst_61 = arith.constant 1.000000e+00 : f32
    %170 = vector.broadcast %cst_61 : f32 to vector<16x64xf32>
    %171 = arith.divf %170, %169 : vector<16x64xf32>
    %cst_62 = arith.constant 1.06140542 : f32
    %172 = vector.broadcast %cst_62 : f32 to vector<16x64xf32>
    %173 = arith.mulf %172, %171 : vector<16x64xf32>
    %cst_63 = arith.constant -1.45315206 : f32
    %174 = vector.broadcast %cst_63 : f32 to vector<16x64xf32>
    %175 = arith.addf %173, %174 : vector<16x64xf32>
    %176 = arith.mulf %175, %171 : vector<16x64xf32>
    %cst_64 = arith.constant 1.42141378 : f32
    %177 = vector.broadcast %cst_64 : f32 to vector<16x64xf32>
    %178 = arith.addf %176, %177 : vector<16x64xf32>
    %179 = arith.mulf %178, %171 : vector<16x64xf32>
    %cst_65 = arith.constant -0.284496725 : f32
    %180 = vector.broadcast %cst_65 : f32 to vector<16x64xf32>
    %181 = arith.addf %179, %180 : vector<16x64xf32>
    %182 = arith.mulf %181, %171 : vector<16x64xf32>
    %cst_66 = arith.constant 0.254829586 : f32
    %183 = vector.broadcast %cst_66 : f32 to vector<16x64xf32>
    %184 = arith.addf %182, %183 : vector<16x64xf32>
    %185 = arith.mulf %184, %171 : vector<16x64xf32>
    %cst_67 = arith.constant 0.000000e+00 : f32
    %186 = vector.broadcast %cst_67 : f32 to vector<16x64xf32>
    %187 = arith.subf %186, %165 : vector<16x64xf32>
    %188 = arith.mulf %187, %165 : vector<16x64xf32>
    %189 = math.exp %188 : vector<16x64xf32>
    %190 = arith.mulf %185, %189 : vector<16x64xf32>
    %cst_68 = arith.constant 1.000000e+00 : f32
    %191 = vector.broadcast %cst_68 : f32 to vector<16x64xf32>
    %192 = arith.subf %191, %190 : vector<16x64xf32>
    %cst_69 = arith.constant 0.000000e+00 : f32
    %193 = vector.broadcast %cst_69 : f32 to vector<16x64xf32>
    %194 = arith.cmpf olt, %164, %193 : vector<16x64xf32>
    %cst_70 = arith.constant 0.000000e+00 : f32
    %195 = vector.broadcast %cst_70 : f32 to vector<16x64xf32>
    %196 = arith.subf %195, %192 : vector<16x64xf32>
    %197 = arith.select %194, %196, %192 : vector<16x64xi1>, vector<16x64xf32>
    %cst_71 = arith.constant 1.000000e+00 : f32
    %198 = vector.broadcast %cst_71 : f32 to vector<16x64xf32>
    %199 = arith.addf %198, %197 : vector<16x64xf32>
    %200 = arith.mulf %162, %199 : vector<16x64xf32>
    %cst_72 = arith.constant dense<0.000000e+00> : vector<16x32xf32>
    %201 = tpu.matmul %200, %18, %cst_72 {dimension_numbers = #tpu.dot_dimension_numbers<[1], [0], [0], [1], [0, 0, 1, 1], [], []>} : vector<16x64xf32>, vector<64x32xf32>, vector<16x32xf32> -> vector<16x32xf32>
    %202 = arith.addf %135, %201 : vector<16x32xf32>
    %203 = vector.broadcast %26 : vector<1x32xf32> to vector<16x32xf32>
    %204 = arith.addf %202, %203 : vector<16x32xf32>
    %c32 = arith.constant 32 : index
    %c0_73 = arith.constant 0 : index
    %205 = vector.load %arg3[%c32, %c0_73] : memref<64x192xf32, #tpu.memory_space<vmem>>, vector<32x96xf32>
    %c32_74 = arith.constant 32 : index
    %c96_75 = arith.constant 96 : index
    %206 = vector.load %arg3[%c32_74, %c96_75] : memref<64x192xf32, #tpu.memory_space<vmem>>, vector<32x32xf32>
    %c32_76 = arith.constant 32 : index
    %c128_77 = arith.constant 128 : index
    %207 = vector.load %arg3[%c32_76, %c128_77] : memref<64x192xf32, #tpu.memory_space<vmem>>, vector<32x64xf32>
    %c64 = arith.constant 64 : index
    %c0_78 = arith.constant 0 : index
    %208 = vector.load %arg4[%c64, %c0_78] : memref<128x32xf32, #tpu.memory_space<vmem>>, vector<64x32xf32>
    %c8 = arith.constant 8 : index
    %c0_79 = arith.constant 0 : index
    %209 = vector.load %arg5[%c8, %c0_79] : memref<24x128xf32, #tpu.memory_space<vmem>>, vector<1x32xf32>
    %c9 = arith.constant 9 : index
    %c0_80 = arith.constant 0 : index
    %210 = vector.load %arg5[%c9, %c0_80] : memref<24x128xf32, #tpu.memory_space<vmem>>, vector<1x32xf32>
    %c10 = arith.constant 10 : index
    %c0_81 = arith.constant 0 : index
    %211 = vector.load %arg5[%c10, %c0_81] : memref<24x128xf32, #tpu.memory_space<vmem>>, vector<1x96xf32>
    %c11 = arith.constant 11 : index
    %c0_82 = arith.constant 0 : index
    %212 = vector.load %arg5[%c11, %c0_82] : memref<24x128xf32, #tpu.memory_space<vmem>>, vector<1x32xf32>
    %c12 = arith.constant 12 : index
    %c0_83 = arith.constant 0 : index
    %213 = vector.load %arg5[%c12, %c0_83] : memref<24x128xf32, #tpu.memory_space<vmem>>, vector<1x32xf32>
    %c13 = arith.constant 13 : index
    %c0_84 = arith.constant 0 : index
    %214 = vector.load %arg5[%c13, %c0_84] : memref<24x128xf32, #tpu.memory_space<vmem>>, vector<1x32xf32>
    %c14 = arith.constant 14 : index
    %c0_85 = arith.constant 0 : index
    %215 = vector.load %arg5[%c14, %c0_85] : memref<24x128xf32, #tpu.memory_space<vmem>>, vector<1x64xf32>
    %c15 = arith.constant 15 : index
    %c0_86 = arith.constant 0 : index
    %216 = vector.load %arg5[%c15, %c0_86] : memref<24x128xf32, #tpu.memory_space<vmem>>, vector<1x32xf32>
    %cst_87 = arith.constant dense<0.000000e+00> : vector<16xf32>
    %217 = vector.multi_reduction <add>, %204, %cst_87 [1] : vector<16x32xf32> to vector<16xf32>
    %218 = vector.shape_cast %217 : vector<16xf32> to vector<16x1xf32>
    %cst_88 = arith.constant 3.200000e+01 : f32
    %219 = vector.broadcast %cst_88 : f32 to vector<16x1xf32>
    %220 = arith.divf %218, %219 : vector<16x1xf32>
    %221 = vector.broadcast %220 : vector<16x1xf32> to vector<16x32xf32>
    %222 = arith.subf %204, %221 : vector<16x32xf32>
    %223 = arith.mulf %222, %222 : vector<16x32xf32>
    %cst_89 = arith.constant dense<0.000000e+00> : vector<16xf32>
    %224 = vector.multi_reduction <add>, %223, %cst_89 [1] : vector<16x32xf32> to vector<16xf32>
    %225 = vector.shape_cast %224 : vector<16xf32> to vector<16x1xf32>
    %cst_90 = arith.constant 3.200000e+01 : f32
    %226 = vector.broadcast %cst_90 : f32 to vector<16x1xf32>
    %227 = arith.divf %225, %226 : vector<16x1xf32>
    %228 = vector.broadcast %220 : vector<16x1xf32> to vector<16x32xf32>
    %229 = arith.subf %204, %228 : vector<16x32xf32>
    %cst_91 = arith.constant 9.99999996E-13 : f32
    %230 = vector.broadcast %cst_91 : f32 to vector<16x1xf32>
    %231 = arith.addf %227, %230 : vector<16x1xf32>
    %232 = math.rsqrt %231 : vector<16x1xf32>
    %233 = vector.broadcast %232 : vector<16x1xf32> to vector<16x32xf32>
    %234 = arith.mulf %229, %233 : vector<16x32xf32>
    %235 = vector.broadcast %209 : vector<1x32xf32> to vector<16x32xf32>
    %236 = arith.mulf %234, %235 : vector<16x32xf32>
    %237 = vector.broadcast %210 : vector<1x32xf32> to vector<16x32xf32>
    %238 = arith.addf %236, %237 : vector<16x32xf32>
    %cst_92 = arith.constant dense<0.000000e+00> : vector<16x96xf32>
    %239 = tpu.matmul %238, %205, %cst_92 {dimension_numbers = #tpu.dot_dimension_numbers<[1], [0], [0], [1], [0, 0, 1, 1], [], []>} : vector<16x32xf32>, vector<32x96xf32>, vector<16x96xf32> -> vector<16x96xf32>
    %240 = vector.broadcast %211 : vector<1x96xf32> to vector<16x96xf32>
    %241 = arith.addf %239, %240 : vector<16x96xf32>
    %242 = vector.extract_strided_slice %241 {offsets = [0, 0], sizes = [16, 32], strides = [1, 1]} : vector<16x96xf32> to vector<16x32xf32>
    %243 = vector.extract_strided_slice %241 {offsets = [0, 32], sizes = [16, 32], strides = [1, 1]} : vector<16x96xf32> to vector<16x32xf32>
    %244 = vector.extract_strided_slice %241 {offsets = [0, 64], sizes = [16, 32], strides = [1, 1]} : vector<16x96xf32> to vector<16x32xf32>
    %245 = vector.extract_strided_slice %242 {offsets = [0, 0], sizes = [16, 8], strides = [1, 1]} : vector<16x32xf32> to vector<16x8xf32>
    %246 = vector.extract_strided_slice %243 {offsets = [0, 0], sizes = [16, 8], strides = [1, 1]} : vector<16x32xf32> to vector<16x8xf32>
    %247 = vector.extract_strided_slice %244 {offsets = [0, 0], sizes = [16, 8], strides = [1, 1]} : vector<16x32xf32> to vector<16x8xf32>
    %cst_93 = arith.constant dense<0.000000e+00> : vector<16x16xf32>
    %248 = tpu.matmul %245, %246, %cst_93 {dimension_numbers = #tpu.dot_dimension_numbers<[1], [1], [0], [0], [0, 0, 1, 0], [], []>} : vector<16x8xf32>, vector<16x8xf32>, vector<16x16xf32> -> vector<16x16xf32>
    %cst_94 = arith.constant 0.353553385 : f32
    %249 = vector.broadcast %cst_94 : f32 to vector<16x16xf32>
    %250 = arith.mulf %248, %249 : vector<16x16xf32>
    %cst_95 = arith.constant -1.000000e+30 : f32
    %251 = vector.broadcast %cst_95 : f32 to vector<16x16xf32>
    %252 = arith.select %14, %250, %251 : vector<16x16xi1>, vector<16x16xf32>
    %cst_96 = arith.constant dense<0xFF800000> : vector<16xf32>
    %253 = vector.multi_reduction <maximumf>, %252, %cst_96 [1] : vector<16x16xf32> to vector<16xf32>
    %254 = vector.shape_cast %253 : vector<16xf32> to vector<16x1xf32>
    %255 = vector.broadcast %254 : vector<16x1xf32> to vector<16x16xf32>
    %256 = arith.subf %252, %255 : vector<16x16xf32>
    %257 = math.exp %256 : vector<16x16xf32>
    %cst_97 = arith.constant dense<0.000000e+00> : vector<16xf32>
    %258 = vector.multi_reduction <add>, %257, %cst_97 [1] : vector<16x16xf32> to vector<16xf32>
    %259 = vector.shape_cast %258 : vector<16xf32> to vector<16x1xf32>
    %260 = tpu.reciprocal %259 {approx = true} : vector<16x1xf32> -> vector<16x1xf32>
    %261 = vector.broadcast %260 : vector<16x1xf32> to vector<16x16xf32>
    %262 = arith.mulf %257, %261 : vector<16x16xf32>
    %cst_98 = arith.constant dense<0.000000e+00> : vector<16x8xf32>
    %263 = tpu.matmul %262, %247, %cst_98 {dimension_numbers = #tpu.dot_dimension_numbers<[1], [0], [0], [1], [0, 0, 1, 1], [], []>} : vector<16x16xf32>, vector<16x8xf32>, vector<16x8xf32> -> vector<16x8xf32>
    %264 = vector.extract_strided_slice %242 {offsets = [0, 8], sizes = [16, 8], strides = [1, 1]} : vector<16x32xf32> to vector<16x8xf32>
    %265 = vector.extract_strided_slice %243 {offsets = [0, 8], sizes = [16, 8], strides = [1, 1]} : vector<16x32xf32> to vector<16x8xf32>
    %266 = vector.extract_strided_slice %244 {offsets = [0, 8], sizes = [16, 8], strides = [1, 1]} : vector<16x32xf32> to vector<16x8xf32>
    %cst_99 = arith.constant dense<0.000000e+00> : vector<16x16xf32>
    %267 = tpu.matmul %264, %265, %cst_99 {dimension_numbers = #tpu.dot_dimension_numbers<[1], [1], [0], [0], [0, 0, 1, 0], [], []>} : vector<16x8xf32>, vector<16x8xf32>, vector<16x16xf32> -> vector<16x16xf32>
    %cst_100 = arith.constant 0.353553385 : f32
    %268 = vector.broadcast %cst_100 : f32 to vector<16x16xf32>
    %269 = arith.mulf %267, %268 : vector<16x16xf32>
    %cst_101 = arith.constant -1.000000e+30 : f32
    %270 = vector.broadcast %cst_101 : f32 to vector<16x16xf32>
    %271 = arith.select %14, %269, %270 : vector<16x16xi1>, vector<16x16xf32>
    %cst_102 = arith.constant dense<0xFF800000> : vector<16xf32>
    %272 = vector.multi_reduction <maximumf>, %271, %cst_102 [1] : vector<16x16xf32> to vector<16xf32>
    %273 = vector.shape_cast %272 : vector<16xf32> to vector<16x1xf32>
    %274 = vector.broadcast %273 : vector<16x1xf32> to vector<16x16xf32>
    %275 = arith.subf %271, %274 : vector<16x16xf32>
    %276 = math.exp %275 : vector<16x16xf32>
    %cst_103 = arith.constant dense<0.000000e+00> : vector<16xf32>
    %277 = vector.multi_reduction <add>, %276, %cst_103 [1] : vector<16x16xf32> to vector<16xf32>
    %278 = vector.shape_cast %277 : vector<16xf32> to vector<16x1xf32>
    %279 = tpu.reciprocal %278 {approx = true} : vector<16x1xf32> -> vector<16x1xf32>
    %280 = vector.broadcast %279 : vector<16x1xf32> to vector<16x16xf32>
    %281 = arith.mulf %276, %280 : vector<16x16xf32>
    %cst_104 = arith.constant dense<0.000000e+00> : vector<16x8xf32>
    %282 = tpu.matmul %281, %266, %cst_104 {dimension_numbers = #tpu.dot_dimension_numbers<[1], [0], [0], [1], [0, 0, 1, 1], [], []>} : vector<16x16xf32>, vector<16x8xf32>, vector<16x8xf32> -> vector<16x8xf32>
    %283 = vector.extract_strided_slice %242 {offsets = [0, 16], sizes = [16, 8], strides = [1, 1]} : vector<16x32xf32> to vector<16x8xf32>
    %284 = vector.extract_strided_slice %243 {offsets = [0, 16], sizes = [16, 8], strides = [1, 1]} : vector<16x32xf32> to vector<16x8xf32>
    %285 = vector.extract_strided_slice %244 {offsets = [0, 16], sizes = [16, 8], strides = [1, 1]} : vector<16x32xf32> to vector<16x8xf32>
    %cst_105 = arith.constant dense<0.000000e+00> : vector<16x16xf32>
    %286 = tpu.matmul %283, %284, %cst_105 {dimension_numbers = #tpu.dot_dimension_numbers<[1], [1], [0], [0], [0, 0, 1, 0], [], []>} : vector<16x8xf32>, vector<16x8xf32>, vector<16x16xf32> -> vector<16x16xf32>
    %cst_106 = arith.constant 0.353553385 : f32
    %287 = vector.broadcast %cst_106 : f32 to vector<16x16xf32>
    %288 = arith.mulf %286, %287 : vector<16x16xf32>
    %cst_107 = arith.constant -1.000000e+30 : f32
    %289 = vector.broadcast %cst_107 : f32 to vector<16x16xf32>
    %290 = arith.select %14, %288, %289 : vector<16x16xi1>, vector<16x16xf32>
    %cst_108 = arith.constant dense<0xFF800000> : vector<16xf32>
    %291 = vector.multi_reduction <maximumf>, %290, %cst_108 [1] : vector<16x16xf32> to vector<16xf32>
    %292 = vector.shape_cast %291 : vector<16xf32> to vector<16x1xf32>
    %293 = vector.broadcast %292 : vector<16x1xf32> to vector<16x16xf32>
    %294 = arith.subf %290, %293 : vector<16x16xf32>
    %295 = math.exp %294 : vector<16x16xf32>
    %cst_109 = arith.constant dense<0.000000e+00> : vector<16xf32>
    %296 = vector.multi_reduction <add>, %295, %cst_109 [1] : vector<16x16xf32> to vector<16xf32>
    %297 = vector.shape_cast %296 : vector<16xf32> to vector<16x1xf32>
    %298 = tpu.reciprocal %297 {approx = true} : vector<16x1xf32> -> vector<16x1xf32>
    %299 = vector.broadcast %298 : vector<16x1xf32> to vector<16x16xf32>
    %300 = arith.mulf %295, %299 : vector<16x16xf32>
    %cst_110 = arith.constant dense<0.000000e+00> : vector<16x8xf32>
    %301 = tpu.matmul %300, %285, %cst_110 {dimension_numbers = #tpu.dot_dimension_numbers<[1], [0], [0], [1], [0, 0, 1, 1], [], []>} : vector<16x16xf32>, vector<16x8xf32>, vector<16x8xf32> -> vector<16x8xf32>
    %302 = vector.extract_strided_slice %242 {offsets = [0, 24], sizes = [16, 8], strides = [1, 1]} : vector<16x32xf32> to vector<16x8xf32>
    %303 = vector.extract_strided_slice %243 {offsets = [0, 24], sizes = [16, 8], strides = [1, 1]} : vector<16x32xf32> to vector<16x8xf32>
    %304 = vector.extract_strided_slice %244 {offsets = [0, 24], sizes = [16, 8], strides = [1, 1]} : vector<16x32xf32> to vector<16x8xf32>
    %cst_111 = arith.constant dense<0.000000e+00> : vector<16x16xf32>
    %305 = tpu.matmul %302, %303, %cst_111 {dimension_numbers = #tpu.dot_dimension_numbers<[1], [1], [0], [0], [0, 0, 1, 0], [], []>} : vector<16x8xf32>, vector<16x8xf32>, vector<16x16xf32> -> vector<16x16xf32>
    %cst_112 = arith.constant 0.353553385 : f32
    %306 = vector.broadcast %cst_112 : f32 to vector<16x16xf32>
    %307 = arith.mulf %305, %306 : vector<16x16xf32>
    %cst_113 = arith.constant -1.000000e+30 : f32
    %308 = vector.broadcast %cst_113 : f32 to vector<16x16xf32>
    %309 = arith.select %14, %307, %308 : vector<16x16xi1>, vector<16x16xf32>
    %cst_114 = arith.constant dense<0xFF800000> : vector<16xf32>
    %310 = vector.multi_reduction <maximumf>, %309, %cst_114 [1] : vector<16x16xf32> to vector<16xf32>
    %311 = vector.shape_cast %310 : vector<16xf32> to vector<16x1xf32>
    %312 = vector.broadcast %311 : vector<16x1xf32> to vector<16x16xf32>
    %313 = arith.subf %309, %312 : vector<16x16xf32>
    %314 = math.exp %313 : vector<16x16xf32>
    %cst_115 = arith.constant dense<0.000000e+00> : vector<16xf32>
    %315 = vector.multi_reduction <add>, %314, %cst_115 [1] : vector<16x16xf32> to vector<16xf32>
    %316 = vector.shape_cast %315 : vector<16xf32> to vector<16x1xf32>
    %317 = tpu.reciprocal %316 {approx = true} : vector<16x1xf32> -> vector<16x1xf32>
    %318 = vector.broadcast %317 : vector<16x1xf32> to vector<16x16xf32>
    %319 = arith.mulf %314, %318 : vector<16x16xf32>
    %cst_116 = arith.constant dense<0.000000e+00> : vector<16x8xf32>
    %320 = tpu.matmul %319, %304, %cst_116 {dimension_numbers = #tpu.dot_dimension_numbers<[1], [0], [0], [1], [0, 0, 1, 1], [], []>} : vector<16x16xf32>, vector<16x8xf32>, vector<16x8xf32> -> vector<16x8xf32>
    %321 = tpu.concatenate %263, %282, %301, %320 in 1 : vector<16x8xf32>, vector<16x8xf32>, vector<16x8xf32>, vector<16x8xf32> -> vector<16x32xf32>
    %cst_117 = arith.constant dense<0.000000e+00> : vector<16x32xf32>
    %322 = tpu.matmul %321, %206, %cst_117 {dimension_numbers = #tpu.dot_dimension_numbers<[1], [0], [0], [1], [0, 0, 1, 1], [], []>} : vector<16x32xf32>, vector<32x32xf32>, vector<16x32xf32> -> vector<16x32xf32>
    %323 = arith.addf %204, %322 : vector<16x32xf32>
    %324 = vector.broadcast %212 : vector<1x32xf32> to vector<16x32xf32>
    %325 = arith.addf %323, %324 : vector<16x32xf32>
    %cst_118 = arith.constant dense<0.000000e+00> : vector<16xf32>
    %326 = vector.multi_reduction <add>, %325, %cst_118 [1] : vector<16x32xf32> to vector<16xf32>
    %327 = vector.shape_cast %326 : vector<16xf32> to vector<16x1xf32>
    %cst_119 = arith.constant 3.200000e+01 : f32
    %328 = vector.broadcast %cst_119 : f32 to vector<16x1xf32>
    %329 = arith.divf %327, %328 : vector<16x1xf32>
    %330 = vector.broadcast %329 : vector<16x1xf32> to vector<16x32xf32>
    %331 = arith.subf %325, %330 : vector<16x32xf32>
    %332 = arith.mulf %331, %331 : vector<16x32xf32>
    %cst_120 = arith.constant dense<0.000000e+00> : vector<16xf32>
    %333 = vector.multi_reduction <add>, %332, %cst_120 [1] : vector<16x32xf32> to vector<16xf32>
    %334 = vector.shape_cast %333 : vector<16xf32> to vector<16x1xf32>
    %cst_121 = arith.constant 3.200000e+01 : f32
    %335 = vector.broadcast %cst_121 : f32 to vector<16x1xf32>
    %336 = arith.divf %334, %335 : vector<16x1xf32>
    %337 = vector.broadcast %329 : vector<16x1xf32> to vector<16x32xf32>
    %338 = arith.subf %325, %337 : vector<16x32xf32>
    %cst_122 = arith.constant 9.99999996E-13 : f32
    %339 = vector.broadcast %cst_122 : f32 to vector<16x1xf32>
    %340 = arith.addf %336, %339 : vector<16x1xf32>
    %341 = math.rsqrt %340 : vector<16x1xf32>
    %342 = vector.broadcast %341 : vector<16x1xf32> to vector<16x32xf32>
    %343 = arith.mulf %338, %342 : vector<16x32xf32>
    %344 = vector.broadcast %213 : vector<1x32xf32> to vector<16x32xf32>
    %345 = arith.mulf %343, %344 : vector<16x32xf32>
    %346 = vector.broadcast %214 : vector<1x32xf32> to vector<16x32xf32>
    %347 = arith.addf %345, %346 : vector<16x32xf32>
    %cst_123 = arith.constant dense<0.000000e+00> : vector<16x64xf32>
    %348 = tpu.matmul %347, %207, %cst_123 {dimension_numbers = #tpu.dot_dimension_numbers<[1], [0], [0], [1], [0, 0, 1, 1], [], []>} : vector<16x32xf32>, vector<32x64xf32>, vector<16x64xf32> -> vector<16x64xf32>
    %349 = vector.broadcast %215 : vector<1x64xf32> to vector<16x64xf32>
    %350 = arith.addf %348, %349 : vector<16x64xf32>
    %cst_124 = arith.constant 5.000000e-01 : f32
    %351 = vector.broadcast %cst_124 : f32 to vector<16x64xf32>
    %352 = arith.mulf %351, %350 : vector<16x64xf32>
    %cst_125 = arith.constant 0.707106769 : f32
    %353 = vector.broadcast %cst_125 : f32 to vector<16x64xf32>
    %354 = arith.mulf %350, %353 : vector<16x64xf32>
    %355 = math.absf %354 : vector<16x64xf32>
    %cst_126 = arith.constant 0.327591091 : f32
    %356 = vector.broadcast %cst_126 : f32 to vector<16x64xf32>
    %357 = arith.mulf %356, %355 : vector<16x64xf32>
    %cst_127 = arith.constant 1.000000e+00 : f32
    %358 = vector.broadcast %cst_127 : f32 to vector<16x64xf32>
    %359 = arith.addf %358, %357 : vector<16x64xf32>
    %cst_128 = arith.constant 1.000000e+00 : f32
    %360 = vector.broadcast %cst_128 : f32 to vector<16x64xf32>
    %361 = arith.divf %360, %359 : vector<16x64xf32>
    %cst_129 = arith.constant 1.06140542 : f32
    %362 = vector.broadcast %cst_129 : f32 to vector<16x64xf32>
    %363 = arith.mulf %362, %361 : vector<16x64xf32>
    %cst_130 = arith.constant -1.45315206 : f32
    %364 = vector.broadcast %cst_130 : f32 to vector<16x64xf32>
    %365 = arith.addf %363, %364 : vector<16x64xf32>
    %366 = arith.mulf %365, %361 : vector<16x64xf32>
    %cst_131 = arith.constant 1.42141378 : f32
    %367 = vector.broadcast %cst_131 : f32 to vector<16x64xf32>
    %368 = arith.addf %366, %367 : vector<16x64xf32>
    %369 = arith.mulf %368, %361 : vector<16x64xf32>
    %cst_132 = arith.constant -0.284496725 : f32
    %370 = vector.broadcast %cst_132 : f32 to vector<16x64xf32>
    %371 = arith.addf %369, %370 : vector<16x64xf32>
    %372 = arith.mulf %371, %361 : vector<16x64xf32>
    %cst_133 = arith.constant 0.254829586 : f32
    %373 = vector.broadcast %cst_133 : f32 to vector<16x64xf32>
    %374 = arith.addf %372, %373 : vector<16x64xf32>
    %375 = arith.mulf %374, %361 : vector<16x64xf32>
    %cst_134 = arith.constant 0.000000e+00 : f32
    %376 = vector.broadcast %cst_134 : f32 to vector<16x64xf32>
    %377 = arith.subf %376, %355 : vector<16x64xf32>
    %378 = arith.mulf %377, %355 : vector<16x64xf32>
    %379 = math.exp %378 : vector<16x64xf32>
    %380 = arith.mulf %375, %379 : vector<16x64xf32>
    %cst_135 = arith.constant 1.000000e+00 : f32
    %381 = vector.broadcast %cst_135 : f32 to vector<16x64xf32>
    %382 = arith.subf %381, %380 : vector<16x64xf32>
    %cst_136 = arith.constant 0.000000e+00 : f32
    %383 = vector.broadcast %cst_136 : f32 to vector<16x64xf32>
    %384 = arith.cmpf olt, %354, %383 : vector<16x64xf32>
    %cst_137 = arith.constant 0.000000e+00 : f32
    %385 = vector.broadcast %cst_137 : f32 to vector<16x64xf32>
    %386 = arith.subf %385, %382 : vector<16x64xf32>
    %387 = arith.select %384, %386, %382 : vector<16x64xi1>, vector<16x64xf32>
    %cst_138 = arith.constant 1.000000e+00 : f32
    %388 = vector.broadcast %cst_138 : f32 to vector<16x64xf32>
    %389 = arith.addf %388, %387 : vector<16x64xf32>
    %390 = arith.mulf %352, %389 : vector<16x64xf32>
    %cst_139 = arith.constant dense<0.000000e+00> : vector<16x32xf32>
    %391 = tpu.matmul %390, %208, %cst_139 {dimension_numbers = #tpu.dot_dimension_numbers<[1], [0], [0], [1], [0, 0, 1, 1], [], []>} : vector<16x64xf32>, vector<64x32xf32>, vector<16x32xf32> -> vector<16x32xf32>
    %392 = arith.addf %325, %391 : vector<16x32xf32>
    %393 = vector.broadcast %216 : vector<1x32xf32> to vector<16x32xf32>
    %394 = arith.addf %392, %393 : vector<16x32xf32>
    %c16 = arith.constant 16 : index
    %c0_140 = arith.constant 0 : index
    %395 = vector.load %arg5[%c16, %c0_140] : memref<24x128xf32, #tpu.memory_space<vmem>>, vector<1x32xf32>
    %c17 = arith.constant 17 : index
    %c0_141 = arith.constant 0 : index
    %396 = vector.load %arg5[%c17, %c0_141] : memref<24x128xf32, #tpu.memory_space<vmem>>, vector<1x32xf32>
    %cst_142 = arith.constant dense<0.000000e+00> : vector<16xf32>
    %397 = vector.multi_reduction <add>, %394, %cst_142 [1] : vector<16x32xf32> to vector<16xf32>
    %398 = vector.shape_cast %397 : vector<16xf32> to vector<16x1xf32>
    %cst_143 = arith.constant 3.200000e+01 : f32
    %399 = vector.broadcast %cst_143 : f32 to vector<16x1xf32>
    %400 = arith.divf %398, %399 : vector<16x1xf32>
    %401 = vector.broadcast %400 : vector<16x1xf32> to vector<16x32xf32>
    %402 = arith.subf %394, %401 : vector<16x32xf32>
    %403 = arith.mulf %402, %402 : vector<16x32xf32>
    %cst_144 = arith.constant dense<0.000000e+00> : vector<16xf32>
    %404 = vector.multi_reduction <add>, %403, %cst_144 [1] : vector<16x32xf32> to vector<16xf32>
    %405 = vector.shape_cast %404 : vector<16xf32> to vector<16x1xf32>
    %cst_145 = arith.constant 3.200000e+01 : f32
    %406 = vector.broadcast %cst_145 : f32 to vector<16x1xf32>
    %407 = arith.divf %405, %406 : vector<16x1xf32>
    %408 = vector.broadcast %400 : vector<16x1xf32> to vector<16x32xf32>
    %409 = arith.subf %394, %408 : vector<16x32xf32>
    %cst_146 = arith.constant 9.99999996E-13 : f32
    %410 = vector.broadcast %cst_146 : f32 to vector<16x1xf32>
    %411 = arith.addf %407, %410 : vector<16x1xf32>
    %412 = math.rsqrt %411 : vector<16x1xf32>
    %413 = vector.broadcast %412 : vector<16x1xf32> to vector<16x32xf32>
    %414 = arith.mulf %409, %413 : vector<16x32xf32>
    %415 = vector.broadcast %395 : vector<1x32xf32> to vector<16x32xf32>
    %416 = arith.mulf %414, %415 : vector<16x32xf32>
    %417 = vector.broadcast %396 : vector<1x32xf32> to vector<16x32xf32>
    %418 = arith.addf %416, %417 : vector<16x32xf32>
    %419 = tpu.iota {dimensions = array<i32: 0>} : vector<16x1xi32>
    %c7_i32_147 = arith.constant 7 : i32
    %420 = vector.broadcast %c7_i32_147 : i32 to vector<16x1xi32>
    %421 = arith.andi %419, %420 : vector<16x1xi32>
    %c5_i32_148 = arith.constant 5 : i32
    %422 = vector.broadcast %c5_i32_148 : i32 to vector<16x1xi32>
    %423 = arith.cmpi slt, %421, %422 : vector<16x1xi32>
    %424 = arith.extui %423 : vector<16x1xi1> to vector<16x1xi32>
    %425 = arith.sitofp %424 : vector<16x1xi32> to vector<16x1xf32>
    %426 = vector.broadcast %425 : vector<16x1xf32> to vector<16x32xf32>
    %427 = arith.mulf %418, %426 : vector<16x32xf32>
    %c0_149 = arith.constant 0 : index
    %c0_150 = arith.constant 0 : index
    %428 = vector.load %arg6[%c0_149, %c0_150] : memref<160x16xf32, #tpu.memory_space<vmem>>, vector<32x16xf32>
    %c32_151 = arith.constant 32 : index
    %c0_152 = arith.constant 0 : index
    %429 = vector.load %arg6[%c32_151, %c0_152] : memref<160x16xf32, #tpu.memory_space<vmem>>, vector<32x16xf32>
    %c64_153 = arith.constant 64 : index
    %c0_154 = arith.constant 0 : index
    %430 = vector.load %arg6[%c64_153, %c0_154] : memref<160x16xf32, #tpu.memory_space<vmem>>, vector<32x16xf32>
    %c18 = arith.constant 18 : index
    %c0_155 = arith.constant 0 : index
    %431 = vector.load %arg5[%c18, %c0_155] : memref<24x128xf32, #tpu.memory_space<vmem>>, vector<1x16xf32>
    %cst_156 = arith.constant 0.000000e+00 : f32
    %432 = vector.broadcast %cst_156 : f32 to vector<1x32xf32>
    %433 = vector.extract_strided_slice %427 {offsets = [0, 0], sizes = [15, 32], strides = [1, 1]} : vector<16x32xf32> to vector<15x32xf32>
    %434 = tpu.concatenate %432, %433 in 0 : vector<1x32xf32>, vector<15x32xf32> -> vector<16x32xf32>
    %435 = vector.extract_strided_slice %427 {offsets = [1, 0], sizes = [15, 32], strides = [1, 1]} : vector<16x32xf32> to vector<15x32xf32>
    %436 = tpu.concatenate %435, %432 in 0 : vector<15x32xf32>, vector<1x32xf32> -> vector<16x32xf32>
    %cst_157 = arith.constant dense<0.000000e+00> : vector<16x16xf32>
    %437 = tpu.matmul %434, %428, %cst_157 {dimension_numbers = #tpu.dot_dimension_numbers<[1], [0], [0], [1], [0, 0, 1, 1], [], []>} : vector<16x32xf32>, vector<32x16xf32>, vector<16x16xf32> -> vector<16x16xf32>
    %cst_158 = arith.constant dense<0.000000e+00> : vector<16x16xf32>
    %438 = tpu.matmul %427, %429, %cst_158 {dimension_numbers = #tpu.dot_dimension_numbers<[1], [0], [0], [1], [0, 0, 1, 1], [], []>} : vector<16x32xf32>, vector<32x16xf32>, vector<16x16xf32> -> vector<16x16xf32>
    %439 = arith.addf %437, %438 : vector<16x16xf32>
    %cst_159 = arith.constant dense<0.000000e+00> : vector<16x16xf32>
    %440 = tpu.matmul %436, %430, %cst_159 {dimension_numbers = #tpu.dot_dimension_numbers<[1], [0], [0], [1], [0, 0, 1, 1], [], []>} : vector<16x32xf32>, vector<32x16xf32>, vector<16x16xf32> -> vector<16x16xf32>
    %441 = arith.addf %439, %440 : vector<16x16xf32>
    %442 = vector.broadcast %431 : vector<1x16xf32> to vector<16x16xf32>
    %443 = arith.addf %441, %442 : vector<16x16xf32>
    %cst_160 = arith.constant 0.000000e+00 : f32
    %444 = vector.broadcast %cst_160 : f32 to vector<16x16xf32>
    %445 = arith.maximumf %443, %444 : vector<16x16xf32>
    %446 = vector.broadcast %425 : vector<16x1xf32> to vector<16x16xf32>
    %447 = arith.mulf %445, %446 : vector<16x16xf32>
    %c96_161 = arith.constant 96 : index
    %c0_162 = arith.constant 0 : index
    %448 = vector.load %arg6[%c96_161, %c0_162] : memref<160x16xf32, #tpu.memory_space<vmem>>, vector<16x16xf32>
    %c112 = arith.constant 112 : index
    %c0_163 = arith.constant 0 : index
    %449 = vector.load %arg6[%c112, %c0_163] : memref<160x16xf32, #tpu.memory_space<vmem>>, vector<16x16xf32>
    %c128_164 = arith.constant 128 : index
    %c0_165 = arith.constant 0 : index
    %450 = vector.load %arg6[%c128_164, %c0_165] : memref<160x16xf32, #tpu.memory_space<vmem>>, vector<16x16xf32>
    %c19 = arith.constant 19 : index
    %c0_166 = arith.constant 0 : index
    %451 = vector.load %arg5[%c19, %c0_166] : memref<24x128xf32, #tpu.memory_space<vmem>>, vector<1x16xf32>
    %cst_167 = arith.constant 0.000000e+00 : f32
    %452 = vector.broadcast %cst_167 : f32 to vector<1x16xf32>
    %453 = vector.extract_strided_slice %447 {offsets = [0, 0], sizes = [15, 16], strides = [1, 1]} : vector<16x16xf32> to vector<15x16xf32>
    %454 = tpu.concatenate %452, %453 in 0 : vector<1x16xf32>, vector<15x16xf32> -> vector<16x16xf32>
    %455 = vector.extract_strided_slice %447 {offsets = [1, 0], sizes = [15, 16], strides = [1, 1]} : vector<16x16xf32> to vector<15x16xf32>
    %456 = tpu.concatenate %455, %452 in 0 : vector<15x16xf32>, vector<1x16xf32> -> vector<16x16xf32>
    %cst_168 = arith.constant dense<0.000000e+00> : vector<16x16xf32>
    %457 = tpu.matmul %454, %448, %cst_168 {dimension_numbers = #tpu.dot_dimension_numbers<[1], [0], [0], [1], [0, 0, 1, 1], [], []>} : vector<16x16xf32>, vector<16x16xf32>, vector<16x16xf32> -> vector<16x16xf32>
    %cst_169 = arith.constant dense<0.000000e+00> : vector<16x16xf32>
    %458 = tpu.matmul %447, %449, %cst_169 {dimension_numbers = #tpu.dot_dimension_numbers<[1], [0], [0], [1], [0, 0, 1, 1], [], []>} : vector<16x16xf32>, vector<16x16xf32>, vector<16x16xf32> -> vector<16x16xf32>
    %459 = arith.addf %457, %458 : vector<16x16xf32>
    %cst_170 = arith.constant dense<0.000000e+00> : vector<16x16xf32>
    %460 = tpu.matmul %456, %450, %cst_170 {dimension_numbers = #tpu.dot_dimension_numbers<[1], [0], [0], [1], [0, 0, 1, 1], [], []>} : vector<16x16xf32>, vector<16x16xf32>, vector<16x16xf32> -> vector<16x16xf32>
    %461 = arith.addf %459, %460 : vector<16x16xf32>
    %462 = vector.broadcast %451 : vector<1x16xf32> to vector<16x16xf32>
    %463 = arith.addf %461, %462 : vector<16x16xf32>
    %cst_171 = arith.constant 0.000000e+00 : f32
    %464 = vector.broadcast %cst_171 : f32 to vector<16x16xf32>
    %465 = arith.maximumf %463, %464 : vector<16x16xf32>
    %466 = vector.broadcast %425 : vector<16x1xf32> to vector<16x16xf32>
    %467 = arith.mulf %465, %466 : vector<16x16xf32>
    %c144 = arith.constant 144 : index
    %c0_172 = arith.constant 0 : index
    %468 = vector.load %arg6[%c144, %c0_172] : memref<160x16xf32, #tpu.memory_space<vmem>>, vector<16x2xf32>
    %c20 = arith.constant 20 : index
    %c0_173 = arith.constant 0 : index
    %469 = vector.load %arg5[%c20, %c0_173] : memref<24x128xf32, #tpu.memory_space<vmem>>, vector<1x2xf32>
    %470 = tpu.iota {dimensions = array<i32: 0>} : vector<2x16xi32>
    %471 = tpu.iota {dimensions = array<i32: 1>} : vector<2x16xi32>
    %c8_i32_174 = arith.constant 8 : i32
    %472 = vector.broadcast %c8_i32_174 : i32 to vector<2x16xi32>
    %473 = arith.muli %470, %472 : vector<2x16xi32>
    %474 = arith.cmpi sge, %471, %473 : vector<2x16xi32>
    %c8_i32_175 = arith.constant 8 : i32
    %475 = vector.broadcast %c8_i32_175 : i32 to vector<2x16xi32>
    %476 = arith.muli %470, %475 : vector<2x16xi32>
    %c5_i32_176 = arith.constant 5 : i32
    %477 = vector.broadcast %c5_i32_176 : i32 to vector<2x16xi32>
    %478 = arith.addi %476, %477 : vector<2x16xi32>
    %479 = arith.cmpi slt, %471, %478 : vector<2x16xi32>
    %480 = arith.andi %474, %479 : vector<2x16xi1>
    %cst_177 = arith.constant 2.000000e-01 : f32
    %cst_178 = arith.constant 0.000000e+00 : f32
    %481 = vector.broadcast %cst_177 : f32 to vector<2x16xf32>
    %482 = vector.broadcast %cst_178 : f32 to vector<2x16xf32>
    %483 = arith.select %480, %481, %482 : vector<2x16xi1>, vector<2x16xf32>
    %cst_179 = arith.constant dense<0.000000e+00> : vector<2x16xf32>
    %484 = tpu.matmul %483, %467, %cst_179 {dimension_numbers = #tpu.dot_dimension_numbers<[1], [0], [0], [1], [0, 0, 1, 1], [], []>} : vector<2x16xf32>, vector<16x16xf32>, vector<2x16xf32> -> vector<2x16xf32>
    %cst_180 = arith.constant dense<0.000000e+00> : vector<2x2xf32>
    %485 = tpu.matmul %484, %468, %cst_180 {dimension_numbers = #tpu.dot_dimension_numbers<[1], [0], [0], [1], [0, 0, 1, 1], [], []>} : vector<2x16xf32>, vector<16x2xf32>, vector<2x2xf32> -> vector<2x2xf32>
    %486 = vector.broadcast %469 : vector<1x2xf32> to vector<2x2xf32>
    %487 = arith.addf %485, %486 : vector<2x2xf32>
    %c0_181 = arith.constant 0 : index
    %c0_182 = arith.constant 0 : index
    %488 = vector.load %arg7[%c0_181, %c0_182] : memref<2x2xf32, #tpu.memory_space<vmem>>, vector<2x2xf32>
    tpu.vector_store %arg7[%c0_181, %c0_182], %487 {strides = array<i32>} : memref<2x2xf32, #tpu.memory_space<vmem>>, vector<2x2xf32>,
    return
  }
}

</mosaic_0001>

<llo_original>
// kernel: vit_with_custom_cnn_forward.1
$region0: #{vit_with_custom_cnn_forward.1}
  #allocation0 [shape = 'u32[]', space=smem, size = 0x4, offset = 0x4, fixed_abs, tag = 'smem constant byte address 0x4 - core index']
  #allocation1 [shape = 'u32[144,128]{1,0:T(1,128)}', space=vmem, size = 0x12000, scoped, tag = 'internal scratch']
  %s0 = inlined_call_operand.vmem [shape: f32[16,192], index: 0, kind: input, shape index: {}]
  %s1 = inlined_call_operand.vmem [shape: f32[192,32], index: 1, kind: input, shape index: {}]
  %s2 = inlined_call_operand.vmem [shape: f32[16,32], index: 2, kind: input, shape index: {}]
  %s3 = inlined_call_operand.vmem [shape: f32[64,192], index: 3, kind: input, shape index: {}]
  %s4 = inlined_call_operand.vmem [shape: f32[128,32], index: 4, kind: input, shape index: {}]
  %s5 = inlined_call_operand.vmem [shape: f32[24,128], index: 5, kind: input, shape index: {}]
  %s6 = inlined_call_operand.vmem [shape: f32[160,16], index: 6, kind: input, shape index: {}]
  %s7 = inlined_call_operand.hbm [shape: f32[2,2], index: 7, kind: output, shape index: {}]
  %s8 = sld [smem:[#allocation0]]
  $region38: #{vit_with_custom_cnn_forward.1} parent=0
    _
  %s10 = ssub.s32 1, %s8
  %s11 = scalar_select 0, %s10, %s8
  $region1: #{vit_with_custom_cnn_forward.1} parent=0
    #allocation2 [shape = 'u8[1024]{0}', space=vmem, size = 0x400, scoped, tag = 'output window, operand 0, single buffered']
    #allocation3 [shape = 's32[1]{0}', space=sflag, size = 0x4, scoped, tag = 'scoped memory for vit_with_custom_cnn_forward.1']
    %12 = vsyncpa [#allocation3], 0
    // Predicated region
    $region2: #{vit_with_custom_cnn_forward.1} parent=1 // pred_check
      _
    $region3: #{vit_with_custom_cnn_forward.1} parent=1 // pred_check_branch
      %14 = sbr.rel (0) target = $region5
    $region4: #{vit_with_custom_cnn_forward.1} parent=1 // pred_region
      _
    $region5: #{vit_with_custom_cnn_forward.1} parent=1 // pred_fallthru
      _
    // Predicated region
    $region6: #{vit_with_custom_cnn_forward.1} parent=1 // pred_check
      _
    $region7: #{vit_with_custom_cnn_forward.1} parent=1 // pred_check_branch
      %16 = sbr.rel (0) target = $region9
    $region8: #{vit_with_custom_cnn_forward.1} parent=1 // pred_region
      _
    $region9: #{vit_with_custom_cnn_forward.1} parent=1 // pred_fallthru
      _
    // Predicated region
    $region10: #{vit_with_custom_cnn_forward.1} parent=1 // pred_check
      _
    $region11: #{vit_with_custom_cnn_forward.1} parent=1 // pred_check_branch
      %18 = sbr.rel (0) target = $region13
    $region12: #{vit_with_custom_cnn_forward.1} parent=1 // pred_region
      _
    $region13: #{vit_with_custom_cnn_forward.1} parent=1 // pred_fallthru
      _
    // Predicated region
    $region14: #{vit_with_custom_cnn_forward.1} parent=1 // pred_check
      _
    $region15: #{vit_with_custom_cnn_forward.1} parent=1 // pred_check_branch
      %20 = sbr.rel (0) target = $region17
    $region16: #{vit_with_custom_cnn_forward.1} parent=1 // pred_region
      _
    $region17: #{vit_with_custom_cnn_forward.1} parent=1 // pred_fallthru
      _
    // Predicated region
    $region18: #{vit_with_custom_cnn_forward.1} parent=1 // pred_check
      _
    $region19: #{vit_with_custom_cnn_forward.1} parent=1 // pred_check_branch
      %22 = sbr.rel (0) target = $region21
    $region20: #{vit_with_custom_cnn_forward.1} parent=1 // pred_region
      _
    $region21: #{vit_with_custom_cnn_forward.1} parent=1 // pred_fallthru
      _
    // Predicated region
    $region22: #{vit_with_custom_cnn_forward.1} parent=1 // pred_check
      _
    $region23: #{vit_with_custom_cnn_forward.1} parent=1 // pred_check_branch
      %24 = sbr.rel (0) target = $region25
    $region24: #{vit_with_custom_cnn_forward.1} parent=1 // pred_region
      _
    $region25: #{vit_with_custom_cnn_forward.1} parent=1 // pred_fallthru
      _
    // Predicated region
    $region26: #{vit_with_custom_cnn_forward.1} parent=1 // pred_check
      _
    $region27: #{vit_with_custom_cnn_forward.1} parent=1 // pred_check_branch
      %26 = sbr.rel (0) target = $region29
    $region28: #{vit_with_custom_cnn_forward.1} parent=1 // pred_region
      _
    $region29: #{vit_with_custom_cnn_forward.1} parent=1 // pred_fallthru
      _
    %v27 = vld [vmem:[%s0] sm:$0xff]
    %v28 = vld [vmem:[%s0 + $0x8] sm:$0xff]
    %v29 = vld [vmem:[%s0 + $0x10] sm:$0xff]
    %v30 = vld [vmem:[%s0 + $0x18] sm:$0xff]
    %v31 = vld [vmem:[%s1] sm:$0xff]
    %v32 = vld [vmem:[%s1 + $0x8] sm:$0xff]
    %v33 = vld [vmem:[%s1 + $0x10] sm:$0xff]
    %v34 = vld [vmem:[%s1 + $0x18] sm:$0xff]
    %v35 = vld [vmem:[%s1 + $0x20] sm:$0xff]
    %v36 = vld [vmem:[%s1 + $0x28] sm:$0xff]
    %v37 = vld [vmem:[%s1 + $0x30] sm:$0xff]
    %v38 = vld [vmem:[%s1 + $0x38] sm:$0xff]
    %v39 = vld [vmem:[%s1 + $0x40] sm:$0xff]
    %v40 = vld [vmem:[%s1 + $0x48] sm:$0xff]
    %v41 = vld [vmem:[%s1 + $0x50] sm:$0xff]
    %v42 = vld [vmem:[%s1 + $0x58] sm:$0xff]
    %v43 = vld [vmem:[%s1 + $0x60] sm:$0xff]
    %v44 = vld [vmem:[%s1 + $0x68] sm:$0xff]
    %v45 = vld [vmem:[%s1 + $0x70] sm:$0xff]
    %v46 = vld [vmem:[%s1 + $0x78] sm:$0xff]
    %v47 = vld [vmem:[%s1 + $0x80] sm:$0xff]
    %v48 = vld [vmem:[%s1 + $0x88] sm:$0xff]
    %v49 = vld [vmem:[%s1 + $0x90] sm:$0xff]
    %v50 = vld [vmem:[%s1 + $0x98] sm:$0xff]
    %v51 = vld [vmem:[%s1 + $0xa0] sm:$0xff]
    %v52 = vld [vmem:[%s1 + $0xa8] sm:$0xff]
    %v53 = vld [vmem:[%s1 + $0xb0] sm:$0xff]
    %v54 = vld [vmem:[%s1 + $0xb8] sm:$0xff]
    %v55 = vld [vmem:[%s2] sm:$0xff]
    %v56 = vld [vmem:[%s2 + $0x8] sm:$0xff]
    %vm57 = vcmask 523264
    %v59 = vsel %vm57, %v28, 0
    %v62 = vsel %vm57, %v30, 0
    %64 = vmatprep.subr.mxu0 0.0
    %65 = vmatpush1.msra.mxu0 %v46
    %66 = vmatprep.subr.mxu0 0.0
    %67 = vmatpush1.msra.mxu0 %v45
    %68 = vmatprep.subr.mxu0 0.0
    %69 = vmatpush1.msra.mxu0 %v44
    %70 = vmatprep.subr.mxu0 0.0
    %71 = vmatpush1.msra.mxu0 %v43
    %72 = vmatprep.subr.mxu0 0.0
    %73 = vmatpush1.msra.mxu0 %v42
    %74 = vmatprep.subr.mxu0 0.0
    %75 = vmatpush1.msra.mxu0 %v41
    %76 = vmatprep.subr.mxu0 0.0
    %77 = vmatpush1.msra.mxu0 %v40
    %78 = vmatprep.subr.mxu0 0.0
    %79 = vmatpush1.msra.mxu0 %v39
    %80 = vmatprep.subr.mxu0 0.0
    %81 = vmatpush1.msra.mxu0 %v38
    %82 = vmatprep.subr.mxu0 0.0
    %83 = vmatpush1.msra.mxu0 %v37
    %84 = vmatprep.subr.mxu0 0.0
    %85 = vmatpush1.msra.mxu0 %v36
    %86 = vmatprep.subr.mxu0 0.0
    %87 = vmatpush1.msra.mxu0 %v35
    %88 = vmatprep.subr.mxu0 0.0
    %89 = vmatpush1.msra.mxu0 %v34
    %90 = vmatprep.subr.mxu0 0.0
    %91 = vmatpush1.msra.mxu0 %v33
    %92 = vmatprep.subr.mxu0 0.0
    %93 = vmatpush1.msra.mxu0 %v32
    %94 = vmatprep.subr.mxu0 0.0
    %95 = vmatpush1.msra.mxu0 %v31
    %96 = vmatprep.subr.mxu0 0.0
    %97 = vmatpush2.msra.mxu0 0.0
    %98 = vmatprep.subr.mxu0 0.0
    %99 = vmatpush2.msra.mxu0 0.0
    %100 = vmatprep.subr.mxu0 0.0
    %101 = vmatpush2.msra.mxu0 0.0
    %102 = vmatprep.subr.mxu0 0.0
    %103 = vmatpush2.msra.mxu0 0.0
    %104 = vmatprep.subr.mxu0 0.0
    %105 = vmatpush2.msra.mxu0 0.0
    %106 = vmatprep.subr.mxu0 0.0
    %107 = vmatpush2.msra.mxu0 0.0
    %108 = vmatprep.subr.mxu0 0.0
    %109 = vmatpush2.msra.mxu0 0.0
    %110 = vmatprep.subr.mxu0 0.0
    %111 = vmatpush2.msra.mxu0 0.0
    %112 = vmatprep.subr.mxu0 0.0
    %113 = vmatpush2.msra.mxu0 %v54
    %114 = vmatprep.subr.mxu0 0.0
    %115 = vmatpush2.msra.mxu0 %v53
    %116 = vmatprep.subr.mxu0 0.0
    %117 = vmatpush2.msra.mxu0 %v52
    %118 = vmatprep.subr.mxu0 0.0
    %119 = vmatpush2.msra.mxu0 %v51
    %120 = vmatprep.subr.mxu0 0.0
    %121 = vmatpush2.msra.mxu0 %v50
    %122 = vmatprep.subr.mxu0 0.0
    %123 = vmatpush2.msra.mxu0 %v49
    %124 = vmatprep.subr.mxu0 0.0
    %125 = vmatpush2.msra.mxu0 %v48
    %126 = vmatprep.subr.mxu0 0.0
    %127 = vmatpush2.msra.mxu0 %v47
    %128 = vmatprep.mubr.f32.mxu0 %v59
    %129 = vmatmul.mubr.f32.gmra.mxu0 %v27
    %v130 = vpop.f32.mrf.mxu0
    %v131 = vadd.f32 %v55, %v130
    %v132 = vpop.f32.mrf.mxu0
    %133 = vmatprep.mubr.f32.mxu0 %v62
    %134 = vmatmul.mubr.f32.gmra.mxu0 %v29
    %v135 = vpop.f32.mrf.mxu0
    %v136 = vadd.f32 %v56, %v135
    %v137 = vpop.f32.mrf.mxu0
    %138 = vdwg.mxu0
    %v139 = vlaneseq
    %v140 = vshrl.u32 %v139, 7
    %v141 = vadd.s32 %v140, 8
    %v142 = vlaneseq
    %v143 = vand.u32 %v142, 127
    %v144 = vxor.u32 %v140, %v143
    %v145 = vxor.u32 %v141, %v143
    %vm146 = vcmp.lt.s32.totalorder %v144, 8
    %vm147 = vcmp.lt.s32.totalorder %v145, 8
    %v148 = vand.u32 %v143, 7
    %vm149 = vcmp.lt.s32.totalorder %v148, 5
    %vm150 = vmand %vm146, %vm149
    %vm151 = vmand %vm147, %vm149
    %v152 = vld [vmem:[%s3] sm:$0xff]
    %v153 = vld [vmem:[%s3 + $0x10] sm:$0xff]
    %v154 = vld [vmem:[%s3 + $0x20] sm:$0xff]
    %v155 = vld [vmem:[%s3 + $0x30] sm:$0xff]
    %v156 = vld [vmem:[%s3 + $0x8] sm:$0xff]
    %v157 = vld [vmem:[%s3 + $0x18] sm:$0xff]
    %v158 = vld [vmem:[%s3 + $0x28] sm:$0xff]
    %v159 = vld [vmem:[%s3 + $0x38] sm:$0xff]
    %v160 = vld [vmem:[%s4] sm:$0xff]
    %v161 = vld [vmem:[%s4 + $0x8] sm:$0xff]
    %v162 = vld [vmem:[%s4 + $0x10] sm:$0xff]
    %v163 = vld [vmem:[%s4 + $0x18] sm:$0xff]
    %v164 = vld [vmem:[%s4 + $0x20] sm:$0xff]
    %v165 = vld [vmem:[%s4 + $0x28] sm:$0xff]
    %v166 = vld [vmem:[%s4 + $0x30] sm:$0xff]
    %v167 = vld [vmem:[%s4 + $0x38] sm:$0xff]
    %v168 = vld [vmem:[%s5] sm:$0x1]
    %v169 = vld [vmem:[%s5 + $0x1] sm:$0x1]
    %v170 = vld [vmem:[%s5 + $0x2] sm:$0x1]
    %v171 = vld [vmem:[%s5 + $0x3] sm:$0x1]
    %v172 = vld [vmem:[%s5 + $0x4] sm:$0x1]
    %v173 = vld [vmem:[%s5 + $0x5] sm:$0x1]
    %v174 = vld [vmem:[%s5 + $0x6] sm:$0x1]
    %v175 = vld [vmem:[%s5 + $0x7] sm:$0x1]
    %vm176 = vcmask 261120
    %v177 = vsel %vm176, %v131, 0.0
    %178 = vadd.xlane.f32.xlu0 %v177
    %v179 = vpop.xlane.xlu0 %178
    %v180 = vsel %vm176, %v136, 0.0
    %181 = vadd.xlane.f32.xlu0 %v180
    %v182 = vpop.xlane.xlu0 %181
    %v183 = vrcp.pop 32.0
    %v184 = vmul.f32 %v179, %v183
    %v185 = vmul.f32 %v182, %v183
    %v186 = vsub.f32 %v131, %v184
    %v187 = vsub.f32 %v136, %v185
    %v188 = vmul.f32 %v186, %v186
    %v189 = vmul.f32 %v187, %v187
    %v190 = vsel %vm176, %v188, 0.0
    %191 = vadd.xlane.f32.xlu0 %v190
    %v192 = vpop.xlane.xlu0 %191
    %v193 = vsel %vm176, %v189, 0.0
    %194 = vadd.xlane.f32.xlu0 %v193
    %v195 = vpop.xlane.xlu0 %194
    %v196 = vmul.f32 %v192, %v183
    %v197 = vmul.f32 %v195, %v183
    %v198 = vadd.f32 %v196, 1e-12
    %v199 = vadd.f32 %v197, 1e-12
    %v200 = vrsqrt.pop %v198
    %v201 = vrsqrt.pop %v199
    %v202 = vmul.f32 %v186, %v200
    %v203 = vmul.f32 %v187, %v201
    %v204 = vlaneseq
    %v205 = vshrl.u32 %v204, 7
    %v206 = vsub.s32 0, %v205
    %v207 = vrot.slane %v168, %v206
    %v208 = vmul.f32 %v202, %v207
    %v209 = vmul.f32 %v203, %v207
    %v210 = vlaneseq
    %v211 = vshrl.u32 %v210, 7
    %v212 = vsub.s32 0, %v211
    %v213 = vrot.slane %v169, %v212
    %v214 = vadd.f32 %v208, %v213
    %v215 = vadd.f32 %v209, %v213
    %v216 = vlaneseq
    %v217 = vshrl.u32 %v216, 7
    %v218 = vsub.s32 0, %v217
    %v219 = vrot.slane %v170, %v218
    %v221 = vsel %vm176, %v214, 0
    %v224 = vsel %vm176, %v215, 0
    %226 = vmatprep.subr.mxu0 0.0
    %227 = vmatpush1.msra.mxu0 0.0
    %228 = vmatprep.subr.mxu0 0.0
    %229 = vmatpush1.msra.mxu0 0.0
    %230 = vmatprep.subr.mxu0 0.0
    %231 = vmatpush1.msra.mxu0 0.0
    %232 = vmatprep.subr.mxu0 0.0
    %233 = vmatpush1.msra.mxu0 0.0
    %234 = vmatprep.subr.mxu0 0.0
    %235 = vmatpush1.msra.mxu0 0.0
    %236 = vmatprep.subr.mxu0 0.0
    %237 = vmatpush1.msra.mxu0 0.0
    %238 = vmatprep.subr.mxu0 0.0
    %239 = vmatpush1.msra.mxu0 0.0
    %240 = vmatprep.subr.mxu0 0.0
    %241 = vmatpush1.msra.mxu0 0.0
    %242 = vmatprep.subr.mxu0 0.0
    %243 = vmatpush1.msra.mxu0 0.0
    %244 = vmatprep.subr.mxu0 0.0
    %245 = vmatpush1.msra.mxu0 0.0
    %246 = vmatprep.subr.mxu0 0.0
    %247 = vmatpush1.msra.mxu0 0.0
    %248 = vmatprep.subr.mxu0 0.0
    %249 = vmatpush1.msra.mxu0 0.0
    %250 = vmatprep.subr.mxu0 0.0
    %251 = vmatpush1.msra.mxu0 %v155
    %252 = vmatprep.subr.mxu0 0.0
    %253 = vmatpush1.msra.mxu0 %v154
    %254 = vmatprep.subr.mxu0 0.0
    %255 = vmatpush1.msra.mxu0 %v153
    %256 = vmatprep.subr.mxu0 0.0
    %257 = vmatpush1.msra.mxu0 %v152
    %258 = vmatprep.subr.mxu0 0.0
    %259 = vmatpush2.msra.mxu0 0.0
    %260 = vmatprep.subr.mxu0 0.0
    %261 = vmatpush2.msra.mxu0 0.0
    %262 = vmatprep.subr.mxu0 0.0
    %263 = vmatpush2.msra.mxu0 0.0
    %264 = vmatprep.subr.mxu0 0.0
    %265 = vmatpush2.msra.mxu0 0.0
    %266 = vmatprep.subr.mxu0 0.0
    %267 = vmatpush2.msra.mxu0 0.0
    %268 = vmatprep.subr.mxu0 0.0
    %269 = vmatpush2.msra.mxu0 0.0
    %270 = vmatprep.subr.mxu0 0.0
    %271 = vmatpush2.msra.mxu0 0.0
    %272 = vmatprep.subr.mxu0 0.0
    %273 = vmatpush2.msra.mxu0 0.0
    %274 = vmatprep.subr.mxu0 0.0
    %275 = vmatpush2.msra.mxu0 0.0
    %276 = vmatprep.subr.mxu0 0.0
    %277 = vmatpush2.msra.mxu0 0.0
    %278 = vmatprep.subr.mxu0 0.0
    %279 = vmatpush2.msra.mxu0 0.0
    %280 = vmatprep.subr.mxu0 0.0
    %281 = vmatpush2.msra.mxu0 0.0
    %282 = vmatprep.subr.mxu0 0.0
    %283 = vmatpush2.msra.mxu0 0.0
    %284 = vmatprep.subr.mxu0 0.0
    %285 = vmatpush2.msra.mxu0 0.0
    %286 = vmatprep.subr.mxu0 0.0
    %287 = vmatpush2.msra.mxu0 0.0
    %288 = vmatprep.subr.mxu0 0.0
    %289 = vmatpush2.msra.mxu0 0.0
    %290 = vmatprep.mubr.f32.mxu0 0.0
    %291 = vmatmul.mubr.f32.gmra.mxu0 %v221
    %v292 = vpop.f32.mrf.mxu0
    %v293 = vadd.f32 %v219, %v292
    %v294 = vpop.f32.mrf.mxu0
    %295 = vmatprep.mubr.f32.mxu0 0.0
    %296 = vmatmul.mubr.f32.gmra.mxu0 %v224
    %v297 = vpop.f32.mrf.mxu0
    %v298 = vadd.f32 %v219, %v297
    %v299 = vpop.f32.mrf.mxu0
    %300 = vdwg.mxu0
    %303 = vrot.lane.b32.xlu0 %v293, 96
    %v304 = vpop.permute.xlu0 %303
    %305 = vrot.lane.b32.xlu0 %v298, 96
    %v306 = vpop.permute.xlu0 %305
    %vm307 = vcmask 64512
    %v308 = vsel %vm307, %v293, 0
    %v310 = vsel %vm307, %v298, 0
    %v312 = vsel %vm307, %v304, 0
    %v314 = vsel %vm307, %v306, 0
    %316 = vmatprep.subr.mxu0 0.0
    %317 = vmatpush1.xpose.msra.mxu0 0.0
    %318 = vmatprep.subr.mxu0 0.0
    %319 = vmatpush1.xpose.msra.mxu0 0.0
    %320 = vmatprep.subr.mxu0 0.0
    %321 = vmatpush1.xpose.msra.mxu0 0.0
    %322 = vmatprep.subr.mxu0 0.0
    %323 = vmatpush1.xpose.msra.mxu0 0.0
    %324 = vmatprep.subr.mxu0 0.0
    %325 = vmatpush1.xpose.msra.mxu0 0.0
    %326 = vmatprep.subr.mxu0 0.0
    %327 = vmatpush1.xpose.msra.mxu0 0.0
    %328 = vmatprep.subr.mxu0 0.0
    %329 = vmatpush1.xpose.msra.mxu0 0.0
    %330 = vmatprep.subr.mxu0 0.0
    %331 = vmatpush1.xpose.msra.mxu0 0.0
    %332 = vmatprep.subr.mxu0 0.0
    %333 = vmatpush1.xpose.msra.mxu0 0.0
    %334 = vmatprep.subr.mxu0 0.0
    %335 = vmatpush1.xpose.msra.mxu0 0.0
    %336 = vmatprep.subr.mxu0 0.0
    %337 = vmatpush1.xpose.msra.mxu0 0.0
    %338 = vmatprep.subr.mxu0 0.0
    %339 = vmatpush1.xpose.msra.mxu0 0.0
    %340 = vmatprep.subr.mxu0 0.0
    %341 = vmatpush1.xpose.msra.mxu0 0.0
    %342 = vmatprep.subr.mxu0 0.0
    %343 = vmatpush1.xpose.msra.mxu0 0.0
    %344 = vmatprep.subr.mxu0 0.0
    %345 = vmatpush1.xpose.msra.mxu0 %v314
    %346 = vmatprep.subr.mxu0 0.0
    %347 = vmatpush1.xpose.msra.mxu0 %v312
    %348 = vmatprep.subr.mxu0 0.0
    %349 = vmatpush2.xpose.msra.mxu0 0.0
    %350 = vmatprep.subr.mxu0 0.0
    %351 = vmatpush2.xpose.msra.mxu0 0.0
    %352 = vmatprep.subr.mxu0 0.0
    %353 = vmatpush2.xpose.msra.mxu0 0.0
    %354 = vmatprep.subr.mxu0 0.0
    %355 = vmatpush2.xpose.msra.mxu0 0.0
    %356 = vmatprep.subr.mxu0 0.0
    %357 = vmatpush2.xpose.msra.mxu0 0.0
    %358 = vmatprep.subr.mxu0 0.0
    %359 = vmatpush2.xpose.msra.mxu0 0.0
    %360 = vmatprep.subr.mxu0 0.0
    %361 = vmatpush2.xpose.msra.mxu0 0.0
    %362 = vmatprep.subr.mxu0 0.0
    %363 = vmatpush2.xpose.msra.mxu0 0.0
    %364 = vmatprep.subr.mxu0 0.0
    %365 = vmatpush2.xpose.msra.mxu0 0.0
    %366 = vmatprep.subr.mxu0 0.0
    %367 = vmatpush2.xpose.msra.mxu0 0.0
    %368 = vmatprep.subr.mxu0 0.0
    %369 = vmatpush2.xpose.msra.mxu0 0.0
    %370 = vmatprep.subr.mxu0 0.0
    %371 = vmatpush2.xpose.msra.mxu0 0.0
    %372 = vmatprep.subr.mxu0 0.0
    %373 = vmatpush2.xpose.msra.mxu0 0.0
    %374 = vmatprep.subr.mxu0 0.0
    %375 = vmatpush2.xpose.msra.mxu0 0.0
    %376 = vmatprep.subr.mxu0 0.0
    %377 = vmatpush2.xpose.msra.mxu0 0.0
    %378 = vmatprep.subr.mxu0 0.0
    %379 = vmatpush2.xpose.msra.mxu0 0.0
    %380 = vmatprep.mubr.f32.mxu0 0.0
    %381 = vmatmul.mubr.f32.gmra.mxu0 %v308
    %v382 = vpop.f32.mrf.mxu0
    %v383 = vadd.f32 0.0, %v382
    %v384 = vpop.f32.mrf.mxu0
    %385 = vmatprep.mubr.f32.mxu0 0.0
    %386 = vmatmul.mubr.f32.gmra.mxu0 %v310
    %v387 = vpop.f32.mrf.mxu0
    %v388 = vadd.f32 0.0, %v387
    %v389 = vpop.f32.mrf.mxu0
    %390 = vdwg.mxu0
    %v391 = vmul.f32 %v383, 0.35355338
    %v392 = vmul.f32 %v388, 0.35355338
    %v393 = vsel %vm150, %v391, -1e+30
    %v394 = vsel %vm151, %v392, -1e+30
    %vm395 = vcmask 130048
    %v396 = vsel %vm395, %v393, -inf
    %397 = vmax.xlane.f32.xlu0 %v396
    %v398 = vpop.xlane.xlu0 %397
    %v399 = vsel %vm395, %v394, -inf
    %400 = vmax.xlane.f32.xlu0 %v399
    %v401 = vpop.xlane.xlu0 %400
    %v402 = vsub.f32 %v393, %v398
    %v403 = vsub.f32 %v394, %v401
    %v404 = vmul.f32 %v402, 1.442695
    %v405 = vpow.pop %v404
    %v406 = vmul.f32 %v403, 1.442695
    %v407 = vpow.pop %v406
    %v408 = vsel %vm395, %v405, 0.0
    %409 = vadd.xlane.f32.xlu0 %v408
    %v410 = vpop.xlane.xlu0 %409
    %v411 = vsel %vm395, %v407, 0.0
    %412 = vadd.xlane.f32.xlu0 %v411
    %v413 = vpop.xlane.xlu0 %412
    %v414 = vrcp.pop %v410
    %v415 = vrcp.pop %v413
    %v416 = vmul.f32 %v405, %v414
    %v417 = vmul.f32 %v407, %v415
    %418 = vrot.lane.b32.xlu0 %v293, 64
    %v419 = vpop.permute.xlu0 %418
    %420 = vrot.lane.b32.xlu0 %v298, 64
    %v421 = vpop.permute.xlu0 %420
    %v425 = vsel %vm395, %v416, 0
    %v428 = vsel %vm395, %v417, 0
    %430 = vmatprep.subr.mxu0 0.0
    %431 = vmatpush1.msra.mxu0 0.0
    %432 = vmatprep.subr.mxu0 0.0
    %433 = vmatpush1.msra.mxu0 0.0
    %434 = vmatprep.subr.mxu0 0.0
    %435 = vmatpush1.msra.mxu0 0.0
    %436 = vmatprep.subr.mxu0 0.0
    %437 = vmatpush1.msra.mxu0 0.0
    %438 = vmatprep.subr.mxu0 0.0
    %439 = vmatpush1.msra.mxu0 0.0
    %440 = vmatprep.subr.mxu0 0.0
    %441 = vmatpush1.msra.mxu0 0.0
    %442 = vmatprep.subr.mxu0 0.0
    %443 = vmatpush1.msra.mxu0 0.0
    %444 = vmatprep.subr.mxu0 0.0
    %445 = vmatpush1.msra.mxu0 0.0
    %446 = vmatprep.subr.mxu0 0.0
    %447 = vmatpush1.msra.mxu0 0.0
    %448 = vmatprep.subr.mxu0 0.0
    %449 = vmatpush1.msra.mxu0 0.0
    %450 = vmatprep.subr.mxu0 0.0
    %451 = vmatpush1.msra.mxu0 0.0
    %452 = vmatprep.subr.mxu0 0.0
    %453 = vmatpush1.msra.mxu0 0.0
    %454 = vmatprep.subr.mxu0 0.0
    %455 = vmatpush1.msra.mxu0 0.0
    %456 = vmatprep.subr.mxu0 0.0
    %457 = vmatpush1.msra.mxu0 0.0
    %458 = vmatprep.subr.mxu0 0.0
    %459 = vmatpush1.msra.mxu0 %v421
    %460 = vmatprep.subr.mxu0 0.0
    %461 = vmatpush1.msra.mxu0 %v419
    %462 = vmatprep.subr.mxu0 0.0
    %463 = vmatpush2.msra.mxu0 0.0
    %464 = vmatprep.subr.mxu0 0.0
    %465 = vmatpush2.msra.mxu0 0.0
    %466 = vmatprep.subr.mxu0 0.0
    %467 = vmatpush2.msra.mxu0 0.0
    %468 = vmatprep.subr.mxu0 0.0
    %469 = vmatpush2.msra.mxu0 0.0
    %470 = vmatprep.subr.mxu0 0.0
    %471 = vmatpush2.msra.mxu0 0.0
    %472 = vmatprep.subr.mxu0 0.0
    %473 = vmatpush2.msra.mxu0 0.0
    %474 = vmatprep.subr.mxu0 0.0
    %475 = vmatpush2.msra.mxu0 0.0
    %476 = vmatprep.subr.mxu0 0.0
    %477 = vmatpush2.msra.mxu0 0.0
    %478 = vmatprep.subr.mxu0 0.0
    %479 = vmatpush2.msra.mxu0 0.0
    %480 = vmatprep.subr.mxu0 0.0
    %481 = vmatpush2.msra.mxu0 0.0
    %482 = vmatprep.subr.mxu0 0.0
    %483 = vmatpush2.msra.mxu0 0.0
    %484 = vmatprep.subr.mxu0 0.0
    %485 = vmatpush2.msra.mxu0 0.0
    %486 = vmatprep.subr.mxu0 0.0
    %487 = vmatpush2.msra.mxu0 0.0
    %488 = vmatprep.subr.mxu0 0.0
    %489 = vmatpush2.msra.mxu0 0.0
    %490 = vmatprep.subr.mxu0 0.0
    %491 = vmatpush2.msra.mxu0 0.0
    %492 = vmatprep.subr.mxu0 0.0
    %493 = vmatpush2.msra.mxu0 0.0
    %494 = vmatprep.mubr.f32.mxu0 0.0
    %495 = vmatmul.mubr.f32.gmra.mxu0 %v425
    %v496 = vpop.f32.mrf.mxu0
    %v497 = vadd.f32 0.0, %v496
    %v498 = vpop.f32.mrf.mxu0
    %499 = vmatprep.mubr.f32.mxu0 0.0
    %500 = vmatmul.mubr.f32.gmra.mxu0 %v428
    %v501 = vpop.f32.mrf.mxu0
    %v502 = vadd.f32 0.0, %v501
    %v503 = vpop.f32.mrf.mxu0
    %504 = vdwg.mxu0
    %505 = vrot.lane.b32.xlu0 %v293, 120
    %v506 = vpop.permute.xlu0 %505
    %507 = vrot.lane.b32.xlu0 %v298, 120
    %v508 = vpop.permute.xlu0 %507
    %509 = vrot.lane.b32.xlu0 %v293, 88
    %v510 = vpop.permute.xlu0 %509
    %511 = vrot.lane.b32.xlu0 %v298, 88
    %v512 = vpop.permute.xlu0 %511
    %v513 = vsel %vm307, %v506, 0
    %v515 = vsel %vm307, %v508, 0
    %v517 = vsel %vm307, %v510, 0
    %v519 = vsel %vm307, %v512, 0
    %521 = vmatprep.subr.mxu0 0.0
    %522 = vmatpush1.xpose.msra.mxu0 0.0
    %523 = vmatprep.subr.mxu0 0.0
    %524 = vmatpush1.xpose.msra.mxu0 0.0
    %525 = vmatprep.subr.mxu0 0.0
    %526 = vmatpush1.xpose.msra.mxu0 0.0
    %527 = vmatprep.subr.mxu0 0.0
    %528 = vmatpush1.xpose.msra.mxu0 0.0
    %529 = vmatprep.subr.mxu0 0.0
    %530 = vmatpush1.xpose.msra.mxu0 0.0
    %531 = vmatprep.subr.mxu0 0.0
    %532 = vmatpush1.xpose.msra.mxu0 0.0
    %533 = vmatprep.subr.mxu0 0.0
    %534 = vmatpush1.xpose.msra.mxu0 0.0
    %535 = vmatprep.subr.mxu0 0.0
    %536 = vmatpush1.xpose.msra.mxu0 0.0
    %537 = vmatprep.subr.mxu0 0.0
    %538 = vmatpush1.xpose.msra.mxu0 0.0
    %539 = vmatprep.subr.mxu0 0.0
    %540 = vmatpush1.xpose.msra.mxu0 0.0
    %541 = vmatprep.subr.mxu0 0.0
    %542 = vmatpush1.xpose.msra.mxu0 0.0
    %543 = vmatprep.subr.mxu0 0.0
    %544 = vmatpush1.xpose.msra.mxu0 0.0
    %545 = vmatprep.subr.mxu0 0.0
    %546 = vmatpush1.xpose.msra.mxu0 0.0
    %547 = vmatprep.subr.mxu0 0.0
    %548 = vmatpush1.xpose.msra.mxu0 0.0
    %549 = vmatprep.subr.mxu0 0.0
    %550 = vmatpush1.xpose.msra.mxu0 %v519
    %551 = vmatprep.subr.mxu0 0.0
    %552 = vmatpush1.xpose.msra.mxu0 %v517
    %553 = vmatprep.subr.mxu0 0.0
    %554 = vmatpush2.xpose.msra.mxu0 0.0
    %555 = vmatprep.subr.mxu0 0.0
    %556 = vmatpush2.xpose.msra.mxu0 0.0
    %557 = vmatprep.subr.mxu0 0.0
    %558 = vmatpush2.xpose.msra.mxu0 0.0
    %559 = vmatprep.subr.mxu0 0.0
    %560 = vmatpush2.xpose.msra.mxu0 0.0
    %561 = vmatprep.subr.mxu0 0.0
    %562 = vmatpush2.xpose.msra.mxu0 0.0
    %563 = vmatprep.subr.mxu0 0.0
    %564 = vmatpush2.xpose.msra.mxu0 0.0
    %565 = vmatprep.subr.mxu0 0.0
    %566 = vmatpush2.xpose.msra.mxu0 0.0
    %567 = vmatprep.subr.mxu0 0.0
    %568 = vmatpush2.xpose.msra.mxu0 0.0
    %569 = vmatprep.subr.mxu0 0.0
    %570 = vmatpush2.xpose.msra.mxu0 0.0
    %571 = vmatprep.subr.mxu0 0.0
    %572 = vmatpush2.xpose.msra.mxu0 0.0
    %573 = vmatprep.subr.mxu0 0.0
    %574 = vmatpush2.xpose.msra.mxu0 0.0
    %575 = vmatprep.subr.mxu0 0.0
    %576 = vmatpush2.xpose.msra.mxu0 0.0
    %577 = vmatprep.subr.mxu0 0.0
    %578 = vmatpush2.xpose.msra.mxu0 0.0
    %579 = vmatprep.subr.mxu0 0.0
    %580 = vmatpush2.xpose.msra.mxu0 0.0
    %581 = vmatprep.subr.mxu0 0.0
    %582 = vmatpush2.xpose.msra.mxu0 0.0
    %583 = vmatprep.subr.mxu0 0.0
    %584 = vmatpush2.xpose.msra.mxu0 0.0
    %585 = vmatprep.mubr.f32.mxu0 0.0
    %586 = vmatmul.mubr.f32.gmra.mxu0 %v513
    %v587 = vpop.f32.mrf.mxu0
    %v588 = vadd.f32 0.0, %v587
    %v589 = vpop.f32.mrf.mxu0
    %590 = vmatprep.mubr.f32.mxu0 0.0
    %591 = vmatmul.mubr.f32.gmra.mxu0 %v515
    %v592 = vpop.f32.mrf.mxu0
    %v593 = vadd.f32 0.0, %v592
    %v594 = vpop.f32.mrf.mxu0
    %595 = vdwg.mxu0
    %v596 = vmul.f32 %v588, 0.35355338
    %v597 = vmul.f32 %v593, 0.35355338
    %v598 = vsel %vm150, %v596, -1e+30
    %v599 = vsel %vm151, %v597, -1e+30
    %v600 = vsel %vm395, %v598, -inf
    %601 = vmax.xlane.f32.xlu0 %v600
    %v602 = vpop.xlane.xlu0 %601
    %v603 = vsel %vm395, %v599, -inf
    %604 = vmax.xlane.f32.xlu0 %v603
    %v605 = vpop.xlane.xlu0 %604
    %v606 = vsub.f32 %v598, %v602
    %v607 = vsub.f32 %v599, %v605
    %v608 = vmul.f32 %v606, 1.442695
    %v609 = vpow.pop %v608
    %v610 = vmul.f32 %v607, 1.442695
    %v611 = vpow.pop %v610
    %v612 = vsel %vm395, %v609, 0.0
    %613 = vadd.xlane.f32.xlu0 %v612
    %v614 = vpop.xlane.xlu0 %613
    %v615 = vsel %vm395, %v611, 0.0
    %616 = vadd.xlane.f32.xlu0 %v615
    %v617 = vpop.xlane.xlu0 %616
    %v618 = vrcp.pop %v614
    %v619 = vrcp.pop %v617
    %v620 = vmul.f32 %v609, %v618
    %v621 = vmul.f32 %v611, %v619
    %622 = vrot.lane.b32.xlu0 %v293, 56
    %v623 = vpop.permute.xlu0 %622
    %624 = vrot.lane.b32.xlu0 %v298, 56
    %v625 = vpop.permute.xlu0 %624
    %v629 = vsel %vm395, %v620, 0
    %v632 = vsel %vm395, %v621, 0
    %634 = vmatprep.subr.mxu0 0.0
    %635 = vmatpush1.msra.mxu0 0.0
    %636 = vmatprep.subr.mxu0 0.0
    %637 = vmatpush1.msra.mxu0 0.0
    %638 = vmatprep.subr.mxu0 0.0
    %639 = vmatpush1.msra.mxu0 0.0
    %640 = vmatprep.subr.mxu0 0.0
    %641 = vmatpush1.msra.mxu0 0.0
    %642 = vmatprep.subr.mxu0 0.0
    %643 = vmatpush1.msra.mxu0 0.0
    %644 = vmatprep.subr.mxu0 0.0
    %645 = vmatpush1.msra.mxu0 0.0
    %646 = vmatprep.subr.mxu0 0.0
    %647 = vmatpush1.msra.mxu0 0.0
    %648 = vmatprep.subr.mxu0 0.0
    %649 = vmatpush1.msra.mxu0 0.0
    %650 = vmatprep.subr.mxu0 0.0
    %651 = vmatpush1.msra.mxu0 0.0
    %652 = vmatprep.subr.mxu0 0.0
    %653 = vmatpush1.msra.mxu0 0.0
    %654 = vmatprep.subr.mxu0 0.0
    %655 = vmatpush1.msra.mxu0 0.0
    %656 = vmatprep.subr.mxu0 0.0
    %657 = vmatpush1.msra.mxu0 0.0
    %658 = vmatprep.subr.mxu0 0.0
    %659 = vmatpush1.msra.mxu0 0.0
    %660 = vmatprep.subr.mxu0 0.0
    %661 = vmatpush1.msra.mxu0 0.0
    %662 = vmatprep.subr.mxu0 0.0
    %663 = vmatpush1.msra.mxu0 %v625
    %664 = vmatprep.subr.mxu0 0.0
    %665 = vmatpush1.msra.mxu0 %v623
    %666 = vmatprep.subr.mxu0 0.0
    %667 = vmatpush2.msra.mxu0 0.0
    %668 = vmatprep.subr.mxu0 0.0
    %669 = vmatpush2.msra.mxu0 0.0
    %670 = vmatprep.subr.mxu0 0.0
    %671 = vmatpush2.msra.mxu0 0.0
    %672 = vmatprep.subr.mxu0 0.0
    %673 = vmatpush2.msra.mxu0 0.0
    %674 = vmatprep.subr.mxu0 0.0
    %675 = vmatpush2.msra.mxu0 0.0
    %676 = vmatprep.subr.mxu0 0.0
    %677 = vmatpush2.msra.mxu0 0.0
    %678 = vmatprep.subr.mxu0 0.0
    %679 = vmatpush2.msra.mxu0 0.0
    %680 = vmatprep.subr.mxu0 0.0
    %681 = vmatpush2.msra.mxu0 0.0
    %682 = vmatprep.subr.mxu0 0.0
    %683 = vmatpush2.msra.mxu0 0.0
    %684 = vmatprep.subr.mxu0 0.0
    %685 = vmatpush2.msra.mxu0 0.0
    %686 = vmatprep.subr.mxu0 0.0
    %687 = vmatpush2.msra.mxu0 0.0
    %688 = vmatprep.subr.mxu0 0.0
    %689 = vmatpush2.msra.mxu0 0.0
    %690 = vmatprep.subr.mxu0 0.0
    %691 = vmatpush2.msra.mxu0 0.0
    %692 = vmatprep.subr.mxu0 0.0
    %693 = vmatpush2.msra.mxu0 0.0
    %694 = vmatprep.subr.mxu0 0.0
    %695 = vmatpush2.msra.mxu0 0.0
    %696 = vmatprep.subr.mxu0 0.0
    %697 = vmatpush2.msra.mxu0 0.0
    %698 = vmatprep.mubr.f32.mxu0 0.0
    %699 = vmatmul.mubr.f32.gmra.mxu0 %v629
    %v700 = vpop.f32.mrf.mxu0
    %v701 = vadd.f32 0.0, %v700
    %v702 = vpop.f32.mrf.mxu0
    %703 = vmatprep.mubr.f32.mxu0 0.0
    %704 = vmatmul.mubr.f32.gmra.mxu0 %v632
    %v705 = vpop.f32.mrf.mxu0
    %v706 = vadd.f32 0.0, %v705
    %v707 = vpop.f32.mrf.mxu0
    %708 = vdwg.mxu0
    %709 = vrot.lane.b32.xlu0 %v293, 112
    %v710 = vpop.permute.xlu0 %709
    %711 = vrot.lane.b32.xlu0 %v298, 112
    %v712 = vpop.permute.xlu0 %711
    %713 = vrot.lane.b32.xlu0 %v293, 80
    %v714 = vpop.permute.xlu0 %713
    %715 = vrot.lane.b32.xlu0 %v298, 80
    %v716 = vpop.permute.xlu0 %715
    %v717 = vsel %vm307, %v710, 0
    %v719 = vsel %vm307, %v712, 0
    %v721 = vsel %vm307, %v714, 0
    %v723 = vsel %vm307, %v716, 0
    %725 = vmatprep.subr.mxu0 0.0
    %726 = vmatpush1.xpose.msra.mxu0 0.0
    %727 = vmatprep.subr.mxu0 0.0
    %728 = vmatpush1.xpose.msra.mxu0 0.0
    %729 = vmatprep.subr.mxu0 0.0
    %730 = vmatpush1.xpose.msra.mxu0 0.0
    %731 = vmatprep.subr.mxu0 0.0
    %732 = vmatpush1.xpose.msra.mxu0 0.0
    %733 = vmatprep.subr.mxu0 0.0
    %734 = vmatpush1.xpose.msra.mxu0 0.0
    %735 = vmatprep.subr.mxu0 0.0
    %736 = vmatpush1.xpose.msra.mxu0 0.0
    %737 = vmatprep.subr.mxu0 0.0
    %738 = vmatpush1.xpose.msra.mxu0 0.0
    %739 = vmatprep.subr.mxu0 0.0
    %740 = vmatpush1.xpose.msra.mxu0 0.0
    %741 = vmatprep.subr.mxu0 0.0
    %742 = vmatpush1.xpose.msra.mxu0 0.0
    %743 = vmatprep.subr.mxu0 0.0
    %744 = vmatpush1.xpose.msra.mxu0 0.0
    %745 = vmatprep.subr.mxu0 0.0
    %746 = vmatpush1.xpose.msra.mxu0 0.0
    %747 = vmatprep.subr.mxu0 0.0
    %748 = vmatpush1.xpose.msra.mxu0 0.0
    %749 = vmatprep.subr.mxu0 0.0
    %750 = vmatpush1.xpose.msra.mxu0 0.0
    %751 = vmatprep.subr.mxu0 0.0
    %752 = vmatpush1.xpose.msra.mxu0 0.0
    %753 = vmatprep.subr.mxu0 0.0
    %754 = vmatpush1.xpose.msra.mxu0 %v723
    %755 = vmatprep.subr.mxu0 0.0
    %756 = vmatpush1.xpose.msra.mxu0 %v721
    %757 = vmatprep.subr.mxu0 0.0
    %758 = vmatpush2.xpose.msra.mxu0 0.0
    %759 = vmatprep.subr.mxu0 0.0
    %760 = vmatpush2.xpose.msra.mxu0 0.0
    %761 = vmatprep.subr.mxu0 0.0
    %762 = vmatpush2.xpose.msra.mxu0 0.0
    %763 = vmatprep.subr.mxu0 0.0
    %764 = vmatpush2.xpose.msra.mxu0 0.0
    %765 = vmatprep.subr.mxu0 0.0
    %766 = vmatpush2.xpose.msra.mxu0 0.0
    %767 = vmatprep.subr.mxu0 0.0
    %768 = vmatpush2.xpose.msra.mxu0 0.0
    %769 = vmatprep.subr.mxu0 0.0
    %770 = vmatpush2.xpose.msra.mxu0 0.0
    %771 = vmatprep.subr.mxu0 0.0
    %772 = vmatpush2.xpose.msra.mxu0 0.0
    %773 = vmatprep.subr.mxu0 0.0
    %774 = vmatpush2.xpose.msra.mxu0 0.0
    %775 = vmatprep.subr.mxu0 0.0
    %776 = vmatpush2.xpose.msra.mxu0 0.0
    %777 = vmatprep.subr.mxu0 0.0
    %778 = vmatpush2.xpose.msra.mxu0 0.0
    %779 = vmatprep.subr.mxu0 0.0
    %780 = vmatpush2.xpose.msra.mxu0 0.0
    %781 = vmatprep.subr.mxu0 0.0
    %782 = vmatpush2.xpose.msra.mxu0 0.0
    %783 = vmatprep.subr.mxu0 0.0
    %784 = vmatpush2.xpose.msra.mxu0 0.0
    %785 = vmatprep.subr.mxu0 0.0
    %786 = vmatpush2.xpose.msra.mxu0 0.0
    %787 = vmatprep.subr.mxu0 0.0
    %788 = vmatpush2.xpose.msra.mxu0 0.0
    %789 = vmatprep.mubr.f32.mxu0 0.0
    %790 = vmatmul.mubr.f32.gmra.mxu0 %v717
    %v791 = vpop.f32.mrf.mxu0
    %v792 = vadd.f32 0.0, %v791
    %v793 = vpop.f32.mrf.mxu0
    %794 = vmatprep.mubr.f32.mxu0 0.0
    %795 = vmatmul.mubr.f32.gmra.mxu0 %v719
    %v796 = vpop.f32.mrf.mxu0
    %v797 = vadd.f32 0.0, %v796
    %v798 = vpop.f32.mrf.mxu0
    %799 = vdwg.mxu0
    %v800 = vmul.f32 %v792, 0.35355338
    %v801 = vmul.f32 %v797, 0.35355338
    %v802 = vsel %vm150, %v800, -1e+30
    %v803 = vsel %vm151, %v801, -1e+30
    %v804 = vsel %vm395, %v802, -inf
    %805 = vmax.xlane.f32.xlu0 %v804
    %v806 = vpop.xlane.xlu0 %805
    %v807 = vsel %vm395, %v803, -inf
    %808 = vmax.xlane.f32.xlu0 %v807
    %v809 = vpop.xlane.xlu0 %808
    %v810 = vsub.f32 %v802, %v806
    %v811 = vsub.f32 %v803, %v809
    %v812 = vmul.f32 %v810, 1.442695
    %v813 = vpow.pop %v812
    %v814 = vmul.f32 %v811, 1.442695
    %v815 = vpow.pop %v814
    %v816 = vsel %vm395, %v813, 0.0
    %817 = vadd.xlane.f32.xlu0 %v816
    %v818 = vpop.xlane.xlu0 %817
    %v819 = vsel %vm395, %v815, 0.0
    %820 = vadd.xlane.f32.xlu0 %v819
    %v821 = vpop.xlane.xlu0 %820
    %v822 = vrcp.pop %v818
    %v823 = vrcp.pop %v821
    %v824 = vmul.f32 %v813, %v822
    %v825 = vmul.f32 %v815, %v823
    %826 = vrot.lane.b32.xlu0 %v293, 48
    %v827 = vpop.permute.xlu0 %826
    %828 = vrot.lane.b32.xlu0 %v298, 48
    %v829 = vpop.permute.xlu0 %828
    %v833 = vsel %vm395, %v824, 0
    %v836 = vsel %vm395, %v825, 0
    %838 = vmatprep.subr.mxu0 0.0
    %839 = vmatpush1.msra.mxu0 0.0
    %840 = vmatprep.subr.mxu0 0.0
    %841 = vmatpush1.msra.mxu0 0.0
    %842 = vmatprep.subr.mxu0 0.0
    %843 = vmatpush1.msra.mxu0 0.0
    %844 = vmatprep.subr.mxu0 0.0
    %845 = vmatpush1.msra.mxu0 0.0
    %846 = vmatprep.subr.mxu0 0.0
    %847 = vmatpush1.msra.mxu0 0.0
    %848 = vmatprep.subr.mxu0 0.0
    %849 = vmatpush1.msra.mxu0 0.0
    %850 = vmatprep.subr.mxu0 0.0
    %851 = vmatpush1.msra.mxu0 0.0
    %852 = vmatprep.subr.mxu0 0.0
    %853 = vmatpush1.msra.mxu0 0.0
    %854 = vmatprep.subr.mxu0 0.0
    %855 = vmatpush1.msra.mxu0 0.0
    %856 = vmatprep.subr.mxu0 0.0
    %857 = vmatpush1.msra.mxu0 0.0
    %858 = vmatprep.subr.mxu0 0.0
    %859 = vmatpush1.msra.mxu0 0.0
    %860 = vmatprep.subr.mxu0 0.0
    %861 = vmatpush1.msra.mxu0 0.0
    %862 = vmatprep.subr.mxu0 0.0
    %863 = vmatpush1.msra.mxu0 0.0
    %864 = vmatprep.subr.mxu0 0.0
    %865 = vmatpush1.msra.mxu0 0.0
    %866 = vmatprep.subr.mxu0 0.0
    %867 = vmatpush1.msra.mxu0 %v829
    %868 = vmatprep.subr.mxu0 0.0
    %869 = vmatpush1.msra.mxu0 %v827
    %870 = vmatprep.subr.mxu0 0.0
    %871 = vmatpush2.msra.mxu0 0.0
    %872 = vmatprep.subr.mxu0 0.0
    %873 = vmatpush2.msra.mxu0 0.0
    %874 = vmatprep.subr.mxu0 0.0
    %875 = vmatpush2.msra.mxu0 0.0
    %876 = vmatprep.subr.mxu0 0.0
    %877 = vmatpush2.msra.mxu0 0.0
    %878 = vmatprep.subr.mxu0 0.0
    %879 = vmatpush2.msra.mxu0 0.0
    %880 = vmatprep.subr.mxu0 0.0
    %881 = vmatpush2.msra.mxu0 0.0
    %882 = vmatprep.subr.mxu0 0.0
    %883 = vmatpush2.msra.mxu0 0.0
    %884 = vmatprep.subr.mxu0 0.0
    %885 = vmatpush2.msra.mxu0 0.0
    %886 = vmatprep.subr.mxu0 0.0
    %887 = vmatpush2.msra.mxu0 0.0
    %888 = vmatprep.subr.mxu0 0.0
    %889 = vmatpush2.msra.mxu0 0.0
    %890 = vmatprep.subr.mxu0 0.0
    %891 = vmatpush2.msra.mxu0 0.0
    %892 = vmatprep.subr.mxu0 0.0
    %893 = vmatpush2.msra.mxu0 0.0
    %894 = vmatprep.subr.mxu0 0.0
    %895 = vmatpush2.msra.mxu0 0.0
    %896 = vmatprep.subr.mxu0 0.0
    %897 = vmatpush2.msra.mxu0 0.0
    %898 = vmatprep.subr.mxu0 0.0
    %899 = vmatpush2.msra.mxu0 0.0
    %900 = vmatprep.subr.mxu0 0.0
    %901 = vmatpush2.msra.mxu0 0.0
    %902 = vmatprep.mubr.f32.mxu0 0.0
    %903 = vmatmul.mubr.f32.gmra.mxu0 %v833
    %v904 = vpop.f32.mrf.mxu0
    %v905 = vadd.f32 0.0, %v904
    %v906 = vpop.f32.mrf.mxu0
    %907 = vmatprep.mubr.f32.mxu0 0.0
    %908 = vmatmul.mubr.f32.gmra.mxu0 %v836
    %v909 = vpop.f32.mrf.mxu0
    %v910 = vadd.f32 0.0, %v909
    %v911 = vpop.f32.mrf.mxu0
    %912 = vdwg.mxu0
    %913 = vrot.lane.b32.xlu0 %v293, 104
    %v914 = vpop.permute.xlu0 %913
    %915 = vrot.lane.b32.xlu0 %v298, 104
    %v916 = vpop.permute.xlu0 %915
    %917 = vrot.lane.b32.xlu0 %v293, 72
    %v918 = vpop.permute.xlu0 %917
    %919 = vrot.lane.b32.xlu0 %v298, 72
    %v920 = vpop.permute.xlu0 %919
    %v921 = vsel %vm307, %v914, 0
    %v923 = vsel %vm307, %v916, 0
    %v925 = vsel %vm307, %v918, 0
    %v927 = vsel %vm307, %v920, 0
    %929 = vmatprep.subr.mxu0 0.0
    %930 = vmatpush1.xpose.msra.mxu0 0.0
    %931 = vmatprep.subr.mxu0 0.0
    %932 = vmatpush1.xpose.msra.mxu0 0.0
    %933 = vmatprep.subr.mxu0 0.0
    %934 = vmatpush1.xpose.msra.mxu0 0.0
    %935 = vmatprep.subr.mxu0 0.0
    %936 = vmatpush1.xpose.msra.mxu0 0.0
    %937 = vmatprep.subr.mxu0 0.0
    %938 = vmatpush1.xpose.msra.mxu0 0.0
    %939 = vmatprep.subr.mxu0 0.0
    %940 = vmatpush1.xpose.msra.mxu0 0.0
    %941 = vmatprep.subr.mxu0 0.0
    %942 = vmatpush1.xpose.msra.mxu0 0.0
    %943 = vmatprep.subr.mxu0 0.0
    %944 = vmatpush1.xpose.msra.mxu0 0.0
    %945 = vmatprep.subr.mxu0 0.0
    %946 = vmatpush1.xpose.msra.mxu0 0.0
    %947 = vmatprep.subr.mxu0 0.0
    %948 = vmatpush1.xpose.msra.mxu0 0.0
    %949 = vmatprep.subr.mxu0 0.0
    %950 = vmatpush1.xpose.msra.mxu0 0.0
    %951 = vmatprep.subr.mxu0 0.0
    %952 = vmatpush1.xpose.msra.mxu0 0.0
    %953 = vmatprep.subr.mxu0 0.0
    %954 = vmatpush1.xpose.msra.mxu0 0.0
    %955 = vmatprep.subr.mxu0 0.0
    %956 = vmatpush1.xpose.msra.mxu0 0.0
    %957 = vmatprep.subr.mxu0 0.0
    %958 = vmatpush1.xpose.msra.mxu0 %v927
    %959 = vmatprep.subr.mxu0 0.0
    %960 = vmatpush1.xpose.msra.mxu0 %v925
    %961 = vmatprep.subr.mxu0 0.0
    %962 = vmatpush2.xpose.msra.mxu0 0.0
    %963 = vmatprep.subr.mxu0 0.0
    %964 = vmatpush2.xpose.msra.mxu0 0.0
    %965 = vmatprep.subr.mxu0 0.0
    %966 = vmatpush2.xpose.msra.mxu0 0.0
    %967 = vmatprep.subr.mxu0 0.0
    %968 = vmatpush2.xpose.msra.mxu0 0.0
    %969 = vmatprep.subr.mxu0 0.0
    %970 = vmatpush2.xpose.msra.mxu0 0.0
    %971 = vmatprep.subr.mxu0 0.0
    %972 = vmatpush2.xpose.msra.mxu0 0.0
    %973 = vmatprep.subr.mxu0 0.0
    %974 = vmatpush2.xpose.msra.mxu0 0.0
    %975 = vmatprep.subr.mxu0 0.0
    %976 = vmatpush2.xpose.msra.mxu0 0.0
    %977 = vmatprep.subr.mxu0 0.0
    %978 = vmatpush2.xpose.msra.mxu0 0.0
    %979 = vmatprep.subr.mxu0 0.0
    %980 = vmatpush2.xpose.msra.mxu0 0.0
    %981 = vmatprep.subr.mxu0 0.0
    %982 = vmatpush2.xpose.msra.mxu0 0.0
    %983 = vmatprep.subr.mxu0 0.0
    %984 = vmatpush2.xpose.msra.mxu0 0.0
    %985 = vmatprep.subr.mxu0 0.0
    %986 = vmatpush2.xpose.msra.mxu0 0.0
    %987 = vmatprep.subr.mxu0 0.0
    %988 = vmatpush2.xpose.msra.mxu0 0.0
    %989 = vmatprep.subr.mxu0 0.0
    %990 = vmatpush2.xpose.msra.mxu0 0.0
    %991 = vmatprep.subr.mxu0 0.0
    %992 = vmatpush2.xpose.msra.mxu0 0.0
    %993 = vmatprep.mubr.f32.mxu0 0.0
    %994 = vmatmul.mubr.f32.gmra.mxu0 %v921
    %v995 = vpop.f32.mrf.mxu0
    %v996 = vadd.f32 0.0, %v995
    %v997 = vpop.f32.mrf.mxu0
    %998 = vmatprep.mubr.f32.mxu0 0.0
    %999 = vmatmul.mubr.f32.gmra.mxu0 %v923
    %v1000 = vpop.f32.mrf.mxu0
    %v1001 = vadd.f32 0.0, %v1000
    %v1002 = vpop.f32.mrf.mxu0
    %1003 = vdwg.mxu0
    %v1004 = vmul.f32 %v996, 0.35355338
    %v1005 = vmul.f32 %v1001, 0.35355338
    %v1006 = vsel %vm150, %v1004, -1e+30
    %v1007 = vsel %vm151, %v1005, -1e+30
    %v1008 = vsel %vm395, %v1006, -inf
    %1009 = vmax.xlane.f32.xlu0 %v1008
    %v1010 = vpop.xlane.xlu0 %1009
    %v1011 = vsel %vm395, %v1007, -inf
    %1012 = vmax.xlane.f32.xlu0 %v1011
    %v1013 = vpop.xlane.xlu0 %1012
    %v1014 = vsub.f32 %v1006, %v1010
    %v1015 = vsub.f32 %v1007, %v1013
    %v1016 = vmul.f32 %v1014, 1.442695
    %v1017 = vpow.pop %v1016
    %v1018 = vmul.f32 %v1015, 1.442695
    %v1019 = vpow.pop %v1018
    %v1020 = vsel %vm395, %v1017, 0.0
    %1021 = vadd.xlane.f32.xlu0 %v1020
    %v1022 = vpop.xlane.xlu0 %1021
    %v1023 = vsel %vm395, %v1019, 0.0
    %1024 = vadd.xlane.f32.xlu0 %v1023
    %v1025 = vpop.xlane.xlu0 %1024
    %v1026 = vrcp.pop %v1022
    %v1027 = vrcp.pop %v1025
    %v1028 = vmul.f32 %v1017, %v1026
    %v1029 = vmul.f32 %v1019, %v1027
    %1030 = vrot.lane.b32.xlu0 %v293, 40
    %v1031 = vpop.permute.xlu0 %1030
    %1032 = vrot.lane.b32.xlu0 %v298, 40
    %v1033 = vpop.permute.xlu0 %1032
    %v1037 = vsel %vm395, %v1028, 0
    %v1040 = vsel %vm395, %v1029, 0
    %1042 = vmatprep.subr.mxu0 0.0
    %1043 = vmatpush1.msra.mxu0 0.0
    %1044 = vmatprep.subr.mxu0 0.0
    %1045 = vmatpush1.msra.mxu0 0.0
    %1046 = vmatprep.subr.mxu0 0.0
    %1047 = vmatpush1.msra.mxu0 0.0
    %1048 = vmatprep.subr.mxu0 0.0
    %1049 = vmatpush1.msra.mxu0 0.0
    %1050 = vmatprep.subr.mxu0 0.0
    %1051 = vmatpush1.msra.mxu0 0.0
    %1052 = vmatprep.subr.mxu0 0.0
    %1053 = vmatpush1.msra.mxu0 0.0
    %1054 = vmatprep.subr.mxu0 0.0
    %1055 = vmatpush1.msra.mxu0 0.0
    %1056 = vmatprep.subr.mxu0 0.0
    %1057 = vmatpush1.msra.mxu0 0.0
    %1058 = vmatprep.subr.mxu0 0.0
    %1059 = vmatpush1.msra.mxu0 0.0
    %1060 = vmatprep.subr.mxu0 0.0
    %1061 = vmatpush1.msra.mxu0 0.0
    %1062 = vmatprep.subr.mxu0 0.0
    %1063 = vmatpush1.msra.mxu0 0.0
    %1064 = vmatprep.subr.mxu0 0.0
    %1065 = vmatpush1.msra.mxu0 0.0
    %1066 = vmatprep.subr.mxu0 0.0
    %1067 = vmatpush1.msra.mxu0 0.0
    %1068 = vmatprep.subr.mxu0 0.0
    %1069 = vmatpush1.msra.mxu0 0.0
    %1070 = vmatprep.subr.mxu0 0.0
    %1071 = vmatpush1.msra.mxu0 %v1033
    %1072 = vmatprep.subr.mxu0 0.0
    %1073 = vmatpush1.msra.mxu0 %v1031
    %1074 = vmatprep.subr.mxu0 0.0
    %1075 = vmatpush2.msra.mxu0 0.0
    %1076 = vmatprep.subr.mxu0 0.0
    %1077 = vmatpush2.msra.mxu0 0.0
    %1078 = vmatprep.subr.mxu0 0.0
    %1079 = vmatpush2.msra.mxu0 0.0
    %1080 = vmatprep.subr.mxu0 0.0
    %1081 = vmatpush2.msra.mxu0 0.0
    %1082 = vmatprep.subr.mxu0 0.0
    %1083 = vmatpush2.msra.mxu0 0.0
    %1084 = vmatprep.subr.mxu0 0.0
    %1085 = vmatpush2.msra.mxu0 0.0
    %1086 = vmatprep.subr.mxu0 0.0
    %1087 = vmatpush2.msra.mxu0 0.0
    %1088 = vmatprep.subr.mxu0 0.0
    %1089 = vmatpush2.msra.mxu0 0.0
    %1090 = vmatprep.subr.mxu0 0.0
    %1091 = vmatpush2.msra.mxu0 0.0
    %1092 = vmatprep.subr.mxu0 0.0
    %1093 = vmatpush2.msra.mxu0 0.0
    %1094 = vmatprep.subr.mxu0 0.0
    %1095 = vmatpush2.msra.mxu0 0.0
    %1096 = vmatprep.subr.mxu0 0.0
    %1097 = vmatpush2.msra.mxu0 0.0
    %1098 = vmatprep.subr.mxu0 0.0
    %1099 = vmatpush2.msra.mxu0 0.0
    %1100 = vmatprep.subr.mxu0 0.0
    %1101 = vmatpush2.msra.mxu0 0.0
    %1102 = vmatprep.subr.mxu0 0.0
    %1103 = vmatpush2.msra.mxu0 0.0
    %1104 = vmatprep.subr.mxu0 0.0
    %1105 = vmatpush2.msra.mxu0 0.0
    %1106 = vmatprep.mubr.f32.mxu0 0.0
    %1107 = vmatmul.mubr.f32.gmra.mxu0 %v1037
    %v1108 = vpop.f32.mrf.mxu0
    %v1109 = vadd.f32 0.0, %v1108
    %v1110 = vpop.f32.mrf.mxu0
    %1111 = vmatprep.mubr.f32.mxu0 0.0
    %1112 = vmatmul.mubr.f32.gmra.mxu0 %v1040
    %v1113 = vpop.f32.mrf.mxu0
    %v1114 = vadd.f32 0.0, %v1113
    %v1115 = vpop.f32.mrf.mxu0
    %1116 = vdwg.mxu0
    %1119 = vrot.lane.b32.xlu0 %v701, 8
    %v1120 = vpop.permute.xlu0 %1119
    %1121 = vrot.lane.b32.xlu0 %v706, 8
    %v1122 = vpop.permute.xlu0 %1121
    %1127 = vrot.lane.b32.xlu0 %v905, 16
    %v1128 = vpop.permute.xlu0 %1127
    %1129 = vrot.lane.b32.xlu0 %v910, 16
    %v1130 = vpop.permute.xlu0 %1129
    %1135 = vrot.lane.b32.xlu0 %v1109, 24
    %v1136 = vpop.permute.xlu0 %1135
    %1137 = vrot.lane.b32.xlu0 %v1114, 24
    %v1138 = vpop.permute.xlu0 %1137
    %v1141 = vsel %vm307, %v497, %v1120
    %v1142 = vsel %vm307, %v502, %v1122
    %v1143 = vsel %vm395, %v1141, %v1128
    %v1144 = vsel %vm395, %v1142, %v1130
    %vm1145 = vcmask 195584
    %v1146 = vsel %vm1145, %v1143, %v1136
    %v1147 = vsel %vm1145, %v1144, %v1138
    %1152 = vrot.lane.b32.xlu0 %v152, 32
    %v1153 = vpop.permute.xlu0 %1152
    %1154 = vrot.lane.b32.xlu0 %v153, 32
    %v1155 = vpop.permute.xlu0 %1154
    %1156 = vrot.lane.b32.xlu0 %v154, 32
    %v1157 = vpop.permute.xlu0 %1156
    %1158 = vrot.lane.b32.xlu0 %v155, 32
    %v1159 = vpop.permute.xlu0 %1158
    %v1165 = vsel %vm176, %v1146, 0
    %v1168 = vsel %vm176, %v1147, 0
    %1170 = vmatprep.subr.mxu0 0.0
    %1171 = vmatpush1.msra.mxu0 0.0
    %1172 = vmatprep.subr.mxu0 0.0
    %1173 = vmatpush1.msra.mxu0 0.0
    %1174 = vmatprep.subr.mxu0 0.0
    %1175 = vmatpush1.msra.mxu0 0.0
    %1176 = vmatprep.subr.mxu0 0.0
    %1177 = vmatpush1.msra.mxu0 0.0
    %1178 = vmatprep.subr.mxu0 0.0
    %1179 = vmatpush1.msra.mxu0 0.0
    %1180 = vmatprep.subr.mxu0 0.0
    %1181 = vmatpush1.msra.mxu0 0.0
    %1182 = vmatprep.subr.mxu0 0.0
    %1183 = vmatpush1.msra.mxu0 0.0
    %1184 = vmatprep.subr.mxu0 0.0
    %1185 = vmatpush1.msra.mxu0 0.0
    %1186 = vmatprep.subr.mxu0 0.0
    %1187 = vmatpush1.msra.mxu0 0.0
    %1188 = vmatprep.subr.mxu0 0.0
    %1189 = vmatpush1.msra.mxu0 0.0
    %1190 = vmatprep.subr.mxu0 0.0
    %1191 = vmatpush1.msra.mxu0 0.0
    %1192 = vmatprep.subr.mxu0 0.0
    %1193 = vmatpush1.msra.mxu0 0.0
    %1194 = vmatprep.subr.mxu0 0.0
    %1195 = vmatpush1.msra.mxu0 %v1159
    %1196 = vmatprep.subr.mxu0 0.0
    %1197 = vmatpush1.msra.mxu0 %v1157
    %1198 = vmatprep.subr.mxu0 0.0
    %1199 = vmatpush1.msra.mxu0 %v1155
    %1200 = vmatprep.subr.mxu0 0.0
    %1201 = vmatpush1.msra.mxu0 %v1153
    %1202 = vmatprep.subr.mxu0 0.0
    %1203 = vmatpush2.msra.mxu0 0.0
    %1204 = vmatprep.subr.mxu0 0.0
    %1205 = vmatpush2.msra.mxu0 0.0
    %1206 = vmatprep.subr.mxu0 0.0
    %1207 = vmatpush2.msra.mxu0 0.0
    %1208 = vmatprep.subr.mxu0 0.0
    %1209 = vmatpush2.msra.mxu0 0.0
    %1210 = vmatprep.subr.mxu0 0.0
    %1211 = vmatpush2.msra.mxu0 0.0
    %1212 = vmatprep.subr.mxu0 0.0
    %1213 = vmatpush2.msra.mxu0 0.0
    %1214 = vmatprep.subr.mxu0 0.0
    %1215 = vmatpush2.msra.mxu0 0.0
    %1216 = vmatprep.subr.mxu0 0.0
    %1217 = vmatpush2.msra.mxu0 0.0
    %1218 = vmatprep.subr.mxu0 0.0
    %1219 = vmatpush2.msra.mxu0 0.0
    %1220 = vmatprep.subr.mxu0 0.0
    %1221 = vmatpush2.msra.mxu0 0.0
    %1222 = vmatprep.subr.mxu0 0.0
    %1223 = vmatpush2.msra.mxu0 0.0
    %1224 = vmatprep.subr.mxu0 0.0
    %1225 = vmatpush2.msra.mxu0 0.0
    %1226 = vmatprep.subr.mxu0 0.0
    %1227 = vmatpush2.msra.mxu0 0.0
    %1228 = vmatprep.subr.mxu0 0.0
    %1229 = vmatpush2.msra.mxu0 0.0
    %1230 = vmatprep.subr.mxu0 0.0
    %1231 = vmatpush2.msra.mxu0 0.0
    %1232 = vmatprep.subr.mxu0 0.0
    %1233 = vmatpush2.msra.mxu0 0.0
    %1234 = vmatprep.mubr.f32.mxu0 0.0
    %1235 = vmatmul.mubr.f32.gmra.mxu0 %v1165
    %v1236 = vpop.f32.mrf.mxu0
    %v1237 = vadd.f32 0.0, %v1236
    %v1238 = vpop.f32.mrf.mxu0
    %1239 = vmatprep.mubr.f32.mxu0 0.0
    %1240 = vmatmul.mubr.f32.gmra.mxu0 %v1168
    %v1241 = vpop.f32.mrf.mxu0
    %v1242 = vadd.f32 0.0, %v1241
    %v1243 = vpop.f32.mrf.mxu0
    %1244 = vdwg.mxu0
    %v1245 = vadd.f32 %v131, %v1237
    %v1246 = vadd.f32 %v136, %v1242
    %v1247 = vlaneseq
    %v1248 = vshrl.u32 %v1247, 7
    %v1249 = vsub.s32 0, %v1248
    %v1250 = vrot.slane %v171, %v1249
    %v1251 = vadd.f32 %v1245, %v1250
    %v1252 = vadd.f32 %v1246, %v1250
    %v1253 = vsel %vm176, %v1251, 0.0
    %1254 = vadd.xlane.f32.xlu0 %v1253
    %v1255 = vpop.xlane.xlu0 %1254
    %v1256 = vsel %vm176, %v1252, 0.0
    %1257 = vadd.xlane.f32.xlu0 %v1256
    %v1258 = vpop.xlane.xlu0 %1257
    %v1259 = vmul.f32 %v1255, %v183
    %v1260 = vmul.f32 %v1258, %v183
    %v1261 = vsub.f32 %v1251, %v1259
    %v1262 = vsub.f32 %v1252, %v1260
    %v1263 = vmul.f32 %v1261, %v1261
    %v1264 = vmul.f32 %v1262, %v1262
    %v1265 = vsel %vm176, %v1263, 0.0
    %1266 = vadd.xlane.f32.xlu0 %v1265
    %v1267 = vpop.xlane.xlu0 %1266
    %v1268 = vsel %vm176, %v1264, 0.0
    %1269 = vadd.xlane.f32.xlu0 %v1268
    %v1270 = vpop.xlane.xlu0 %1269
    %v1271 = vmul.f32 %v1267, %v183
    %v1272 = vmul.f32 %v1270, %v183
    %v1273 = vadd.f32 %v1271, 1e-12
    %v1274 = vadd.f32 %v1272, 1e-12
    %v1275 = vrsqrt.pop %v1273
    %v1276 = vrsqrt.pop %v1274
    %v1277 = vmul.f32 %v1261, %v1275
    %v1278 = vmul.f32 %v1262, %v1276
    %v1279 = vlaneseq
    %v1280 = vshrl.u32 %v1279, 7
    %v1281 = vsub.s32 0, %v1280
    %v1282 = vrot.slane %v172, %v1281
    %v1283 = vmul.f32 %v1277, %v1282
    %v1284 = vmul.f32 %v1278, %v1282
    %v1285 = vlaneseq
    %v1286 = vshrl.u32 %v1285, 7
    %v1287 = vsub.s32 0, %v1286
    %v1288 = vrot.slane %v173, %v1287
    %v1289 = vadd.f32 %v1283, %v1288
    %v1290 = vadd.f32 %v1284, %v1288
    %v1291 = vlaneseq
    %v1292 = vshrl.u32 %v1291, 7
    %v1293 = vsub.s32 0, %v1292
    %v1294 = vrot.slane %v174, %v1293
    %v1296 = vsel %vm176, %v1289, 0
    %v1299 = vsel %vm176, %v1290, 0
    %1301 = vmatprep.subr.mxu0 0.0
    %1302 = vmatpush1.msra.mxu0 0.0
    %1303 = vmatprep.subr.mxu0 0.0
    %1304 = vmatpush1.msra.mxu0 0.0
    %1305 = vmatprep.subr.mxu0 0.0
    %1306 = vmatpush1.msra.mxu0 0.0
    %1307 = vmatprep.subr.mxu0 0.0
    %1308 = vmatpush1.msra.mxu0 0.0
    %1309 = vmatprep.subr.mxu0 0.0
    %1310 = vmatpush1.msra.mxu0 0.0
    %1311 = vmatprep.subr.mxu0 0.0
    %1312 = vmatpush1.msra.mxu0 0.0
    %1313 = vmatprep.subr.mxu0 0.0
    %1314 = vmatpush1.msra.mxu0 0.0
    %1315 = vmatprep.subr.mxu0 0.0
    %1316 = vmatpush1.msra.mxu0 0.0
    %1317 = vmatprep.subr.mxu0 0.0
    %1318 = vmatpush1.msra.mxu0 0.0
    %1319 = vmatprep.subr.mxu0 0.0
    %1320 = vmatpush1.msra.mxu0 0.0
    %1321 = vmatprep.subr.mxu0 0.0
    %1322 = vmatpush1.msra.mxu0 0.0
    %1323 = vmatprep.subr.mxu0 0.0
    %1324 = vmatpush1.msra.mxu0 0.0
    %1325 = vmatprep.subr.mxu0 0.0
    %1326 = vmatpush1.msra.mxu0 %v159
    %1327 = vmatprep.subr.mxu0 0.0
    %1328 = vmatpush1.msra.mxu0 %v158
    %1329 = vmatprep.subr.mxu0 0.0
    %1330 = vmatpush1.msra.mxu0 %v157
    %1331 = vmatprep.subr.mxu0 0.0
    %1332 = vmatpush1.msra.mxu0 %v156
    %1333 = vmatprep.subr.mxu0 0.0
    %1334 = vmatpush2.msra.mxu0 0.0
    %1335 = vmatprep.subr.mxu0 0.0
    %1336 = vmatpush2.msra.mxu0 0.0
    %1337 = vmatprep.subr.mxu0 0.0
    %1338 = vmatpush2.msra.mxu0 0.0
    %1339 = vmatprep.subr.mxu0 0.0
    %1340 = vmatpush2.msra.mxu0 0.0
    %1341 = vmatprep.subr.mxu0 0.0
    %1342 = vmatpush2.msra.mxu0 0.0
    %1343 = vmatprep.subr.mxu0 0.0
    %1344 = vmatpush2.msra.mxu0 0.0
    %1345 = vmatprep.subr.mxu0 0.0
    %1346 = vmatpush2.msra.mxu0 0.0
    %1347 = vmatprep.subr.mxu0 0.0
    %1348 = vmatpush2.msra.mxu0 0.0
    %1349 = vmatprep.subr.mxu0 0.0
    %1350 = vmatpush2.msra.mxu0 0.0
    %1351 = vmatprep.subr.mxu0 0.0
    %1352 = vmatpush2.msra.mxu0 0.0
    %1353 = vmatprep.subr.mxu0 0.0
    %1354 = vmatpush2.msra.mxu0 0.0
    %1355 = vmatprep.subr.mxu0 0.0
    %1356 = vmatpush2.msra.mxu0 0.0
    %1357 = vmatprep.subr.mxu0 0.0
    %1358 = vmatpush2.msra.mxu0 0.0
    %1359 = vmatprep.subr.mxu0 0.0
    %1360 = vmatpush2.msra.mxu0 0.0
    %1361 = vmatprep.subr.mxu0 0.0
    %1362 = vmatpush2.msra.mxu0 0.0
    %1363 = vmatprep.subr.mxu0 0.0
    %1364 = vmatpush2.msra.mxu0 0.0
    %1365 = vmatprep.mubr.f32.mxu0 0.0
    %1366 = vmatmul.mubr.f32.gmra.mxu0 %v1296
    %v1367 = vpop.f32.mrf.mxu0
    %v1368 = vadd.f32 %v1294, %v1367
    %v1369 = vpop.f32.mrf.mxu0
    %1370 = vmatprep.mubr.f32.mxu0 0.0
    %1371 = vmatmul.mubr.f32.gmra.mxu0 %v1299
    %v1372 = vpop.f32.mrf.mxu0
    %v1373 = vadd.f32 %v1294, %v1372
    %v1374 = vpop.f32.mrf.mxu0
    %1375 = vdwg.mxu0
    %v1376 = vmul.f32 %v1368, 0.5
    %v1377 = vmul.f32 %v1373, 0.5
    %v1378 = vmul.f32 %v1368, 0.70710677
    %v1379 = vmul.f32 %v1373, 0.70710677
    %v1380 = vand.u32 2147483647, %v1378
    %v1381 = vand.u32 2147483647, %v1379
    %v1382 = vmul.f32 %v1380, 0.3275911
    %v1383 = vmul.f32 %v1381, 0.3275911
    %v1384 = vadd.f32 %v1382, 1.0
    %v1385 = vadd.f32 %v1383, 1.0
    %v1386 = vrcp.pop %v1384
    %v1387 = vmul.f32 1.0, %v1386
    %v1388 = vrcp.pop %v1385
    %v1389 = vmul.f32 1.0, %v1388
    %v1390 = vmul.f32 %v1387, 1.0614054
    %v1391 = vmul.f32 %v1389, 1.0614054
    %v1392 = vadd.f32 %v1390, -1.4531521
    %v1393 = vadd.f32 %v1391, -1.4531521
    %v1394 = vmul.f32 %v1392, %v1387
    %v1395 = vmul.f32 %v1393, %v1389
    %v1396 = vadd.f32 %v1394, 1.4214138
    %v1397 = vadd.f32 %v1395, 1.4214138
    %v1398 = vmul.f32 %v1396, %v1387
    %v1399 = vmul.f32 %v1397, %v1389
    %v1400 = vadd.f32 %v1398, -0.28449672
    %v1401 = vadd.f32 %v1399, -0.28449672
    %v1402 = vmul.f32 %v1400, %v1387
    %v1403 = vmul.f32 %v1401, %v1389
    %v1404 = vadd.f32 %v1402, 0.2548296
    %v1405 = vadd.f32 %v1403, 0.2548296
    %v1406 = vmul.f32 %v1404, %v1387
    %v1407 = vmul.f32 %v1405, %v1389
    %v1408 = vsub.f32 0.0, %v1380
    %v1409 = vsub.f32 0.0, %v1381
    %v1410 = vmul.f32 %v1408, %v1380
    %v1411 = vmul.f32 %v1409, %v1381
    %v1412 = vmul.f32 %v1410, 1.442695
    %v1413 = vpow.pop %v1412
    %v1414 = vmul.f32 %v1411, 1.442695
    %v1415 = vpow.pop %v1414
    %v1416 = vmul.f32 %v1406, %v1413
    %v1417 = vmul.f32 %v1407, %v1415
    %v1418 = vsub.f32 1.0, %v1416
    %v1419 = vsub.f32 1.0, %v1417
    %vm1420 = vcmp.lt.f32.partialorder %v1378, 0.0
    %vm1421 = vcmp.lt.f32.partialorder %v1379, 0.0
    %v1422 = vsub.f32 0.0, %v1418
    %v1423 = vsub.f32 0.0, %v1419
    %v1424 = vsel %vm1420, %v1422, %v1418
    %v1425 = vsel %vm1421, %v1423, %v1419
    %v1426 = vadd.f32 %v1424, 1.0
    %v1427 = vadd.f32 %v1425, 1.0
    %v1428 = vmul.f32 %v1376, %v1426
    %v1429 = vmul.f32 %v1377, %v1427
    %v1431 = vsel %vm57, %v1428, 0
    %v1434 = vsel %vm57, %v1429, 0
    %1436 = vmatprep.subr.mxu0 0.0
    %1437 = vmatpush1.msra.mxu0 0.0
    %1438 = vmatprep.subr.mxu0 0.0
    %1439 = vmatpush1.msra.mxu0 0.0
    %1440 = vmatprep.subr.mxu0 0.0
    %1441 = vmatpush1.msra.mxu0 0.0
    %1442 = vmatprep.subr.mxu0 0.0
    %1443 = vmatpush1.msra.mxu0 0.0
    %1444 = vmatprep.subr.mxu0 0.0
    %1445 = vmatpush1.msra.mxu0 0.0
    %1446 = vmatprep.subr.mxu0 0.0
    %1447 = vmatpush1.msra.mxu0 0.0
    %1448 = vmatprep.subr.mxu0 0.0
    %1449 = vmatpush1.msra.mxu0 0.0
    %1450 = vmatprep.subr.mxu0 0.0
    %1451 = vmatpush1.msra.mxu0 0.0
    %1452 = vmatprep.subr.mxu0 0.0
    %1453 = vmatpush1.msra.mxu0 %v167
    %1454 = vmatprep.subr.mxu0 0.0
    %1455 = vmatpush1.msra.mxu0 %v166
    %1456 = vmatprep.subr.mxu0 0.0
    %1457 = vmatpush1.msra.mxu0 %v165
    %1458 = vmatprep.subr.mxu0 0.0
    %1459 = vmatpush1.msra.mxu0 %v164
    %1460 = vmatprep.subr.mxu0 0.0
    %1461 = vmatpush1.msra.mxu0 %v163
    %1462 = vmatprep.subr.mxu0 0.0
    %1463 = vmatpush1.msra.mxu0 %v162
    %1464 = vmatprep.subr.mxu0 0.0
    %1465 = vmatpush1.msra.mxu0 %v161
    %1466 = vmatprep.subr.mxu0 0.0
    %1467 = vmatpush1.msra.mxu0 %v160
    %1468 = vmatprep.subr.mxu0 0.0
    %1469 = vmatpush2.msra.mxu0 0.0
    %1470 = vmatprep.subr.mxu0 0.0
    %1471 = vmatpush2.msra.mxu0 0.0
    %1472 = vmatprep.subr.mxu0 0.0
    %1473 = vmatpush2.msra.mxu0 0.0
    %1474 = vmatprep.subr.mxu0 0.0
    %1475 = vmatpush2.msra.mxu0 0.0
    %1476 = vmatprep.subr.mxu0 0.0
    %1477 = vmatpush2.msra.mxu0 0.0
    %1478 = vmatprep.subr.mxu0 0.0
    %1479 = vmatpush2.msra.mxu0 0.0
    %1480 = vmatprep.subr.mxu0 0.0
    %1481 = vmatpush2.msra.mxu0 0.0
    %1482 = vmatprep.subr.mxu0 0.0
    %1483 = vmatpush2.msra.mxu0 0.0
    %1484 = vmatprep.subr.mxu0 0.0
    %1485 = vmatpush2.msra.mxu0 0.0
    %1486 = vmatprep.subr.mxu0 0.0
    %1487 = vmatpush2.msra.mxu0 0.0
    %1488 = vmatprep.subr.mxu0 0.0
    %1489 = vmatpush2.msra.mxu0 0.0
    %1490 = vmatprep.subr.mxu0 0.0
    %1491 = vmatpush2.msra.mxu0 0.0
    %1492 = vmatprep.subr.mxu0 0.0
    %1493 = vmatpush2.msra.mxu0 0.0
    %1494 = vmatprep.subr.mxu0 0.0
    %1495 = vmatpush2.msra.mxu0 0.0
    %1496 = vmatprep.subr.mxu0 0.0
    %1497 = vmatpush2.msra.mxu0 0.0
    %1498 = vmatprep.subr.mxu0 0.0
    %1499 = vmatpush2.msra.mxu0 0.0
    %1500 = vmatprep.mubr.f32.mxu0 0.0
    %1501 = vmatmul.mubr.f32.gmra.mxu0 %v1431
    %v1502 = vpop.f32.mrf.mxu0
    %v1503 = vadd.f32 0.0, %v1502
    %v1504 = vpop.f32.mrf.mxu0
    %1505 = vmatprep.mubr.f32.mxu0 0.0
    %1506 = vmatmul.mubr.f32.gmra.mxu0 %v1434
    %v1507 = vpop.f32.mrf.mxu0
    %v1508 = vadd.f32 0.0, %v1507
    %v1509 = vpop.f32.mrf.mxu0
    %1510 = vdwg.mxu0
    %v1511 = vadd.f32 %v1251, %v1503
    %v1512 = vadd.f32 %v1252, %v1508
    %v1513 = vlaneseq
    %v1514 = vshrl.u32 %v1513, 7
    %v1515 = vsub.s32 0, %v1514
    %v1516 = vrot.slane %v175, %v1515
    %v1517 = vadd.f32 %v1511, %v1516
    %v1518 = vadd.f32 %v1512, %v1516
    %v1519 = vld [vmem:[%s3 + $0x40] sm:$0xff]
    %v1520 = vld [vmem:[%s3 + $0x50] sm:$0xff]
    %v1521 = vld [vmem:[%s3 + $0x60] sm:$0xff]
    %v1522 = vld [vmem:[%s3 + $0x70] sm:$0xff]
    %v1523 = vld [vmem:[%s3 + $0x48] sm:$0xff]
    %v1524 = vld [vmem:[%s3 + $0x58] sm:$0xff]
    %v1525 = vld [vmem:[%s3 + $0x68] sm:$0xff]
    %v1526 = vld [vmem:[%s3 + $0x78] sm:$0xff]
    %v1527 = vld [vmem:[%s4 + $0x40] sm:$0xff]
    %v1528 = vld [vmem:[%s4 + $0x48] sm:$0xff]
    %v1529 = vld [vmem:[%s4 + $0x50] sm:$0xff]
    %v1530 = vld [vmem:[%s4 + $0x58] sm:$0xff]
    %v1531 = vld [vmem:[%s4 + $0x60] sm:$0xff]
    %v1532 = vld [vmem:[%s4 + $0x68] sm:$0xff]
    %v1533 = vld [vmem:[%s4 + $0x70] sm:$0xff]
    %v1534 = vld [vmem:[%s4 + $0x78] sm:$0xff]
    %v1535 = vld [vmem:[%s5 + $0x8] sm:$0x1]
    %v1536 = vld [vmem:[%s5 + $0x9] sm:$0x1]
    %v1537 = vld [vmem:[%s5 + $0xa] sm:$0x1]
    %v1538 = vld [vmem:[%s5 + $0xb] sm:$0x1]
    %v1539 = vld [vmem:[%s5 + $0xc] sm:$0x1]
    %v1540 = vld [vmem:[%s5 + $0xd] sm:$0x1]
    %v1541 = vld [vmem:[%s5 + $0xe] sm:$0x1]
    %v1542 = vld [vmem:[%s5 + $0xf] sm:$0x1]
    %v1543 = vsel %vm176, %v1517, 0.0
    %1544 = vadd.xlane.f32.xlu0 %v1543
    %v1545 = vpop.xlane.xlu0 %1544
    %v1546 = vsel %vm176, %v1518, 0.0
    %1547 = vadd.xlane.f32.xlu0 %v1546
    %v1548 = vpop.xlane.xlu0 %1547
    %v1549 = vmul.f32 %v1545, %v183
    %v1550 = vmul.f32 %v1548, %v183
    %v1551 = vsub.f32 %v1517, %v1549
    %v1552 = vsub.f32 %v1518, %v1550
    %v1553 = vmul.f32 %v1551, %v1551
    %v1554 = vmul.f32 %v1552, %v1552
    %v1555 = vsel %vm176, %v1553, 0.0
    %1556 = vadd.xlane.f32.xlu0 %v1555
    %v1557 = vpop.xlane.xlu0 %1556
    %v1558 = vsel %vm176, %v1554, 0.0
    %1559 = vadd.xlane.f32.xlu0 %v1558
    %v1560 = vpop.xlane.xlu0 %1559
    %v1561 = vmul.f32 %v1557, %v183
    %v1562 = vmul.f32 %v1560, %v183
    %v1563 = vadd.f32 %v1561, 1e-12
    %v1564 = vadd.f32 %v1562, 1e-12
    %v1565 = vrsqrt.pop %v1563
    %v1566 = vrsqrt.pop %v1564
    %v1567 = vmul.f32 %v1551, %v1565
    %v1568 = vmul.f32 %v1552, %v1566
    %v1569 = vlaneseq
    %v1570 = vshrl.u32 %v1569, 7
    %v1571 = vsub.s32 0, %v1570
    %v1572 = vrot.slane %v1535, %v1571
    %v1573 = vmul.f32 %v1567, %v1572
    %v1574 = vmul.f32 %v1568, %v1572
    %v1575 = vlaneseq
    %v1576 = vshrl.u32 %v1575, 7
    %v1577 = vsub.s32 0, %v1576
    %v1578 = vrot.slane %v1536, %v1577
    %v1579 = vadd.f32 %v1573, %v1578
    %v1580 = vadd.f32 %v1574, %v1578
    %v1581 = vlaneseq
    %v1582 = vshrl.u32 %v1581, 7
    %v1583 = vsub.s32 0, %v1582
    %v1584 = vrot.slane %v1537, %v1583
    %v1586 = vsel %vm176, %v1579, 0
    %v1589 = vsel %vm176, %v1580, 0
    %1591 = vmatprep.subr.mxu0 0.0
    %1592 = vmatpush1.msra.mxu0 0.0
    %1593 = vmatprep.subr.mxu0 0.0
    %1594 = vmatpush1.msra.mxu0 0.0
    %1595 = vmatprep.subr.mxu0 0.0
    %1596 = vmatpush1.msra.mxu0 0.0
    %1597 = vmatprep.subr.mxu0 0.0
    %1598 = vmatpush1.msra.mxu0 0.0
    %1599 = vmatprep.subr.mxu0 0.0
    %1600 = vmatpush1.msra.mxu0 0.0
    %1601 = vmatprep.subr.mxu0 0.0
    %1602 = vmatpush1.msra.mxu0 0.0
    %1603 = vmatprep.subr.mxu0 0.0
    %1604 = vmatpush1.msra.mxu0 0.0
    %1605 = vmatprep.subr.mxu0 0.0
    %1606 = vmatpush1.msra.mxu0 0.0
    %1607 = vmatprep.subr.mxu0 0.0
    %1608 = vmatpush1.msra.mxu0 0.0
    %1609 = vmatprep.subr.mxu0 0.0
    %1610 = vmatpush1.msra.mxu0 0.0
    %1611 = vmatprep.subr.mxu0 0.0
    %1612 = vmatpush1.msra.mxu0 0.0
    %1613 = vmatprep.subr.mxu0 0.0
    %1614 = vmatpush1.msra.mxu0 0.0
    %1615 = vmatprep.subr.mxu0 0.0
    %1616 = vmatpush1.msra.mxu0 %v1522
    %1617 = vmatprep.subr.mxu0 0.0
    %1618 = vmatpush1.msra.mxu0 %v1521
    %1619 = vmatprep.subr.mxu0 0.0
    %1620 = vmatpush1.msra.mxu0 %v1520
    %1621 = vmatprep.subr.mxu0 0.0
    %1622 = vmatpush1.msra.mxu0 %v1519
    %1623 = vmatprep.subr.mxu0 0.0
    %1624 = vmatpush2.msra.mxu0 0.0
    %1625 = vmatprep.subr.mxu0 0.0
    %1626 = vmatpush2.msra.mxu0 0.0
    %1627 = vmatprep.subr.mxu0 0.0
    %1628 = vmatpush2.msra.mxu0 0.0
    %1629 = vmatprep.subr.mxu0 0.0
    %1630 = vmatpush2.msra.mxu0 0.0
    %1631 = vmatprep.subr.mxu0 0.0
    %1632 = vmatpush2.msra.mxu0 0.0
    %1633 = vmatprep.subr.mxu0 0.0
    %1634 = vmatpush2.msra.mxu0 0.0
    %1635 = vmatprep.subr.mxu0 0.0
    %1636 = vmatpush2.msra.mxu0 0.0
    %1637 = vmatprep.subr.mxu0 0.0
    %1638 = vmatpush2.msra.mxu0 0.0
    %1639 = vmatprep.subr.mxu0 0.0
    %1640 = vmatpush2.msra.mxu0 0.0
    %1641 = vmatprep.subr.mxu0 0.0
    %1642 = vmatpush2.msra.mxu0 0.0
    %1643 = vmatprep.subr.mxu0 0.0
    %1644 = vmatpush2.msra.mxu0 0.0
    %1645 = vmatprep.subr.mxu0 0.0
    %1646 = vmatpush2.msra.mxu0 0.0
    %1647 = vmatprep.subr.mxu0 0.0
    %1648 = vmatpush2.msra.mxu0 0.0
    %1649 = vmatprep.subr.mxu0 0.0
    %1650 = vmatpush2.msra.mxu0 0.0
    %1651 = vmatprep.subr.mxu0 0.0
    %1652 = vmatpush2.msra.mxu0 0.0
    %1653 = vmatprep.subr.mxu0 0.0
    %1654 = vmatpush2.msra.mxu0 0.0
    %1655 = vmatprep.mubr.f32.mxu0 0.0
    %1656 = vmatmul.mubr.f32.gmra.mxu0 %v1586
    %v1657 = vpop.f32.mrf.mxu0
    %v1658 = vadd.f32 %v1584, %v1657
    %v1659 = vpop.f32.mrf.mxu0
    %1660 = vmatprep.mubr.f32.mxu0 0.0
    %1661 = vmatmul.mubr.f32.gmra.mxu0 %v1589
    %v1662 = vpop.f32.mrf.mxu0
    %v1663 = vadd.f32 %v1584, %v1662
    %v1664 = vpop.f32.mrf.mxu0
    %1665 = vdwg.mxu0
    %1668 = vrot.lane.b32.xlu0 %v1658, 96
    %v1669 = vpop.permute.xlu0 %1668
    %1670 = vrot.lane.b32.xlu0 %v1663, 96
    %v1671 = vpop.permute.xlu0 %1670
    %v1672 = vsel %vm307, %v1658, 0
    %v1674 = vsel %vm307, %v1663, 0
    %v1676 = vsel %vm307, %v1669, 0
    %v1678 = vsel %vm307, %v1671, 0
    %1680 = vmatprep.subr.mxu0 0.0
    %1681 = vmatpush1.xpose.msra.mxu0 0.0
    %1682 = vmatprep.subr.mxu0 0.0
    %1683 = vmatpush1.xpose.msra.mxu0 0.0
    %1684 = vmatprep.subr.mxu0 0.0
    %1685 = vmatpush1.xpose.msra.mxu0 0.0
    %1686 = vmatprep.subr.mxu0 0.0
    %1687 = vmatpush1.xpose.msra.mxu0 0.0
    %1688 = vmatprep.subr.mxu0 0.0
    %1689 = vmatpush1.xpose.msra.mxu0 0.0
    %1690 = vmatprep.subr.mxu0 0.0
    %1691 = vmatpush1.xpose.msra.mxu0 0.0
    %1692 = vmatprep.subr.mxu0 0.0
    %1693 = vmatpush1.xpose.msra.mxu0 0.0
    %1694 = vmatprep.subr.mxu0 0.0
    %1695 = vmatpush1.xpose.msra.mxu0 0.0
    %1696 = vmatprep.subr.mxu0 0.0
    %1697 = vmatpush1.xpose.msra.mxu0 0.0
    %1698 = vmatprep.subr.mxu0 0.0
    %1699 = vmatpush1.xpose.msra.mxu0 0.0
    %1700 = vmatprep.subr.mxu0 0.0
    %1701 = vmatpush1.xpose.msra.mxu0 0.0
    %1702 = vmatprep.subr.mxu0 0.0
    %1703 = vmatpush1.xpose.msra.mxu0 0.0
    %1704 = vmatprep.subr.mxu0 0.0
    %1705 = vmatpush1.xpose.msra.mxu0 0.0
    %1706 = vmatprep.subr.mxu0 0.0
    %1707 = vmatpush1.xpose.msra.mxu0 0.0
    %1708 = vmatprep.subr.mxu0 0.0
    %1709 = vmatpush1.xpose.msra.mxu0 %v1678
    %1710 = vmatprep.subr.mxu0 0.0
    %1711 = vmatpush1.xpose.msra.mxu0 %v1676
    %1712 = vmatprep.subr.mxu0 0.0
    %1713 = vmatpush2.xpose.msra.mxu0 0.0
    %1714 = vmatprep.subr.mxu0 0.0
    %1715 = vmatpush2.xpose.msra.mxu0 0.0
    %1716 = vmatprep.subr.mxu0 0.0
    %1717 = vmatpush2.xpose.msra.mxu0 0.0
    %1718 = vmatprep.subr.mxu0 0.0
    %1719 = vmatpush2.xpose.msra.mxu0 0.0
    %1720 = vmatprep.subr.mxu0 0.0
    %1721 = vmatpush2.xpose.msra.mxu0 0.0
    %1722 = vmatprep.subr.mxu0 0.0
    %1723 = vmatpush2.xpose.msra.mxu0 0.0
    %1724 = vmatprep.subr.mxu0 0.0
    %1725 = vmatpush2.xpose.msra.mxu0 0.0
    %1726 = vmatprep.subr.mxu0 0.0
    %1727 = vmatpush2.xpose.msra.mxu0 0.0
    %1728 = vmatprep.subr.mxu0 0.0
    %1729 = vmatpush2.xpose.msra.mxu0 0.0
    %1730 = vmatprep.subr.mxu0 0.0
    %1731 = vmatpush2.xpose.msra.mxu0 0.0
    %1732 = vmatprep.subr.mxu0 0.0
    %1733 = vmatpush2.xpose.msra.mxu0 0.0
    %1734 = vmatprep.subr.mxu0 0.0
    %1735 = vmatpush2.xpose.msra.mxu0 0.0
    %1736 = vmatprep.subr.mxu0 0.0
    %1737 = vmatpush2.xpose.msra.mxu0 0.0
    %1738 = vmatprep.subr.mxu0 0.0
    %1739 = vmatpush2.xpose.msra.mxu0 0.0
    %1740 = vmatprep.subr.mxu0 0.0
    %1741 = vmatpush2.xpose.msra.mxu0 0.0
    %1742 = vmatprep.subr.mxu0 0.0
    %1743 = vmatpush2.xpose.msra.mxu0 0.0
    %1744 = vmatprep.mubr.f32.mxu0 0.0
    %1745 = vmatmul.mubr.f32.gmra.mxu0 %v1672
    %v1746 = vpop.f32.mrf.mxu0
    %v1747 = vadd.f32 0.0, %v1746
    %v1748 = vpop.f32.mrf.mxu0
    %1749 = vmatprep.mubr.f32.mxu0 0.0
    %1750 = vmatmul.mubr.f32.gmra.mxu0 %v1674
    %v1751 = vpop.f32.mrf.mxu0
    %v1752 = vadd.f32 0.0, %v1751
    %v1753 = vpop.f32.mrf.mxu0
    %1754 = vdwg.mxu0
    %v1755 = vmul.f32 %v1747, 0.35355338
    %v1756 = vmul.f32 %v1752, 0.35355338
    %v1757 = vsel %vm150, %v1755, -1e+30
    %v1758 = vsel %vm151, %v1756, -1e+30
    %v1759 = vsel %vm395, %v1757, -inf
    %1760 = vmax.xlane.f32.xlu0 %v1759
    %v1761 = vpop.xlane.xlu0 %1760
    %v1762 = vsel %vm395, %v1758, -inf
    %1763 = vmax.xlane.f32.xlu0 %v1762
    %v1764 = vpop.xlane.xlu0 %1763
    %v1765 = vsub.f32 %v1757, %v1761
    %v1766 = vsub.f32 %v1758, %v1764
    %v1767 = vmul.f32 %v1765, 1.442695
    %v1768 = vpow.pop %v1767
    %v1769 = vmul.f32 %v1766, 1.442695
    %v1770 = vpow.pop %v1769
    %v1771 = vsel %vm395, %v1768, 0.0
    %1772 = vadd.xlane.f32.xlu0 %v1771
    %v1773 = vpop.xlane.xlu0 %1772
    %v1774 = vsel %vm395, %v1770, 0.0
    %1775 = vadd.xlane.f32.xlu0 %v1774
    %v1776 = vpop.xlane.xlu0 %1775
    %v1777 = vrcp.pop %v1773
    %v1778 = vrcp.pop %v1776
    %v1779 = vmul.f32 %v1768, %v1777
    %v1780 = vmul.f32 %v1770, %v1778
    %1781 = vrot.lane.b32.xlu0 %v1658, 64
    %v1782 = vpop.permute.xlu0 %1781
    %1783 = vrot.lane.b32.xlu0 %v1663, 64
    %v1784 = vpop.permute.xlu0 %1783
    %v1788 = vsel %vm395, %v1779, 0
    %v1791 = vsel %vm395, %v1780, 0
    %1793 = vmatprep.subr.mxu0 0.0
    %1794 = vmatpush1.msra.mxu0 0.0
    %1795 = vmatprep.subr.mxu0 0.0
    %1796 = vmatpush1.msra.mxu0 0.0
    %1797 = vmatprep.subr.mxu0 0.0
    %1798 = vmatpush1.msra.mxu0 0.0
    %1799 = vmatprep.subr.mxu0 0.0
    %1800 = vmatpush1.msra.mxu0 0.0
    %1801 = vmatprep.subr.mxu0 0.0
    %1802 = vmatpush1.msra.mxu0 0.0
    %1803 = vmatprep.subr.mxu0 0.0
    %1804 = vmatpush1.msra.mxu0 0.0
    %1805 = vmatprep.subr.mxu0 0.0
    %1806 = vmatpush1.msra.mxu0 0.0
    %1807 = vmatprep.subr.mxu0 0.0
    %1808 = vmatpush1.msra.mxu0 0.0
    %1809 = vmatprep.subr.mxu0 0.0
    %1810 = vmatpush1.msra.mxu0 0.0
    %1811 = vmatprep.subr.mxu0 0.0
    %1812 = vmatpush1.msra.mxu0 0.0
    %1813 = vmatprep.subr.mxu0 0.0
    %1814 = vmatpush1.msra.mxu0 0.0
    %1815 = vmatprep.subr.mxu0 0.0
    %1816 = vmatpush1.msra.mxu0 0.0
    %1817 = vmatprep.subr.mxu0 0.0
    %1818 = vmatpush1.msra.mxu0 0.0
    %1819 = vmatprep.subr.mxu0 0.0
    %1820 = vmatpush1.msra.mxu0 0.0
    %1821 = vmatprep.subr.mxu0 0.0
    %1822 = vmatpush1.msra.mxu0 %v1784
    %1823 = vmatprep.subr.mxu0 0.0
    %1824 = vmatpush1.msra.mxu0 %v1782
    %1825 = vmatprep.subr.mxu0 0.0
    %1826 = vmatpush2.msra.mxu0 0.0
    %1827 = vmatprep.subr.mxu0 0.0
    %1828 = vmatpush2.msra.mxu0 0.0
    %1829 = vmatprep.subr.mxu0 0.0
    %1830 = vmatpush2.msra.mxu0 0.0
    %1831 = vmatprep.subr.mxu0 0.0
    %1832 = vmatpush2.msra.mxu0 0.0
    %1833 = vmatprep.subr.mxu0 0.0
    %1834 = vmatpush2.msra.mxu0 0.0
    %1835 = vmatprep.subr.mxu0 0.0
    %1836 = vmatpush2.msra.mxu0 0.0
    %1837 = vmatprep.subr.mxu0 0.0
    %1838 = vmatpush2.msra.mxu0 0.0
    %1839 = vmatprep.subr.mxu0 0.0
    %1840 = vmatpush2.msra.mxu0 0.0
    %1841 = vmatprep.subr.mxu0 0.0
    %1842 = vmatpush2.msra.mxu0 0.0
    %1843 = vmatprep.subr.mxu0 0.0
    %1844 = vmatpush2.msra.mxu0 0.0
    %1845 = vmatprep.subr.mxu0 0.0
    %1846 = vmatpush2.msra.mxu0 0.0
    %1847 = vmatprep.subr.mxu0 0.0
    %1848 = vmatpush2.msra.mxu0 0.0
    %1849 = vmatprep.subr.mxu0 0.0
    %1850 = vmatpush2.msra.mxu0 0.0
    %1851 = vmatprep.subr.mxu0 0.0
    %1852 = vmatpush2.msra.mxu0 0.0
    %1853 = vmatprep.subr.mxu0 0.0
    %1854 = vmatpush2.msra.mxu0 0.0
    %1855 = vmatprep.subr.mxu0 0.0
    %1856 = vmatpush2.msra.mxu0 0.0
    %1857 = vmatprep.mubr.f32.mxu0 0.0
    %1858 = vmatmul.mubr.f32.gmra.mxu0 %v1788
    %v1859 = vpop.f32.mrf.mxu0
    %v1860 = vadd.f32 0.0, %v1859
    %v1861 = vpop.f32.mrf.mxu0
    %1862 = vmatprep.mubr.f32.mxu0 0.0
    %1863 = vmatmul.mubr.f32.gmra.mxu0 %v1791
    %v1864 = vpop.f32.mrf.mxu0
    %v1865 = vadd.f32 0.0, %v1864
    %v1866 = vpop.f32.mrf.mxu0
    %1867 = vdwg.mxu0
    %1868 = vrot.lane.b32.xlu0 %v1658, 120
    %v1869 = vpop.permute.xlu0 %1868
    %1870 = vrot.lane.b32.xlu0 %v1663, 120
    %v1871 = vpop.permute.xlu0 %1870
    %1872 = vrot.lane.b32.xlu0 %v1658, 88
    %v1873 = vpop.permute.xlu0 %1872
    %1874 = vrot.lane.b32.xlu0 %v1663, 88
    %v1875 = vpop.permute.xlu0 %1874
    %v1876 = vsel %vm307, %v1869, 0
    %v1878 = vsel %vm307, %v1871, 0
    %v1880 = vsel %vm307, %v1873, 0
    %v1882 = vsel %vm307, %v1875, 0
    %1884 = vmatprep.subr.mxu0 0.0
    %1885 = vmatpush1.xpose.msra.mxu0 0.0
    %1886 = vmatprep.subr.mxu0 0.0
    %1887 = vmatpush1.xpose.msra.mxu0 0.0
    %1888 = vmatprep.subr.mxu0 0.0
    %1889 = vmatpush1.xpose.msra.mxu0 0.0
    %1890 = vmatprep.subr.mxu0 0.0
    %1891 = vmatpush1.xpose.msra.mxu0 0.0
    %1892 = vmatprep.subr.mxu0 0.0
    %1893 = vmatpush1.xpose.msra.mxu0 0.0
    %1894 = vmatprep.subr.mxu0 0.0
    %1895 = vmatpush1.xpose.msra.mxu0 0.0
    %1896 = vmatprep.subr.mxu0 0.0
    %1897 = vmatpush1.xpose.msra.mxu0 0.0
    %1898 = vmatprep.subr.mxu0 0.0
    %1899 = vmatpush1.xpose.msra.mxu0 0.0
    %1900 = vmatprep.subr.mxu0 0.0
    %1901 = vmatpush1.xpose.msra.mxu0 0.0
    %1902 = vmatprep.subr.mxu0 0.0
    %1903 = vmatpush1.xpose.msra.mxu0 0.0
    %1904 = vmatprep.subr.mxu0 0.0
    %1905 = vmatpush1.xpose.msra.mxu0 0.0
    %1906 = vmatprep.subr.mxu0 0.0
    %1907 = vmatpush1.xpose.msra.mxu0 0.0
    %1908 = vmatprep.subr.mxu0 0.0
    %1909 = vmatpush1.xpose.msra.mxu0 0.0
    %1910 = vmatprep.subr.mxu0 0.0
    %1911 = vmatpush1.xpose.msra.mxu0 0.0
    %1912 = vmatprep.subr.mxu0 0.0
    %1913 = vmatpush1.xpose.msra.mxu0 %v1882
    %1914 = vmatprep.subr.mxu0 0.0
    %1915 = vmatpush1.xpose.msra.mxu0 %v1880
    %1916 = vmatprep.subr.mxu0 0.0
    %1917 = vmatpush2.xpose.msra.mxu0 0.0
    %1918 = vmatprep.subr.mxu0 0.0
    %1919 = vmatpush2.xpose.msra.mxu0 0.0
    %1920 = vmatprep.subr.mxu0 0.0
    %1921 = vmatpush2.xpose.msra.mxu0 0.0
    %1922 = vmatprep.subr.mxu0 0.0
    %1923 = vmatpush2.xpose.msra.mxu0 0.0
    %1924 = vmatprep.subr.mxu0 0.0
    %1925 = vmatpush2.xpose.msra.mxu0 0.0
    %1926 = vmatprep.subr.mxu0 0.0
    %1927 = vmatpush2.xpose.msra.mxu0 0.0
    %1928 = vmatprep.subr.mxu0 0.0
    %1929 = vmatpush2.xpose.msra.mxu0 0.0
    %1930 = vmatprep.subr.mxu0 0.0
    %1931 = vmatpush2.xpose.msra.mxu0 0.0
    %1932 = vmatprep.subr.mxu0 0.0
    %1933 = vmatpush2.xpose.msra.mxu0 0.0
    %1934 = vmatprep.subr.mxu0 0.0
    %1935 = vmatpush2.xpose.msra.mxu0 0.0
    %1936 = vmatprep.subr.mxu0 0.0
    %1937 = vmatpush2.xpose.msra.mxu0 0.0
    %1938 = vmatprep.subr.mxu0 0.0
    %1939 = vmatpush2.xpose.msra.mxu0 0.0
    %1940 = vmatprep.subr.mxu0 0.0
    %1941 = vmatpush2.xpose.msra.mxu0 0.0
    %1942 = vmatprep.subr.mxu0 0.0
    %1943 = vmatpush2.xpose.msra.mxu0 0.0
    %1944 = vmatprep.subr.mxu0 0.0
    %1945 = vmatpush2.xpose.msra.mxu0 0.0
    %1946 = vmatprep.subr.mxu0 0.0
    %1947 = vmatpush2.xpose.msra.mxu0 0.0
    %1948 = vmatprep.mubr.f32.mxu0 0.0
    %1949 = vmatmul.mubr.f32.gmra.mxu0 %v1876
    %v1950 = vpop.f32.mrf.mxu0
    %v1951 = vadd.f32 0.0, %v1950
    %v1952 = vpop.f32.mrf.mxu0
    %1953 = vmatprep.mubr.f32.mxu0 0.0
    %1954 = vmatmul.mubr.f32.gmra.mxu0 %v1878
    %v1955 = vpop.f32.mrf.mxu0
    %v1956 = vadd.f32 0.0, %v1955
    %v1957 = vpop.f32.mrf.mxu0
    %1958 = vdwg.mxu0
    %v1959 = vmul.f32 %v1951, 0.35355338
    %v1960 = vmul.f32 %v1956, 0.35355338
    %v1961 = vsel %vm150, %v1959, -1e+30
    %v1962 = vsel %vm151, %v1960, -1e+30
    %v1963 = vsel %vm395, %v1961, -inf
    %1964 = vmax.xlane.f32.xlu0 %v1963
    %v1965 = vpop.xlane.xlu0 %1964
    %v1966 = vsel %vm395, %v1962, -inf
    %1967 = vmax.xlane.f32.xlu0 %v1966
    %v1968 = vpop.xlane.xlu0 %1967
    %v1969 = vsub.f32 %v1961, %v1965
    %v1970 = vsub.f32 %v1962, %v1968
    %v1971 = vmul.f32 %v1969, 1.442695
    %v1972 = vpow.pop %v1971
    %v1973 = vmul.f32 %v1970, 1.442695
    %v1974 = vpow.pop %v1973
    %v1975 = vsel %vm395, %v1972, 0.0
    %1976 = vadd.xlane.f32.xlu0 %v1975
    %v1977 = vpop.xlane.xlu0 %1976
    %v1978 = vsel %vm395, %v1974, 0.0
    %1979 = vadd.xlane.f32.xlu0 %v1978
    %v1980 = vpop.xlane.xlu0 %1979
    %v1981 = vrcp.pop %v1977
    %v1982 = vrcp.pop %v1980
    %v1983 = vmul.f32 %v1972, %v1981
    %v1984 = vmul.f32 %v1974, %v1982
    %1985 = vrot.lane.b32.xlu0 %v1658, 56
    %v1986 = vpop.permute.xlu0 %1985
    %1987 = vrot.lane.b32.xlu0 %v1663, 56
    %v1988 = vpop.permute.xlu0 %1987
    %v1992 = vsel %vm395, %v1983, 0
    %v1995 = vsel %vm395, %v1984, 0
    %1997 = vmatprep.subr.mxu0 0.0
    %1998 = vmatpush1.msra.mxu0 0.0
    %1999 = vmatprep.subr.mxu0 0.0
    %2000 = vmatpush1.msra.mxu0 0.0
    %2001 = vmatprep.subr.mxu0 0.0
    %2002 = vmatpush1.msra.mxu0 0.0
    %2003 = vmatprep.subr.mxu0 0.0
    %2004 = vmatpush1.msra.mxu0 0.0
    %2005 = vmatprep.subr.mxu0 0.0
    %2006 = vmatpush1.msra.mxu0 0.0
    %2007 = vmatprep.subr.mxu0 0.0
    %2008 = vmatpush1.msra.mxu0 0.0
    %2009 = vmatprep.subr.mxu0 0.0
    %2010 = vmatpush1.msra.mxu0 0.0
    %2011 = vmatprep.subr.mxu0 0.0
    %2012 = vmatpush1.msra.mxu0 0.0
    %2013 = vmatprep.subr.mxu0 0.0
    %2014 = vmatpush1.msra.mxu0 0.0
    %2015 = vmatprep.subr.mxu0 0.0
    %2016 = vmatpush1.msra.mxu0 0.0
    %2017 = vmatprep.subr.mxu0 0.0
    %2018 = vmatpush1.msra.mxu0 0.0
    %2019 = vmatprep.subr.mxu0 0.0
    %2020 = vmatpush1.msra.mxu0 0.0
    %2021 = vmatprep.subr.mxu0 0.0
    %2022 = vmatpush1.msra.mxu0 0.0
    %2023 = vmatprep.subr.mxu0 0.0
    %2024 = vmatpush1.msra.mxu0 0.0
    %2025 = vmatprep.subr.mxu0 0.0
    %2026 = vmatpush1.msra.mxu0 %v1988
    %2027 = vmatprep.subr.mxu0 0.0
    %2028 = vmatpush1.msra.mxu0 %v1986
    %2029 = vmatprep.subr.mxu0 0.0
    %2030 = vmatpush2.msra.mxu0 0.0
    %2031 = vmatprep.subr.mxu0 0.0
    %2032 = vmatpush2.msra.mxu0 0.0
    %2033 = vmatprep.subr.mxu0 0.0
    %2034 = vmatpush2.msra.mxu0 0.0
    %2035 = vmatprep.subr.mxu0 0.0
    %2036 = vmatpush2.msra.mxu0 0.0
    %2037 = vmatprep.subr.mxu0 0.0
    %2038 = vmatpush2.msra.mxu0 0.0
    %2039 = vmatprep.subr.mxu0 0.0
    %2040 = vmatpush2.msra.mxu0 0.0
    %2041 = vmatprep.subr.mxu0 0.0
    %2042 = vmatpush2.msra.mxu0 0.0
    %2043 = vmatprep.subr.mxu0 0.0
    %2044 = vmatpush2.msra.mxu0 0.0
    %2045 = vmatprep.subr.mxu0 0.0
    %2046 = vmatpush2.msra.mxu0 0.0
    %2047 = vmatprep.subr.mxu0 0.0
    %2048 = vmatpush2.msra.mxu0 0.0
    %2049 = vmatprep.subr.mxu0 0.0
    %2050 = vmatpush2.msra.mxu0 0.0
    %2051 = vmatprep.subr.mxu0 0.0
    %2052 = vmatpush2.msra.mxu0 0.0
    %2053 = vmatprep.subr.mxu0 0.0
    %2054 = vmatpush2.msra.mxu0 0.0
    %2055 = vmatprep.subr.mxu0 0.0
    %2056 = vmatpush2.msra.mxu0 0.0
    %2057 = vmatprep.subr.mxu0 0.0
    %2058 = vmatpush2.msra.mxu0 0.0
    %2059 = vmatprep.subr.mxu0 0.0
    %2060 = vmatpush2.msra.mxu0 0.0
    %2061 = vmatprep.mubr.f32.mxu0 0.0
    %2062 = vmatmul.mubr.f32.gmra.mxu0 %v1992
    %v2063 = vpop.f32.mrf.mxu0
    %v2064 = vadd.f32 0.0, %v2063
    %v2065 = vpop.f32.mrf.mxu0
    %2066 = vmatprep.mubr.f32.mxu0 0.0
    %2067 = vmatmul.mubr.f32.gmra.mxu0 %v1995
    %v2068 = vpop.f32.mrf.mxu0
    %v2069 = vadd.f32 0.0, %v2068
    %v2070 = vpop.f32.mrf.mxu0
    %2071 = vdwg.mxu0
    %2072 = vrot.lane.b32.xlu0 %v1658, 112
    %v2073 = vpop.permute.xlu0 %2072
    %2074 = vrot.lane.b32.xlu0 %v1663, 112
    %v2075 = vpop.permute.xlu0 %2074
    %2076 = vrot.lane.b32.xlu0 %v1658, 80
    %v2077 = vpop.permute.xlu0 %2076
    %2078 = vrot.lane.b32.xlu0 %v1663, 80
    %v2079 = vpop.permute.xlu0 %2078
    %v2080 = vsel %vm307, %v2073, 0
    %v2082 = vsel %vm307, %v2075, 0
    %v2084 = vsel %vm307, %v2077, 0
    %v2086 = vsel %vm307, %v2079, 0
    %2088 = vmatprep.subr.mxu0 0.0
    %2089 = vmatpush1.xpose.msra.mxu0 0.0
    %2090 = vmatprep.subr.mxu0 0.0
    %2091 = vmatpush1.xpose.msra.mxu0 0.0
    %2092 = vmatprep.subr.mxu0 0.0
    %2093 = vmatpush1.xpose.msra.mxu0 0.0
    %2094 = vmatprep.subr.mxu0 0.0
    %2095 = vmatpush1.xpose.msra.mxu0 0.0
    %2096 = vmatprep.subr.mxu0 0.0
    %2097 = vmatpush1.xpose.msra.mxu0 0.0
    %2098 = vmatprep.subr.mxu0 0.0
    %2099 = vmatpush1.xpose.msra.mxu0 0.0
    %2100 = vmatprep.subr.mxu0 0.0
    %2101 = vmatpush1.xpose.msra.mxu0 0.0
    %2102 = vmatprep.subr.mxu0 0.0
    %2103 = vmatpush1.xpose.msra.mxu0 0.0
    %2104 = vmatprep.subr.mxu0 0.0
    %2105 = vmatpush1.xpose.msra.mxu0 0.0
    %2106 = vmatprep.subr.mxu0 0.0
    %2107 = vmatpush1.xpose.msra.mxu0 0.0
    %2108 = vmatprep.subr.mxu0 0.0
    %2109 = vmatpush1.xpose.msra.mxu0 0.0
    %2110 = vmatprep.subr.mxu0 0.0
    %2111 = vmatpush1.xpose.msra.mxu0 0.0
    %2112 = vmatprep.subr.mxu0 0.0
    %2113 = vmatpush1.xpose.msra.mxu0 0.0
    %2114 = vmatprep.subr.mxu0 0.0
    %2115 = vmatpush1.xpose.msra.mxu0 0.0
    %2116 = vmatprep.subr.mxu0 0.0
    %2117 = vmatpush1.xpose.msra.mxu0 %v2086
    %2118 = vmatprep.subr.mxu0 0.0
    %2119 = vmatpush1.xpose.msra.mxu0 %v2084
    %2120 = vmatprep.subr.mxu0 0.0
    %2121 = vmatpush2.xpose.msra.mxu0 0.0
    %2122 = vmatprep.subr.mxu0 0.0
    %2123 = vmatpush2.xpose.msra.mxu0 0.0
    %2124 = vmatprep.subr.mxu0 0.0
    %2125 = vmatpush2.xpose.msra.mxu0 0.0
    %2126 = vmatprep.subr.mxu0 0.0
    %2127 = vmatpush2.xpose.msra.mxu0 0.0
    %2128 = vmatprep.subr.mxu0 0.0
    %2129 = vmatpush2.xpose.msra.mxu0 0.0
    %2130 = vmatprep.subr.mxu0 0.0
    %2131 = vmatpush2.xpose.msra.mxu0 0.0
    %2132 = vmatprep.subr.mxu0 0.0
    %2133 = vmatpush2.xpose.msra.mxu0 0.0
    %2134 = vmatprep.subr.mxu0 0.0
    %2135 = vmatpush2.xpose.msra.mxu0 0.0
    %2136 = vmatprep.subr.mxu0 0.0
    %2137 = vmatpush2.xpose.msra.mxu0 0.0
    %2138 = vmatprep.subr.mxu0 0.0
    %2139 = vmatpush2.xpose.msra.mxu0 0.0
    %2140 = vmatprep.subr.mxu0 0.0
    %2141 = vmatpush2.xpose.msra.mxu0 0.0
    %2142 = vmatprep.subr.mxu0 0.0
    %2143 = vmatpush2.xpose.msra.mxu0 0.0
    %2144 = vmatprep.subr.mxu0 0.0
    %2145 = vmatpush2.xpose.msra.mxu0 0.0
    %2146 = vmatprep.subr.mxu0 0.0
    %2147 = vmatpush2.xpose.msra.mxu0 0.0
    %2148 = vmatprep.subr.mxu0 0.0
    %2149 = vmatpush2.xpose.msra.mxu0 0.0
    %2150 = vmatprep.subr.mxu0 0.0
    %2151 = vmatpush2.xpose.msra.mxu0 0.0
    %2152 = vmatprep.mubr.f32.mxu0 0.0
    %2153 = vmatmul.mubr.f32.gmra.mxu0 %v2080
    %v2154 = vpop.f32.mrf.mxu0
    %v2155 = vadd.f32 0.0, %v2154
    %v2156 = vpop.f32.mrf.mxu0
    %2157 = vmatprep.mubr.f32.mxu0 0.0
    %2158 = vmatmul.mubr.f32.gmra.mxu0 %v2082
    %v2159 = vpop.f32.mrf.mxu0
    %v2160 = vadd.f32 0.0, %v2159
    %v2161 = vpop.f32.mrf.mxu0
    %2162 = vdwg.mxu0
    %v2163 = vmul.f32 %v2155, 0.35355338
    %v2164 = vmul.f32 %v2160, 0.35355338
    %v2165 = vsel %vm150, %v2163, -1e+30
    %v2166 = vsel %vm151, %v2164, -1e+30
    %v2167 = vsel %vm395, %v2165, -inf
    %2168 = vmax.xlane.f32.xlu0 %v2167
    %v2169 = vpop.xlane.xlu0 %2168
    %v2170 = vsel %vm395, %v2166, -inf
    %2171 = vmax.xlane.f32.xlu0 %v2170
    %v2172 = vpop.xlane.xlu0 %2171
    %v2173 = vsub.f32 %v2165, %v2169
    %v2174 = vsub.f32 %v2166, %v2172
    %v2175 = vmul.f32 %v2173, 1.442695
    %v2176 = vpow.pop %v2175
    %v2177 = vmul.f32 %v2174, 1.442695
    %v2178 = vpow.pop %v2177
    %v2179 = vsel %vm395, %v2176, 0.0
    %2180 = vadd.xlane.f32.xlu0 %v2179
    %v2181 = vpop.xlane.xlu0 %2180
    %v2182 = vsel %vm395, %v2178, 0.0
    %2183 = vadd.xlane.f32.xlu0 %v2182
    %v2184 = vpop.xlane.xlu0 %2183
    %v2185 = vrcp.pop %v2181
    %v2186 = vrcp.pop %v2184
    %v2187 = vmul.f32 %v2176, %v2185
    %v2188 = vmul.f32 %v2178, %v2186
    %2189 = vrot.lane.b32.xlu0 %v1658, 48
    %v2190 = vpop.permute.xlu0 %2189
    %2191 = vrot.lane.b32.xlu0 %v1663, 48
    %v2192 = vpop.permute.xlu0 %2191
    %v2196 = vsel %vm395, %v2187, 0
    %v2199 = vsel %vm395, %v2188, 0
    %2201 = vmatprep.subr.mxu0 0.0
    %2202 = vmatpush1.msra.mxu0 0.0
    %2203 = vmatprep.subr.mxu0 0.0
    %2204 = vmatpush1.msra.mxu0 0.0
    %2205 = vmatprep.subr.mxu0 0.0
    %2206 = vmatpush1.msra.mxu0 0.0
    %2207 = vmatprep.subr.mxu0 0.0
    %2208 = vmatpush1.msra.mxu0 0.0
    %2209 = vmatprep.subr.mxu0 0.0
    %2210 = vmatpush1.msra.mxu0 0.0
    %2211 = vmatprep.subr.mxu0 0.0
    %2212 = vmatpush1.msra.mxu0 0.0
    %2213 = vmatprep.subr.mxu0 0.0
    %2214 = vmatpush1.msra.mxu0 0.0
    %2215 = vmatprep.subr.mxu0 0.0
    %2216 = vmatpush1.msra.mxu0 0.0
    %2217 = vmatprep.subr.mxu0 0.0
    %2218 = vmatpush1.msra.mxu0 0.0
    %2219 = vmatprep.subr.mxu0 0.0
    %2220 = vmatpush1.msra.mxu0 0.0
    %2221 = vmatprep.subr.mxu0 0.0
    %2222 = vmatpush1.msra.mxu0 0.0
    %2223 = vmatprep.subr.mxu0 0.0
    %2224 = vmatpush1.msra.mxu0 0.0
    %2225 = vmatprep.subr.mxu0 0.0
    %2226 = vmatpush1.msra.mxu0 0.0
    %2227 = vmatprep.subr.mxu0 0.0
    %2228 = vmatpush1.msra.mxu0 0.0
    %2229 = vmatprep.subr.mxu0 0.0
    %2230 = vmatpush1.msra.mxu0 %v2192
    %2231 = vmatprep.subr.mxu0 0.0
    %2232 = vmatpush1.msra.mxu0 %v2190
    %2233 = vmatprep.subr.mxu0 0.0
    %2234 = vmatpush2.msra.mxu0 0.0
    %2235 = vmatprep.subr.mxu0 0.0
    %2236 = vmatpush2.msra.mxu0 0.0
    %2237 = vmatprep.subr.mxu0 0.0
    %2238 = vmatpush2.msra.mxu0 0.0
    %2239 = vmatprep.subr.mxu0 0.0
    %2240 = vmatpush2.msra.mxu0 0.0
    %2241 = vmatprep.subr.mxu0 0.0
    %2242 = vmatpush2.msra.mxu0 0.0
    %2243 = vmatprep.subr.mxu0 0.0
    %2244 = vmatpush2.msra.mxu0 0.0
    %2245 = vmatprep.subr.mxu0 0.0
    %2246 = vmatpush2.msra.mxu0 0.0
    %2247 = vmatprep.subr.mxu0 0.0
    %2248 = vmatpush2.msra.mxu0 0.0
    %2249 = vmatprep.subr.mxu0 0.0
    %2250 = vmatpush2.msra.mxu0 0.0
    %2251 = vmatprep.subr.mxu0 0.0
    %2252 = vmatpush2.msra.mxu0 0.0
    %2253 = vmatprep.subr.mxu0 0.0
    %2254 = vmatpush2.msra.mxu0 0.0
    %2255 = vmatprep.subr.mxu0 0.0
    %2256 = vmatpush2.msra.mxu0 0.0
    %2257 = vmatprep.subr.mxu0 0.0
    %2258 = vmatpush2.msra.mxu0 0.0
    %2259 = vmatprep.subr.mxu0 0.0
    %2260 = vmatpush2.msra.mxu0 0.0
    %2261 = vmatprep.subr.mxu0 0.0
    %2262 = vmatpush2.msra.mxu0 0.0
    %2263 = vmatprep.subr.mxu0 0.0
    %2264 = vmatpush2.msra.mxu0 0.0
    %2265 = vmatprep.mubr.f32.mxu0 0.0
    %2266 = vmatmul.mubr.f32.gmra.mxu0 %v2196
    %v2267 = vpop.f32.mrf.mxu0
    %v2268 = vadd.f32 0.0, %v2267
    %v2269 = vpop.f32.mrf.mxu0
    %2270 = vmatprep.mubr.f32.mxu0 0.0
    %2271 = vmatmul.mubr.f32.gmra.mxu0 %v2199
    %v2272 = vpop.f32.mrf.mxu0
    %v2273 = vadd.f32 0.0, %v2272
    %v2274 = vpop.f32.mrf.mxu0
    %2275 = vdwg.mxu0
    %2276 = vrot.lane.b32.xlu0 %v1658, 104
    %v2277 = vpop.permute.xlu0 %2276
    %2278 = vrot.lane.b32.xlu0 %v1663, 104
    %v2279 = vpop.permute.xlu0 %2278
    %2280 = vrot.lane.b32.xlu0 %v1658, 72
    %v2281 = vpop.permute.xlu0 %2280
    %2282 = vrot.lane.b32.xlu0 %v1663, 72
    %v2283 = vpop.permute.xlu0 %2282
    %v2284 = vsel %vm307, %v2277, 0
    %v2286 = vsel %vm307, %v2279, 0
    %v2288 = vsel %vm307, %v2281, 0
    %v2290 = vsel %vm307, %v2283, 0
    %2292 = vmatprep.subr.mxu0 0.0
    %2293 = vmatpush1.xpose.msra.mxu0 0.0
    %2294 = vmatprep.subr.mxu0 0.0
    %2295 = vmatpush1.xpose.msra.mxu0 0.0
    %2296 = vmatprep.subr.mxu0 0.0
    %2297 = vmatpush1.xpose.msra.mxu0 0.0
    %2298 = vmatprep.subr.mxu0 0.0
    %2299 = vmatpush1.xpose.msra.mxu0 0.0
    %2300 = vmatprep.subr.mxu0 0.0
    %2301 = vmatpush1.xpose.msra.mxu0 0.0
    %2302 = vmatprep.subr.mxu0 0.0
    %2303 = vmatpush1.xpose.msra.mxu0 0.0
    %2304 = vmatprep.subr.mxu0 0.0
    %2305 = vmatpush1.xpose.msra.mxu0 0.0
    %2306 = vmatprep.subr.mxu0 0.0
    %2307 = vmatpush1.xpose.msra.mxu0 0.0
    %2308 = vmatprep.subr.mxu0 0.0
    %2309 = vmatpush1.xpose.msra.mxu0 0.0
    %2310 = vmatprep.subr.mxu0 0.0
    %2311 = vmatpush1.xpose.msra.mxu0 0.0
    %2312 = vmatprep.subr.mxu0 0.0
    %2313 = vmatpush1.xpose.msra.mxu0 0.0
    %2314 = vmatprep.subr.mxu0 0.0
    %2315 = vmatpush1.xpose.msra.mxu0 0.0
    %2316 = vmatprep.subr.mxu0 0.0
    %2317 = vmatpush1.xpose.msra.mxu0 0.0
    %2318 = vmatprep.subr.mxu0 0.0
    %2319 = vmatpush1.xpose.msra.mxu0 0.0
    %2320 = vmatprep.subr.mxu0 0.0
    %2321 = vmatpush1.xpose.msra.mxu0 %v2290
    %2322 = vmatprep.subr.mxu0 0.0
    %2323 = vmatpush1.xpose.msra.mxu0 %v2288
    %2324 = vmatprep.subr.mxu0 0.0
    %2325 = vmatpush2.xpose.msra.mxu0 0.0
    %2326 = vmatprep.subr.mxu0 0.0
    %2327 = vmatpush2.xpose.msra.mxu0 0.0
    %2328 = vmatprep.subr.mxu0 0.0
    %2329 = vmatpush2.xpose.msra.mxu0 0.0
    %2330 = vmatprep.subr.mxu0 0.0
    %2331 = vmatpush2.xpose.msra.mxu0 0.0
    %2332 = vmatprep.subr.mxu0 0.0
    %2333 = vmatpush2.xpose.msra.mxu0 0.0
    %2334 = vmatprep.subr.mxu0 0.0
    %2335 = vmatpush2.xpose.msra.mxu0 0.0
    %2336 = vmatprep.subr.mxu0 0.0
    %2337 = vmatpush2.xpose.msra.mxu0 0.0
    %2338 = vmatprep.subr.mxu0 0.0
    %2339 = vmatpush2.xpose.msra.mxu0 0.0
    %2340 = vmatprep.subr.mxu0 0.0
    %2341 = vmatpush2.xpose.msra.mxu0 0.0
    %2342 = vmatprep.subr.mxu0 0.0
    %2343 = vmatpush2.xpose.msra.mxu0 0.0
    %2344 = vmatprep.subr.mxu0 0.0
    %2345 = vmatpush2.xpose.msra.mxu0 0.0
    %2346 = vmatprep.subr.mxu0 0.0
    %2347 = vmatpush2.xpose.msra.mxu0 0.0
    %2348 = vmatprep.subr.mxu0 0.0
    %2349 = vmatpush2.xpose.msra.mxu0 0.0
    %2350 = vmatprep.subr.mxu0 0.0
    %2351 = vmatpush2.xpose.msra.mxu0 0.0
    %2352 = vmatprep.subr.mxu0 0.0
    %2353 = vmatpush2.xpose.msra.mxu0 0.0
    %2354 = vmatprep.subr.mxu0 0.0
    %2355 = vmatpush2.xpose.msra.mxu0 0.0
    %2356 = vmatprep.mubr.f32.mxu0 0.0
    %2357 = vmatmul.mubr.f32.gmra.mxu0 %v2284
    %v2358 = vpop.f32.mrf.mxu0
    %v2359 = vadd.f32 0.0, %v2358
    %v2360 = vpop.f32.mrf.mxu0
    %2361 = vmatprep.mubr.f32.mxu0 0.0
    %2362 = vmatmul.mubr.f32.gmra.mxu0 %v2286
    %v2363 = vpop.f32.mrf.mxu0
    %v2364 = vadd.f32 0.0, %v2363
    %v2365 = vpop.f32.mrf.mxu0
    %2366 = vdwg.mxu0
    %v2367 = vmul.f32 %v2359, 0.35355338
    %v2368 = vmul.f32 %v2364, 0.35355338
    %v2369 = vsel %vm150, %v2367, -1e+30
    %v2370 = vsel %vm151, %v2368, -1e+30
    %v2371 = vsel %vm395, %v2369, -inf
    %2372 = vmax.xlane.f32.xlu0 %v2371
    %v2373 = vpop.xlane.xlu0 %2372
    %v2374 = vsel %vm395, %v2370, -inf
    %2375 = vmax.xlane.f32.xlu0 %v2374
    %v2376 = vpop.xlane.xlu0 %2375
    %v2377 = vsub.f32 %v2369, %v2373
    %v2378 = vsub.f32 %v2370, %v2376
    %v2379 = vmul.f32 %v2377, 1.442695
    %v2380 = vpow.pop %v2379
    %v2381 = vmul.f32 %v2378, 1.442695
    %v2382 = vpow.pop %v2381
    %v2383 = vsel %vm395, %v2380, 0.0
    %2384 = vadd.xlane.f32.xlu0 %v2383
    %v2385 = vpop.xlane.xlu0 %2384
    %v2386 = vsel %vm395, %v2382, 0.0
    %2387 = vadd.xlane.f32.xlu0 %v2386
    %v2388 = vpop.xlane.xlu0 %2387
    %v2389 = vrcp.pop %v2385
    %v2390 = vrcp.pop %v2388
    %v2391 = vmul.f32 %v2380, %v2389
    %v2392 = vmul.f32 %v2382, %v2390
    %2393 = vrot.lane.b32.xlu0 %v1658, 40
    %v2394 = vpop.permute.xlu0 %2393
    %2395 = vrot.lane.b32.xlu0 %v1663, 40
    %v2396 = vpop.permute.xlu0 %2395
    %v2400 = vsel %vm395, %v2391, 0
    %v2403 = vsel %vm395, %v2392, 0
    %2405 = vmatprep.subr.mxu0 0.0
    %2406 = vmatpush1.msra.mxu0 0.0
    %2407 = vmatprep.subr.mxu0 0.0
    %2408 = vmatpush1.msra.mxu0 0.0
    %2409 = vmatprep.subr.mxu0 0.0
    %2410 = vmatpush1.msra.mxu0 0.0
    %2411 = vmatprep.subr.mxu0 0.0
    %2412 = vmatpush1.msra.mxu0 0.0
    %2413 = vmatprep.subr.mxu0 0.0
    %2414 = vmatpush1.msra.mxu0 0.0
    %2415 = vmatprep.subr.mxu0 0.0
    %2416 = vmatpush1.msra.mxu0 0.0
    %2417 = vmatprep.subr.mxu0 0.0
    %2418 = vmatpush1.msra.mxu0 0.0
    %2419 = vmatprep.subr.mxu0 0.0
    %2420 = vmatpush1.msra.mxu0 0.0
    %2421 = vmatprep.subr.mxu0 0.0
    %2422 = vmatpush1.msra.mxu0 0.0
    %2423 = vmatprep.subr.mxu0 0.0
    %2424 = vmatpush1.msra.mxu0 0.0
    %2425 = vmatprep.subr.mxu0 0.0
    %2426 = vmatpush1.msra.mxu0 0.0
    %2427 = vmatprep.subr.mxu0 0.0
    %2428 = vmatpush1.msra.mxu0 0.0
    %2429 = vmatprep.subr.mxu0 0.0
    %2430 = vmatpush1.msra.mxu0 0.0
    %2431 = vmatprep.subr.mxu0 0.0
    %2432 = vmatpush1.msra.mxu0 0.0
    %2433 = vmatprep.subr.mxu0 0.0
    %2434 = vmatpush1.msra.mxu0 %v2396
    %2435 = vmatprep.subr.mxu0 0.0
    %2436 = vmatpush1.msra.mxu0 %v2394
    %2437 = vmatprep.subr.mxu0 0.0
    %2438 = vmatpush2.msra.mxu0 0.0
    %2439 = vmatprep.subr.mxu0 0.0
    %2440 = vmatpush2.msra.mxu0 0.0
    %2441 = vmatprep.subr.mxu0 0.0
    %2442 = vmatpush2.msra.mxu0 0.0
    %2443 = vmatprep.subr.mxu0 0.0
    %2444 = vmatpush2.msra.mxu0 0.0
    %2445 = vmatprep.subr.mxu0 0.0
    %2446 = vmatpush2.msra.mxu0 0.0
    %2447 = vmatprep.subr.mxu0 0.0
    %2448 = vmatpush2.msra.mxu0 0.0
    %2449 = vmatprep.subr.mxu0 0.0
    %2450 = vmatpush2.msra.mxu0 0.0
    %2451 = vmatprep.subr.mxu0 0.0
    %2452 = vmatpush2.msra.mxu0 0.0
    %2453 = vmatprep.subr.mxu0 0.0
    %2454 = vmatpush2.msra.mxu0 0.0
    %2455 = vmatprep.subr.mxu0 0.0
    %2456 = vmatpush2.msra.mxu0 0.0
    %2457 = vmatprep.subr.mxu0 0.0
    %2458 = vmatpush2.msra.mxu0 0.0
    %2459 = vmatprep.subr.mxu0 0.0
    %2460 = vmatpush2.msra.mxu0 0.0
    %2461 = vmatprep.subr.mxu0 0.0
    %2462 = vmatpush2.msra.mxu0 0.0
    %2463 = vmatprep.subr.mxu0 0.0
    %2464 = vmatpush2.msra.mxu0 0.0
    %2465 = vmatprep.subr.mxu0 0.0
    %2466 = vmatpush2.msra.mxu0 0.0
    %2467 = vmatprep.subr.mxu0 0.0
    %2468 = vmatpush2.msra.mxu0 0.0
    %2469 = vmatprep.mubr.f32.mxu0 0.0
    %2470 = vmatmul.mubr.f32.gmra.mxu0 %v2400
    %v2471 = vpop.f32.mrf.mxu0
    %v2472 = vadd.f32 0.0, %v2471
    %v2473 = vpop.f32.mrf.mxu0
    %2474 = vmatprep.mubr.f32.mxu0 0.0
    %2475 = vmatmul.mubr.f32.gmra.mxu0 %v2403
    %v2476 = vpop.f32.mrf.mxu0
    %v2477 = vadd.f32 0.0, %v2476
    %v2478 = vpop.f32.mrf.mxu0
    %2479 = vdwg.mxu0
    %2482 = vrot.lane.b32.xlu0 %v2064, 8
    %v2483 = vpop.permute.xlu0 %2482
    %2484 = vrot.lane.b32.xlu0 %v2069, 8
    %v2485 = vpop.permute.xlu0 %2484
    %2490 = vrot.lane.b32.xlu0 %v2268, 16
    %v2491 = vpop.permute.xlu0 %2490
    %2492 = vrot.lane.b32.xlu0 %v2273, 16
    %v2493 = vpop.permute.xlu0 %2492
    %2498 = vrot.lane.b32.xlu0 %v2472, 24
    %v2499 = vpop.permute.xlu0 %2498
    %2500 = vrot.lane.b32.xlu0 %v2477, 24
    %v2501 = vpop.permute.xlu0 %2500
    %v2504 = vsel %vm307, %v1860, %v2483
    %v2505 = vsel %vm307, %v1865, %v2485
    %v2506 = vsel %vm395, %v2504, %v2491
    %v2507 = vsel %vm395, %v2505, %v2493
    %v2508 = vsel %vm1145, %v2506, %v2499
    %v2509 = vsel %vm1145, %v2507, %v2501
    %2514 = vrot.lane.b32.xlu0 %v1519, 32
    %v2515 = vpop.permute.xlu0 %2514
    %2516 = vrot.lane.b32.xlu0 %v1520, 32
    %v2517 = vpop.permute.xlu0 %2516
    %2518 = vrot.lane.b32.xlu0 %v1521, 32
    %v2519 = vpop.permute.xlu0 %2518
    %2520 = vrot.lane.b32.xlu0 %v1522, 32
    %v2521 = vpop.permute.xlu0 %2520
    %v2527 = vsel %vm176, %v2508, 0
    %v2530 = vsel %vm176, %v2509, 0
    %2532 = vmatprep.subr.mxu0 0.0
    %2533 = vmatpush1.msra.mxu0 0.0
    %2534 = vmatprep.subr.mxu0 0.0
    %2535 = vmatpush1.msra.mxu0 0.0
    %2536 = vmatprep.subr.mxu0 0.0
    %2537 = vmatpush1.msra.mxu0 0.0
    %2538 = vmatprep.subr.mxu0 0.0
    %2539 = vmatpush1.msra.mxu0 0.0
    %2540 = vmatprep.subr.mxu0 0.0
    %2541 = vmatpush1.msra.mxu0 0.0
    %2542 = vmatprep.subr.mxu0 0.0
    %2543 = vmatpush1.msra.mxu0 0.0
    %2544 = vmatprep.subr.mxu0 0.0
    %2545 = vmatpush1.msra.mxu0 0.0
    %2546 = vmatprep.subr.mxu0 0.0
    %2547 = vmatpush1.msra.mxu0 0.0
    %2548 = vmatprep.subr.mxu0 0.0
    %2549 = vmatpush1.msra.mxu0 0.0
    %2550 = vmatprep.subr.mxu0 0.0
    %2551 = vmatpush1.msra.mxu0 0.0
    %2552 = vmatprep.subr.mxu0 0.0
    %2553 = vmatpush1.msra.mxu0 0.0
    %2554 = vmatprep.subr.mxu0 0.0
    %2555 = vmatpush1.msra.mxu0 0.0
    %2556 = vmatprep.subr.mxu0 0.0
    %2557 = vmatpush1.msra.mxu0 %v2521
    %2558 = vmatprep.subr.mxu0 0.0
    %2559 = vmatpush1.msra.mxu0 %v2519
    %2560 = vmatprep.subr.mxu0 0.0
    %2561 = vmatpush1.msra.mxu0 %v2517
    %2562 = vmatprep.subr.mxu0 0.0
    %2563 = vmatpush1.msra.mxu0 %v2515
    %2564 = vmatprep.subr.mxu0 0.0
    %2565 = vmatpush2.msra.mxu0 0.0
    %2566 = vmatprep.subr.mxu0 0.0
    %2567 = vmatpush2.msra.mxu0 0.0
    %2568 = vmatprep.subr.mxu0 0.0
    %2569 = vmatpush2.msra.mxu0 0.0
    %2570 = vmatprep.subr.mxu0 0.0
    %2571 = vmatpush2.msra.mxu0 0.0
    %2572 = vmatprep.subr.mxu0 0.0
    %2573 = vmatpush2.msra.mxu0 0.0
    %2574 = vmatprep.subr.mxu0 0.0
    %2575 = vmatpush2.msra.mxu0 0.0
    %2576 = vmatprep.subr.mxu0 0.0
    %2577 = vmatpush2.msra.mxu0 0.0
    %2578 = vmatprep.subr.mxu0 0.0
    %2579 = vmatpush2.msra.mxu0 0.0
    %2580 = vmatprep.subr.mxu0 0.0
    %2581 = vmatpush2.msra.mxu0 0.0
    %2582 = vmatprep.subr.mxu0 0.0
    %2583 = vmatpush2.msra.mxu0 0.0
    %2584 = vmatprep.subr.mxu0 0.0
    %2585 = vmatpush2.msra.mxu0 0.0
    %2586 = vmatprep.subr.mxu0 0.0
    %2587 = vmatpush2.msra.mxu0 0.0
    %2588 = vmatprep.subr.mxu0 0.0
    %2589 = vmatpush2.msra.mxu0 0.0
    %2590 = vmatprep.subr.mxu0 0.0
    %2591 = vmatpush2.msra.mxu0 0.0
    %2592 = vmatprep.subr.mxu0 0.0
    %2593 = vmatpush2.msra.mxu0 0.0
    %2594 = vmatprep.subr.mxu0 0.0
    %2595 = vmatpush2.msra.mxu0 0.0
    %2596 = vmatprep.mubr.f32.mxu0 0.0
    %2597 = vmatmul.mubr.f32.gmra.mxu0 %v2527
    %v2598 = vpop.f32.mrf.mxu0
    %v2599 = vadd.f32 0.0, %v2598
    %v2600 = vpop.f32.mrf.mxu0
    %2601 = vmatprep.mubr.f32.mxu0 0.0
    %2602 = vmatmul.mubr.f32.gmra.mxu0 %v2530
    %v2603 = vpop.f32.mrf.mxu0
    %v2604 = vadd.f32 0.0, %v2603
    %v2605 = vpop.f32.mrf.mxu0
    %2606 = vdwg.mxu0
    %v2607 = vadd.f32 %v1517, %v2599
    %v2608 = vadd.f32 %v1518, %v2604
    %v2609 = vlaneseq
    %v2610 = vshrl.u32 %v2609, 7
    %v2611 = vsub.s32 0, %v2610
    %v2612 = vrot.slane %v1538, %v2611
    %v2613 = vadd.f32 %v2607, %v2612
    %v2614 = vadd.f32 %v2608, %v2612
    %v2615 = vsel %vm176, %v2613, 0.0
    %2616 = vadd.xlane.f32.xlu0 %v2615
    %v2617 = vpop.xlane.xlu0 %2616
    %v2618 = vsel %vm176, %v2614, 0.0
    %2619 = vadd.xlane.f32.xlu0 %v2618
    %v2620 = vpop.xlane.xlu0 %2619
    %v2621 = vmul.f32 %v2617, %v183
    %v2622 = vmul.f32 %v2620, %v183
    %v2623 = vsub.f32 %v2613, %v2621
    %v2624 = vsub.f32 %v2614, %v2622
    %v2625 = vmul.f32 %v2623, %v2623
    %v2626 = vmul.f32 %v2624, %v2624
    %v2627 = vsel %vm176, %v2625, 0.0
    %2628 = vadd.xlane.f32.xlu0 %v2627
    %v2629 = vpop.xlane.xlu0 %2628
    %v2630 = vsel %vm176, %v2626, 0.0
    %2631 = vadd.xlane.f32.xlu0 %v2630
    %v2632 = vpop.xlane.xlu0 %2631
    %v2633 = vmul.f32 %v2629, %v183
    %v2634 = vmul.f32 %v2632, %v183
    %v2635 = vadd.f32 %v2633, 1e-12
    %v2636 = vadd.f32 %v2634, 1e-12
    %v2637 = vrsqrt.pop %v2635
    %v2638 = vrsqrt.pop %v2636
    %v2639 = vmul.f32 %v2623, %v2637
    %v2640 = vmul.f32 %v2624, %v2638
    %v2641 = vlaneseq
    %v2642 = vshrl.u32 %v2641, 7
    %v2643 = vsub.s32 0, %v2642
    %v2644 = vrot.slane %v1539, %v2643
    %v2645 = vmul.f32 %v2639, %v2644
    %v2646 = vmul.f32 %v2640, %v2644
    %v2647 = vlaneseq
    %v2648 = vshrl.u32 %v2647, 7
    %v2649 = vsub.s32 0, %v2648
    %v2650 = vrot.slane %v1540, %v2649
    %v2651 = vadd.f32 %v2645, %v2650
    %v2652 = vadd.f32 %v2646, %v2650
    %v2653 = vlaneseq
    %v2654 = vshrl.u32 %v2653, 7
    %v2655 = vsub.s32 0, %v2654
    %v2656 = vrot.slane %v1541, %v2655
    %v2658 = vsel %vm176, %v2651, 0
    %v2661 = vsel %vm176, %v2652, 0
    %2663 = vmatprep.subr.mxu0 0.0
    %2664 = vmatpush1.msra.mxu0 0.0
    %2665 = vmatprep.subr.mxu0 0.0
    %2666 = vmatpush1.msra.mxu0 0.0
    %2667 = vmatprep.subr.mxu0 0.0
    %2668 = vmatpush1.msra.mxu0 0.0
    %2669 = vmatprep.subr.mxu0 0.0
    %2670 = vmatpush1.msra.mxu0 0.0
    %2671 = vmatprep.subr.mxu0 0.0
    %2672 = vmatpush1.msra.mxu0 0.0
    %2673 = vmatprep.subr.mxu0 0.0
    %2674 = vmatpush1.msra.mxu0 0.0
    %2675 = vmatprep.subr.mxu0 0.0
    %2676 = vmatpush1.msra.mxu0 0.0
    %2677 = vmatprep.subr.mxu0 0.0
    %2678 = vmatpush1.msra.mxu0 0.0
    %2679 = vmatprep.subr.mxu0 0.0
    %2680 = vmatpush1.msra.mxu0 0.0
    %2681 = vmatprep.subr.mxu0 0.0
    %2682 = vmatpush1.msra.mxu0 0.0
    %2683 = vmatprep.subr.mxu0 0.0
    %2684 = vmatpush1.msra.mxu0 0.0
    %2685 = vmatprep.subr.mxu0 0.0
    %2686 = vmatpush1.msra.mxu0 0.0
    %2687 = vmatprep.subr.mxu0 0.0
    %2688 = vmatpush1.msra.mxu0 %v1526
    %2689 = vmatprep.subr.mxu0 0.0
    %2690 = vmatpush1.msra.mxu0 %v1525
    %2691 = vmatprep.subr.mxu0 0.0
    %2692 = vmatpush1.msra.mxu0 %v1524
    %2693 = vmatprep.subr.mxu0 0.0
    %2694 = vmatpush1.msra.mxu0 %v1523
    %2695 = vmatprep.subr.mxu0 0.0
    %2696 = vmatpush2.msra.mxu0 0.0
    %2697 = vmatprep.subr.mxu0 0.0
    %2698 = vmatpush2.msra.mxu0 0.0
    %2699 = vmatprep.subr.mxu0 0.0
    %2700 = vmatpush2.msra.mxu0 0.0
    %2701 = vmatprep.subr.mxu0 0.0
    %2702 = vmatpush2.msra.mxu0 0.0
    %2703 = vmatprep.subr.mxu0 0.0
    %2704 = vmatpush2.msra.mxu0 0.0
    %2705 = vmatprep.subr.mxu0 0.0
    %2706 = vmatpush2.msra.mxu0 0.0
    %2707 = vmatprep.subr.mxu0 0.0
    %2708 = vmatpush2.msra.mxu0 0.0
    %2709 = vmatprep.subr.mxu0 0.0
    %2710 = vmatpush2.msra.mxu0 0.0
    %2711 = vmatprep.subr.mxu0 0.0
    %2712 = vmatpush2.msra.mxu0 0.0
    %2713 = vmatprep.subr.mxu0 0.0
    %2714 = vmatpush2.msra.mxu0 0.0
    %2715 = vmatprep.subr.mxu0 0.0
    %2716 = vmatpush2.msra.mxu0 0.0
    %2717 = vmatprep.subr.mxu0 0.0
    %2718 = vmatpush2.msra.mxu0 0.0
    %2719 = vmatprep.subr.mxu0 0.0
    %2720 = vmatpush2.msra.mxu0 0.0
    %2721 = vmatprep.subr.mxu0 0.0
    %2722 = vmatpush2.msra.mxu0 0.0
    %2723 = vmatprep.subr.mxu0 0.0
    %2724 = vmatpush2.msra.mxu0 0.0
    %2725 = vmatprep.subr.mxu0 0.0
    %2726 = vmatpush2.msra.mxu0 0.0
    %2727 = vmatprep.mubr.f32.mxu0 0.0
    %2728 = vmatmul.mubr.f32.gmra.mxu0 %v2658
    %v2729 = vpop.f32.mrf.mxu0
    %v2730 = vadd.f32 %v2656, %v2729
    %v2731 = vpop.f32.mrf.mxu0
    %2732 = vmatprep.mubr.f32.mxu0 0.0
    %2733 = vmatmul.mubr.f32.gmra.mxu0 %v2661
    %v2734 = vpop.f32.mrf.mxu0
    %v2735 = vadd.f32 %v2656, %v2734
    %v2736 = vpop.f32.mrf.mxu0
    %2737 = vdwg.mxu0
    %v2738 = vmul.f32 %v2730, 0.5
    %v2739 = vmul.f32 %v2735, 0.5
    %v2740 = vmul.f32 %v2730, 0.70710677
    %v2741 = vmul.f32 %v2735, 0.70710677
    %v2742 = vand.u32 2147483647, %v2740
    %v2743 = vand.u32 2147483647, %v2741
    %v2744 = vmul.f32 %v2742, 0.3275911
    %v2745 = vmul.f32 %v2743, 0.3275911
    %v2746 = vadd.f32 %v2744, 1.0
    %v2747 = vadd.f32 %v2745, 1.0
    %v2748 = vrcp.pop %v2746
    %v2749 = vmul.f32 1.0, %v2748
    %v2750 = vrcp.pop %v2747
    %v2751 = vmul.f32 1.0, %v2750
    %v2752 = vmul.f32 %v2749, 1.0614054
    %v2753 = vmul.f32 %v2751, 1.0614054
    %v2754 = vadd.f32 %v2752, -1.4531521
    %v2755 = vadd.f32 %v2753, -1.4531521
    %v2756 = vmul.f32 %v2754, %v2749
    %v2757 = vmul.f32 %v2755, %v2751
    %v2758 = vadd.f32 %v2756, 1.4214138
    %v2759 = vadd.f32 %v2757, 1.4214138
    %v2760 = vmul.f32 %v2758, %v2749
    %v2761 = vmul.f32 %v2759, %v2751
    %v2762 = vadd.f32 %v2760, -0.28449672
    %v2763 = vadd.f32 %v2761, -0.28449672
    %v2764 = vmul.f32 %v2762, %v2749
    %v2765 = vmul.f32 %v2763, %v2751
    %v2766 = vadd.f32 %v2764, 0.2548296
    %v2767 = vadd.f32 %v2765, 0.2548296
    %v2768 = vmul.f32 %v2766, %v2749
    %v2769 = vmul.f32 %v2767, %v2751
    %v2770 = vsub.f32 0.0, %v2742
    %v2771 = vsub.f32 0.0, %v2743
    %v2772 = vmul.f32 %v2770, %v2742
    %v2773 = vmul.f32 %v2771, %v2743
    %v2774 = vmul.f32 %v2772, 1.442695
    %v2775 = vpow.pop %v2774
    %v2776 = vmul.f32 %v2773, 1.442695
    %v2777 = vpow.pop %v2776
    %v2778 = vmul.f32 %v2768, %v2775
    %v2779 = vmul.f32 %v2769, %v2777
    %v2780 = vsub.f32 1.0, %v2778
    %v2781 = vsub.f32 1.0, %v2779
    %vm2782 = vcmp.lt.f32.partialorder %v2740, 0.0
    %vm2783 = vcmp.lt.f32.partialorder %v2741, 0.0
    %v2784 = vsub.f32 0.0, %v2780
    %v2785 = vsub.f32 0.0, %v2781
    %v2786 = vsel %vm2782, %v2784, %v2780
    %v2787 = vsel %vm2783, %v2785, %v2781
    %v2788 = vadd.f32 %v2786, 1.0
    %v2789 = vadd.f32 %v2787, 1.0
    %v2790 = vmul.f32 %v2738, %v2788
    %v2791 = vmul.f32 %v2739, %v2789
    %v2793 = vsel %vm57, %v2790, 0
    %v2796 = vsel %vm57, %v2791, 0
    %2798 = vmatprep.subr.mxu0 0.0
    %2799 = vmatpush1.msra.mxu0 0.0
    %2800 = vmatprep.subr.mxu0 0.0
    %2801 = vmatpush1.msra.mxu0 0.0
    %2802 = vmatprep.subr.mxu0 0.0
    %2803 = vmatpush1.msra.mxu0 0.0
    %2804 = vmatprep.subr.mxu0 0.0
    %2805 = vmatpush1.msra.mxu0 0.0
    %2806 = vmatprep.subr.mxu0 0.0
    %2807 = vmatpush1.msra.mxu0 0.0
    %2808 = vmatprep.subr.mxu0 0.0
    %2809 = vmatpush1.msra.mxu0 0.0
    %2810 = vmatprep.subr.mxu0 0.0
    %2811 = vmatpush1.msra.mxu0 0.0
    %2812 = vmatprep.subr.mxu0 0.0
    %2813 = vmatpush1.msra.mxu0 0.0
    %2814 = vmatprep.subr.mxu0 0.0
    %2815 = vmatpush1.msra.mxu0 %v1534
    %2816 = vmatprep.subr.mxu0 0.0
    %2817 = vmatpush1.msra.mxu0 %v1533
    %2818 = vmatprep.subr.mxu0 0.0
    %2819 = vmatpush1.msra.mxu0 %v1532
    %2820 = vmatprep.subr.mxu0 0.0
    %2821 = vmatpush1.msra.mxu0 %v1531
    %2822 = vmatprep.subr.mxu0 0.0
    %2823 = vmatpush1.msra.mxu0 %v1530
    %2824 = vmatprep.subr.mxu0 0.0
    %2825 = vmatpush1.msra.mxu0 %v1529
    %2826 = vmatprep.subr.mxu0 0.0
    %2827 = vmatpush1.msra.mxu0 %v1528
    %2828 = vmatprep.subr.mxu0 0.0
    %2829 = vmatpush1.msra.mxu0 %v1527
    %2830 = vmatprep.subr.mxu0 0.0
    %2831 = vmatpush2.msra.mxu0 0.0
    %2832 = vmatprep.subr.mxu0 0.0
    %2833 = vmatpush2.msra.mxu0 0.0
    %2834 = vmatprep.subr.mxu0 0.0
    %2835 = vmatpush2.msra.mxu0 0.0
    %2836 = vmatprep.subr.mxu0 0.0
    %2837 = vmatpush2.msra.mxu0 0.0
    %2838 = vmatprep.subr.mxu0 0.0
    %2839 = vmatpush2.msra.mxu0 0.0
    %2840 = vmatprep.subr.mxu0 0.0
    %2841 = vmatpush2.msra.mxu0 0.0
    %2842 = vmatprep.subr.mxu0 0.0
    %2843 = vmatpush2.msra.mxu0 0.0
    %2844 = vmatprep.subr.mxu0 0.0
    %2845 = vmatpush2.msra.mxu0 0.0
    %2846 = vmatprep.subr.mxu0 0.0
    %2847 = vmatpush2.msra.mxu0 0.0
    %2848 = vmatprep.subr.mxu0 0.0
    %2849 = vmatpush2.msra.mxu0 0.0
    %2850 = vmatprep.subr.mxu0 0.0
    %2851 = vmatpush2.msra.mxu0 0.0
    %2852 = vmatprep.subr.mxu0 0.0
    %2853 = vmatpush2.msra.mxu0 0.0
    %2854 = vmatprep.subr.mxu0 0.0
    %2855 = vmatpush2.msra.mxu0 0.0
    %2856 = vmatprep.subr.mxu0 0.0
    %2857 = vmatpush2.msra.mxu0 0.0
    %2858 = vmatprep.subr.mxu0 0.0
    %2859 = vmatpush2.msra.mxu0 0.0
    %2860 = vmatprep.subr.mxu0 0.0
    %2861 = vmatpush2.msra.mxu0 0.0
    %2862 = vmatprep.mubr.f32.mxu0 0.0
    %2863 = vmatmul.mubr.f32.gmra.mxu0 %v2793
    %v2864 = vpop.f32.mrf.mxu0
    %v2865 = vadd.f32 0.0, %v2864
    %v2866 = vpop.f32.mrf.mxu0
    %2867 = vmatprep.mubr.f32.mxu0 0.0
    %2868 = vmatmul.mubr.f32.gmra.mxu0 %v2796
    %v2869 = vpop.f32.mrf.mxu0
    %v2870 = vadd.f32 0.0, %v2869
    %v2871 = vpop.f32.mrf.mxu0
    %2872 = vdwg.mxu0
    %v2873 = vadd.f32 %v2613, %v2865
    %v2874 = vadd.f32 %v2614, %v2870
    %v2875 = vlaneseq
    %v2876 = vshrl.u32 %v2875, 7
    %v2877 = vsub.s32 0, %v2876
    %v2878 = vrot.slane %v1542, %v2877
    %v2879 = vadd.f32 %v2873, %v2878
    %v2880 = vadd.f32 %v2874, %v2878
    %v2881 = vld [vmem:[%s5 + $0x10] sm:$0x1]
    %v2882 = vld [vmem:[%s5 + $0x11] sm:$0x1]
    %v2883 = vsel %vm176, %v2879, 0.0
    %2884 = vadd.xlane.f32.xlu0 %v2883
    %v2885 = vpop.xlane.xlu0 %2884
    %v2886 = vsel %vm176, %v2880, 0.0
    %2887 = vadd.xlane.f32.xlu0 %v2886
    %v2888 = vpop.xlane.xlu0 %2887
    %v2889 = vmul.f32 %v2885, %v183
    %v2890 = vmul.f32 %v2888, %v183
    %v2891 = vsub.f32 %v2879, %v2889
    %v2892 = vsub.f32 %v2880, %v2890
    %v2893 = vmul.f32 %v2891, %v2891
    %v2894 = vmul.f32 %v2892, %v2892
    %v2895 = vsel %vm176, %v2893, 0.0
    %2896 = vadd.xlane.f32.xlu0 %v2895
    %v2897 = vpop.xlane.xlu0 %2896
    %v2898 = vsel %vm176, %v2894, 0.0
    %2899 = vadd.xlane.f32.xlu0 %v2898
    %v2900 = vpop.xlane.xlu0 %2899
    %v2901 = vmul.f32 %v2897, %v183
    %v2902 = vmul.f32 %v2900, %v183
    %v2903 = vadd.f32 %v2901, 1e-12
    %v2904 = vadd.f32 %v2902, 1e-12
    %v2905 = vrsqrt.pop %v2903
    %v2906 = vrsqrt.pop %v2904
    %v2907 = vmul.f32 %v2891, %v2905
    %v2908 = vmul.f32 %v2892, %v2906
    %v2909 = vlaneseq
    %v2910 = vshrl.u32 %v2909, 7
    %v2911 = vsub.s32 0, %v2910
    %v2912 = vrot.slane %v2881, %v2911
    %v2913 = vmul.f32 %v2907, %v2912
    %v2914 = vmul.f32 %v2908, %v2912
    %v2915 = vlaneseq
    %v2916 = vshrl.u32 %v2915, 7
    %v2917 = vsub.s32 0, %v2916
    %v2918 = vrot.slane %v2882, %v2917
    %v2919 = vadd.f32 %v2913, %v2918
    %v2920 = vadd.f32 %v2914, %v2918
    %v2921 = vand.u32 %v140, 7
    %v2922 = vand.u32 %v141, 7
    %vm2923 = vcmp.lt.s32.totalorder %v2921, 5
    %vm2924 = vcmp.lt.s32.totalorder %v2922, 5
    %v2925 = vsel %vm2923, 1, 0
    %v2926 = vsel %vm2924, 1, 0
    %v2927 = vcvt.s32.f32 %v2925
    %v2928 = vcvt.s32.f32 %v2926
    %v2929 = vmul.f32 %v2919, %v2927
    %v2930 = vmul.f32 %v2920, %v2928
    %v2931 = vld [vmem:[%s6] sm:$0xff]
    %v2932 = vld [vmem:[%s6 + $0x8] sm:$0xff]
    %v2933 = vld [vmem:[%s6 + $0x10] sm:$0xff]
    %v2934 = vld [vmem:[%s6 + $0x18] sm:$0xff]
    %v2935 = vld [vmem:[%s6 + $0x20] sm:$0xff]
    %v2936 = vld [vmem:[%s6 + $0x28] sm:$0xff]
    %v2937 = vld [vmem:[%s6 + $0x30] sm:$0xff]
    %v2938 = vld [vmem:[%s6 + $0x38] sm:$0xff]
    %v2939 = vld [vmem:[%s6 + $0x40] sm:$0xff]
    %v2940 = vld [vmem:[%s6 + $0x48] sm:$0xff]
    %v2941 = vld [vmem:[%s6 + $0x50] sm:$0xff]
    %v2942 = vld [vmem:[%s6 + $0x58] sm:$0xff]
    %v2943 = vld [vmem:[%s5 + $0x12] sm:$0x1]
    %vm2946 = vcmask 1040384
    %v2947 = vrot.slane %v2929, 7
    %v2948 = vrot.slane %v2930, 7
    %v2949 = vsel %vm2946, %v2947, %v2948
    %v2951 = vsel %vm2946, 0.0, %v2947
    %vm2952 = vcmask 1046528
    %v2953 = vrot.slane %v2929, 1
    %v2954 = vrot.slane %v2930, 1
    %v2955 = vsel %vm2952, %v2953, %v2954
    %v2957 = vsel %vm2952, %v2954, 0.0
    %v2958 = vsel %vm176, %v2929, 0
    %v2960 = vsel %vm176, %v2930, 0
    %2962 = vmatprep.subr.mxu0 0.0
    %2963 = vmatpush1.msra.mxu0 0.0
    %2964 = vmatprep.subr.mxu0 0.0
    %2965 = vmatpush1.msra.mxu0 0.0
    %2966 = vmatprep.subr.mxu0 0.0
    %2967 = vmatpush1.msra.mxu0 0.0
    %2968 = vmatprep.subr.mxu0 0.0
    %2969 = vmatpush1.msra.mxu0 0.0
    %2970 = vmatprep.subr.mxu0 0.0
    %2971 = vmatpush1.msra.mxu0 0.0
    %2972 = vmatprep.subr.mxu0 0.0
    %2973 = vmatpush1.msra.mxu0 0.0
    %2974 = vmatprep.subr.mxu0 0.0
    %2975 = vmatpush1.msra.mxu0 0.0
    %2976 = vmatprep.subr.mxu0 0.0
    %2977 = vmatpush1.msra.mxu0 0.0
    %2978 = vmatprep.subr.mxu0 0.0
    %2979 = vmatpush1.msra.mxu0 0.0
    %2980 = vmatprep.subr.mxu0 0.0
    %2981 = vmatpush1.msra.mxu0 0.0
    %2982 = vmatprep.subr.mxu0 0.0
    %2983 = vmatpush1.msra.mxu0 0.0
    %2984 = vmatprep.subr.mxu0 0.0
    %2985 = vmatpush1.msra.mxu0 0.0
    %2986 = vmatprep.subr.mxu0 0.0
    %2987 = vmatpush1.msra.mxu0 %v2938
    %2988 = vmatprep.subr.mxu0 0.0
    %2989 = vmatpush1.msra.mxu0 %v2937
    %2990 = vmatprep.subr.mxu0 0.0
    %2991 = vmatpush1.msra.mxu0 %v2936
    %2992 = vmatprep.subr.mxu0 0.0
    %2993 = vmatpush1.msra.mxu0 %v2935
    %2994 = vmatprep.subr.mxu0 0.0
    %2995 = vmatpush2.msra.mxu0 0.0
    %2996 = vmatprep.subr.mxu0 0.0
    %2997 = vmatpush2.msra.mxu0 0.0
    %2998 = vmatprep.subr.mxu0 0.0
    %2999 = vmatpush2.msra.mxu0 0.0
    %3000 = vmatprep.subr.mxu0 0.0
    %3001 = vmatpush2.msra.mxu0 0.0
    %3002 = vmatprep.subr.mxu0 0.0
    %3003 = vmatpush2.msra.mxu0 0.0
    %3004 = vmatprep.subr.mxu0 0.0
    %3005 = vmatpush2.msra.mxu0 0.0
    %3006 = vmatprep.subr.mxu0 0.0
    %3007 = vmatpush2.msra.mxu0 0.0
    %3008 = vmatprep.subr.mxu0 0.0
    %3009 = vmatpush2.msra.mxu0 0.0
    %3010 = vmatprep.subr.mxu0 0.0
    %3011 = vmatpush2.msra.mxu0 0.0
    %3012 = vmatprep.subr.mxu0 0.0
    %3013 = vmatpush2.msra.mxu0 0.0
    %3014 = vmatprep.subr.mxu0 0.0
    %3015 = vmatpush2.msra.mxu0 0.0
    %3016 = vmatprep.subr.mxu0 0.0
    %3017 = vmatpush2.msra.mxu0 0.0
    %3018 = vmatprep.subr.mxu0 0.0
    %3019 = vmatpush2.msra.mxu0 0.0
    %3020 = vmatprep.subr.mxu0 0.0
    %3021 = vmatpush2.msra.mxu0 0.0
    %3022 = vmatprep.subr.mxu0 0.0
    %3023 = vmatpush2.msra.mxu0 0.0
    %3024 = vmatprep.subr.mxu0 0.0
    %3025 = vmatpush2.msra.mxu0 0.0
    %3026 = vmatprep.mubr.f32.mxu0 0.0
    %3027 = vmatmul.mubr.f32.gmra.mxu0 %v2958
    %v3028 = vpop.f32.mrf.mxu0
    %v3029 = vadd.f32 0.0, %v3028
    %v3030 = vpop.f32.mrf.mxu0
    %3031 = vmatprep.mubr.f32.mxu0 0.0
    %3032 = vmatmul.mubr.f32.gmra.mxu0 %v2960
    %v3033 = vpop.f32.mrf.mxu0
    %v3034 = vadd.f32 0.0, %v3033
    %v3035 = vpop.f32.mrf.mxu0
    %3036 = vdwg.mxu0
    %v3038 = vsel %vm176, %v2951, 0
    %v3040 = vsel %vm176, %v2949, 0
    %3042 = vmatprep.subr.mxu0 0.0
    %3043 = vmatpush1.msra.mxu0 0.0
    %3044 = vmatprep.subr.mxu0 0.0
    %3045 = vmatpush1.msra.mxu0 0.0
    %3046 = vmatprep.subr.mxu0 0.0
    %3047 = vmatpush1.msra.mxu0 0.0
    %3048 = vmatprep.subr.mxu0 0.0
    %3049 = vmatpush1.msra.mxu0 0.0
    %3050 = vmatprep.subr.mxu0 0.0
    %3051 = vmatpush1.msra.mxu0 0.0
    %3052 = vmatprep.subr.mxu0 0.0
    %3053 = vmatpush1.msra.mxu0 0.0
    %3054 = vmatprep.subr.mxu0 0.0
    %3055 = vmatpush1.msra.mxu0 0.0
    %3056 = vmatprep.subr.mxu0 0.0
    %3057 = vmatpush1.msra.mxu0 0.0
    %3058 = vmatprep.subr.mxu0 0.0
    %3059 = vmatpush1.msra.mxu0 0.0
    %3060 = vmatprep.subr.mxu0 0.0
    %3061 = vmatpush1.msra.mxu0 0.0
    %3062 = vmatprep.subr.mxu0 0.0
    %3063 = vmatpush1.msra.mxu0 0.0
    %3064 = vmatprep.subr.mxu0 0.0
    %3065 = vmatpush1.msra.mxu0 0.0
    %3066 = vmatprep.subr.mxu0 0.0
    %3067 = vmatpush1.msra.mxu0 %v2934
    %3068 = vmatprep.subr.mxu0 0.0
    %3069 = vmatpush1.msra.mxu0 %v2933
    %3070 = vmatprep.subr.mxu0 0.0
    %3071 = vmatpush1.msra.mxu0 %v2932
    %3072 = vmatprep.subr.mxu0 0.0
    %3073 = vmatpush1.msra.mxu0 %v2931
    %3074 = vmatprep.subr.mxu0 0.0
    %3075 = vmatpush2.msra.mxu0 0.0
    %3076 = vmatprep.subr.mxu0 0.0
    %3077 = vmatpush2.msra.mxu0 0.0
    %3078 = vmatprep.subr.mxu0 0.0
    %3079 = vmatpush2.msra.mxu0 0.0
    %3080 = vmatprep.subr.mxu0 0.0
    %3081 = vmatpush2.msra.mxu0 0.0
    %3082 = vmatprep.subr.mxu0 0.0
    %3083 = vmatpush2.msra.mxu0 0.0
    %3084 = vmatprep.subr.mxu0 0.0
    %3085 = vmatpush2.msra.mxu0 0.0
    %3086 = vmatprep.subr.mxu0 0.0
    %3087 = vmatpush2.msra.mxu0 0.0
    %3088 = vmatprep.subr.mxu0 0.0
    %3089 = vmatpush2.msra.mxu0 0.0
    %3090 = vmatprep.subr.mxu0 0.0
    %3091 = vmatpush2.msra.mxu0 0.0
    %3092 = vmatprep.subr.mxu0 0.0
    %3093 = vmatpush2.msra.mxu0 0.0
    %3094 = vmatprep.subr.mxu0 0.0
    %3095 = vmatpush2.msra.mxu0 0.0
    %3096 = vmatprep.subr.mxu0 0.0
    %3097 = vmatpush2.msra.mxu0 0.0
    %3098 = vmatprep.subr.mxu0 0.0
    %3099 = vmatpush2.msra.mxu0 0.0
    %3100 = vmatprep.subr.mxu0 0.0
    %3101 = vmatpush2.msra.mxu0 0.0
    %3102 = vmatprep.subr.mxu0 0.0
    %3103 = vmatpush2.msra.mxu0 0.0
    %3104 = vmatprep.subr.mxu0 0.0
    %3105 = vmatpush2.msra.mxu0 0.0
    %3106 = vmatprep.mubr.f32.mxu0 0.0
    %3107 = vmatmul.mubr.f32.gmra.mxu0 %v3038
    %v3108 = vpop.f32.mrf.mxu0
    %v3109 = vadd.f32 %v3029, %v3108
    %v3110 = vpop.f32.mrf.mxu0
    %3111 = vmatprep.mubr.f32.mxu0 0.0
    %3112 = vmatmul.mubr.f32.gmra.mxu0 %v3040
    %v3113 = vpop.f32.mrf.mxu0
    %v3114 = vadd.f32 %v3034, %v3113
    %v3115 = vpop.f32.mrf.mxu0
    %3116 = vdwg.mxu0
    %v3117 = vsel %vm176, %v2955, 0
    %v3120 = vsel %vm176, %v2957, 0
    %3122 = vmatprep.subr.mxu0 0.0
    %3123 = vmatpush1.msra.mxu0 0.0
    %3124 = vmatprep.subr.mxu0 0.0
    %3125 = vmatpush1.msra.mxu0 0.0
    %3126 = vmatprep.subr.mxu0 0.0
    %3127 = vmatpush1.msra.mxu0 0.0
    %3128 = vmatprep.subr.mxu0 0.0
    %3129 = vmatpush1.msra.mxu0 0.0
    %3130 = vmatprep.subr.mxu0 0.0
    %3131 = vmatpush1.msra.mxu0 0.0
    %3132 = vmatprep.subr.mxu0 0.0
    %3133 = vmatpush1.msra.mxu0 0.0
    %3134 = vmatprep.subr.mxu0 0.0
    %3135 = vmatpush1.msra.mxu0 0.0
    %3136 = vmatprep.subr.mxu0 0.0
    %3137 = vmatpush1.msra.mxu0 0.0
    %3138 = vmatprep.subr.mxu0 0.0
    %3139 = vmatpush1.msra.mxu0 0.0
    %3140 = vmatprep.subr.mxu0 0.0
    %3141 = vmatpush1.msra.mxu0 0.0
    %3142 = vmatprep.subr.mxu0 0.0
    %3143 = vmatpush1.msra.mxu0 0.0
    %3144 = vmatprep.subr.mxu0 0.0
    %3145 = vmatpush1.msra.mxu0 0.0
    %3146 = vmatprep.subr.mxu0 0.0
    %3147 = vmatpush1.msra.mxu0 %v2942
    %3148 = vmatprep.subr.mxu0 0.0
    %3149 = vmatpush1.msra.mxu0 %v2941
    %3150 = vmatprep.subr.mxu0 0.0
    %3151 = vmatpush1.msra.mxu0 %v2940
    %3152 = vmatprep.subr.mxu0 0.0
    %3153 = vmatpush1.msra.mxu0 %v2939
    %3154 = vmatprep.subr.mxu0 0.0
    %3155 = vmatpush2.msra.mxu0 0.0
    %3156 = vmatprep.subr.mxu0 0.0
    %3157 = vmatpush2.msra.mxu0 0.0
    %3158 = vmatprep.subr.mxu0 0.0
    %3159 = vmatpush2.msra.mxu0 0.0
    %3160 = vmatprep.subr.mxu0 0.0
    %3161 = vmatpush2.msra.mxu0 0.0
    %3162 = vmatprep.subr.mxu0 0.0
    %3163 = vmatpush2.msra.mxu0 0.0
    %3164 = vmatprep.subr.mxu0 0.0
    %3165 = vmatpush2.msra.mxu0 0.0
    %3166 = vmatprep.subr.mxu0 0.0
    %3167 = vmatpush2.msra.mxu0 0.0
    %3168 = vmatprep.subr.mxu0 0.0
    %3169 = vmatpush2.msra.mxu0 0.0
    %3170 = vmatprep.subr.mxu0 0.0
    %3171 = vmatpush2.msra.mxu0 0.0
    %3172 = vmatprep.subr.mxu0 0.0
    %3173 = vmatpush2.msra.mxu0 0.0
    %3174 = vmatprep.subr.mxu0 0.0
    %3175 = vmatpush2.msra.mxu0 0.0
    %3176 = vmatprep.subr.mxu0 0.0
    %3177 = vmatpush2.msra.mxu0 0.0
    %3178 = vmatprep.subr.mxu0 0.0
    %3179 = vmatpush2.msra.mxu0 0.0
    %3180 = vmatprep.subr.mxu0 0.0
    %3181 = vmatpush2.msra.mxu0 0.0
    %3182 = vmatprep.subr.mxu0 0.0
    %3183 = vmatpush2.msra.mxu0 0.0
    %3184 = vmatprep.subr.mxu0 0.0
    %3185 = vmatpush2.msra.mxu0 0.0
    %3186 = vmatprep.mubr.f32.mxu0 0.0
    %3187 = vmatmul.mubr.f32.gmra.mxu0 %v3117
    %v3188 = vpop.f32.mrf.mxu0
    %v3189 = vadd.f32 0.0, %v3188
    %v3190 = vpop.f32.mrf.mxu0
    %3191 = vmatprep.mubr.f32.mxu0 0.0
    %3192 = vmatmul.mubr.f32.gmra.mxu0 %v3120
    %v3193 = vpop.f32.mrf.mxu0
    %v3194 = vadd.f32 0.0, %v3193
    %v3195 = vpop.f32.mrf.mxu0
    %3196 = vdwg.mxu0
    %v3197 = vadd.f32 %v3109, %v3189
    %v3198 = vadd.f32 %v3114, %v3194
    %v3199 = vlaneseq
    %v3200 = vshrl.u32 %v3199, 7
    %v3201 = vsub.s32 0, %v3200
    %v3202 = vrot.slane %v2943, %v3201
    %v3203 = vadd.f32 %v3197, %v3202
    %v3204 = vadd.f32 %v3198, %v3202
    %v3205 = vmax.f32 %v3203, 0.0
    %v3206 = vmax.f32 %v3204, 0.0
    %v3207 = vmul.f32 %v3205, %v2927
    %v3208 = vmul.f32 %v3206, %v2928
    %v3209 = vld [vmem:[%s6 + $0x60] sm:$0xff]
    %v3210 = vld [vmem:[%s6 + $0x68] sm:$0xff]
    %v3211 = vld [vmem:[%s6 + $0x70] sm:$0xff]
    %v3212 = vld [vmem:[%s6 + $0x78] sm:$0xff]
    %v3213 = vld [vmem:[%s6 + $0x80] sm:$0xff]
    %v3214 = vld [vmem:[%s6 + $0x88] sm:$0xff]
    %v3215 = vld [vmem:[%s5 + $0x13] sm:$0x1]
    %v3218 = vrot.slane %v3207, 7
    %v3219 = vrot.slane %v3208, 7
    %v3220 = vsel %vm2946, %v3218, %v3219
    %v3222 = vsel %vm2946, 0.0, %v3218
    %v3223 = vrot.slane %v3207, 1
    %v3224 = vrot.slane %v3208, 1
    %v3225 = vsel %vm2952, %v3223, %v3224
    %v3227 = vsel %vm2952, %v3224, 0.0
    %v3228 = vsel %vm395, %v3207, 0
    %v3230 = vsel %vm395, %v3208, 0
    %3232 = vmatprep.subr.mxu0 0.0
    %3233 = vmatpush1.msra.mxu0 0.0
    %3234 = vmatprep.subr.mxu0 0.0
    %3235 = vmatpush1.msra.mxu0 0.0
    %3236 = vmatprep.subr.mxu0 0.0
    %3237 = vmatpush1.msra.mxu0 0.0
    %3238 = vmatprep.subr.mxu0 0.0
    %3239 = vmatpush1.msra.mxu0 0.0
    %3240 = vmatprep.subr.mxu0 0.0
    %3241 = vmatpush1.msra.mxu0 0.0
    %3242 = vmatprep.subr.mxu0 0.0
    %3243 = vmatpush1.msra.mxu0 0.0
    %3244 = vmatprep.subr.mxu0 0.0
    %3245 = vmatpush1.msra.mxu0 0.0
    %3246 = vmatprep.subr.mxu0 0.0
    %3247 = vmatpush1.msra.mxu0 0.0
    %3248 = vmatprep.subr.mxu0 0.0
    %3249 = vmatpush1.msra.mxu0 0.0
    %3250 = vmatprep.subr.mxu0 0.0
    %3251 = vmatpush1.msra.mxu0 0.0
    %3252 = vmatprep.subr.mxu0 0.0
    %3253 = vmatpush1.msra.mxu0 0.0
    %3254 = vmatprep.subr.mxu0 0.0
    %3255 = vmatpush1.msra.mxu0 0.0
    %3256 = vmatprep.subr.mxu0 0.0
    %3257 = vmatpush1.msra.mxu0 0.0
    %3258 = vmatprep.subr.mxu0 0.0
    %3259 = vmatpush1.msra.mxu0 0.0
    %3260 = vmatprep.subr.mxu0 0.0
    %3261 = vmatpush1.msra.mxu0 %v3212
    %3262 = vmatprep.subr.mxu0 0.0
    %3263 = vmatpush1.msra.mxu0 %v3211
    %3264 = vmatprep.subr.mxu0 0.0
    %3265 = vmatpush2.msra.mxu0 0.0
    %3266 = vmatprep.subr.mxu0 0.0
    %3267 = vmatpush2.msra.mxu0 0.0
    %3268 = vmatprep.subr.mxu0 0.0
    %3269 = vmatpush2.msra.mxu0 0.0
    %3270 = vmatprep.subr.mxu0 0.0
    %3271 = vmatpush2.msra.mxu0 0.0
    %3272 = vmatprep.subr.mxu0 0.0
    %3273 = vmatpush2.msra.mxu0 0.0
    %3274 = vmatprep.subr.mxu0 0.0
    %3275 = vmatpush2.msra.mxu0 0.0
    %3276 = vmatprep.subr.mxu0 0.0
    %3277 = vmatpush2.msra.mxu0 0.0
    %3278 = vmatprep.subr.mxu0 0.0
    %3279 = vmatpush2.msra.mxu0 0.0
    %3280 = vmatprep.subr.mxu0 0.0
    %3281 = vmatpush2.msra.mxu0 0.0
    %3282 = vmatprep.subr.mxu0 0.0
    %3283 = vmatpush2.msra.mxu0 0.0
    %3284 = vmatprep.subr.mxu0 0.0
    %3285 = vmatpush2.msra.mxu0 0.0
    %3286 = vmatprep.subr.mxu0 0.0
    %3287 = vmatpush2.msra.mxu0 0.0
    %3288 = vmatprep.subr.mxu0 0.0
    %3289 = vmatpush2.msra.mxu0 0.0
    %3290 = vmatprep.subr.mxu0 0.0
    %3291 = vmatpush2.msra.mxu0 0.0
    %3292 = vmatprep.subr.mxu0 0.0
    %3293 = vmatpush2.msra.mxu0 0.0
    %3294 = vmatprep.subr.mxu0 0.0
    %3295 = vmatpush2.msra.mxu0 0.0
    %3296 = vmatprep.mubr.f32.mxu0 0.0
    %3297 = vmatmul.mubr.f32.gmra.mxu0 %v3228
    %v3298 = vpop.f32.mrf.mxu0
    %v3299 = vadd.f32 0.0, %v3298
    %v3300 = vpop.f32.mrf.mxu0
    %3301 = vmatprep.mubr.f32.mxu0 0.0
    %3302 = vmatmul.mubr.f32.gmra.mxu0 %v3230
    %v3303 = vpop.f32.mrf.mxu0
    %v3304 = vadd.f32 0.0, %v3303
    %v3305 = vpop.f32.mrf.mxu0
    %3306 = vdwg.mxu0
    %v3308 = vsel %vm395, %v3222, 0
    %v3310 = vsel %vm395, %v3220, 0
    %3312 = vmatprep.subr.mxu0 0.0
    %3313 = vmatpush1.msra.mxu0 0.0
    %3314 = vmatprep.subr.mxu0 0.0
    %3315 = vmatpush1.msra.mxu0 0.0
    %3316 = vmatprep.subr.mxu0 0.0
    %3317 = vmatpush1.msra.mxu0 0.0
    %3318 = vmatprep.subr.mxu0 0.0
    %3319 = vmatpush1.msra.mxu0 0.0
    %3320 = vmatprep.subr.mxu0 0.0
    %3321 = vmatpush1.msra.mxu0 0.0
    %3322 = vmatprep.subr.mxu0 0.0
    %3323 = vmatpush1.msra.mxu0 0.0
    %3324 = vmatprep.subr.mxu0 0.0
    %3325 = vmatpush1.msra.mxu0 0.0
    %3326 = vmatprep.subr.mxu0 0.0
    %3327 = vmatpush1.msra.mxu0 0.0
    %3328 = vmatprep.subr.mxu0 0.0
    %3329 = vmatpush1.msra.mxu0 0.0
    %3330 = vmatprep.subr.mxu0 0.0
    %3331 = vmatpush1.msra.mxu0 0.0
    %3332 = vmatprep.subr.mxu0 0.0
    %3333 = vmatpush1.msra.mxu0 0.0
    %3334 = vmatprep.subr.mxu0 0.0
    %3335 = vmatpush1.msra.mxu0 0.0
    %3336 = vmatprep.subr.mxu0 0.0
    %3337 = vmatpush1.msra.mxu0 0.0
    %3338 = vmatprep.subr.mxu0 0.0
    %3339 = vmatpush1.msra.mxu0 0.0
    %3340 = vmatprep.subr.mxu0 0.0
    %3341 = vmatpush1.msra.mxu0 %v3210
    %3342 = vmatprep.subr.mxu0 0.0
    %3343 = vmatpush1.msra.mxu0 %v3209
    %3344 = vmatprep.subr.mxu0 0.0
    %3345 = vmatpush2.msra.mxu0 0.0
    %3346 = vmatprep.subr.mxu0 0.0
    %3347 = vmatpush2.msra.mxu0 0.0
    %3348 = vmatprep.subr.mxu0 0.0
    %3349 = vmatpush2.msra.mxu0 0.0
    %3350 = vmatprep.subr.mxu0 0.0
    %3351 = vmatpush2.msra.mxu0 0.0
    %3352 = vmatprep.subr.mxu0 0.0
    %3353 = vmatpush2.msra.mxu0 0.0
    %3354 = vmatprep.subr.mxu0 0.0
    %3355 = vmatpush2.msra.mxu0 0.0
    %3356 = vmatprep.subr.mxu0 0.0
    %3357 = vmatpush2.msra.mxu0 0.0
    %3358 = vmatprep.subr.mxu0 0.0
    %3359 = vmatpush2.msra.mxu0 0.0
    %3360 = vmatprep.subr.mxu0 0.0
    %3361 = vmatpush2.msra.mxu0 0.0
    %3362 = vmatprep.subr.mxu0 0.0
    %3363 = vmatpush2.msra.mxu0 0.0
    %3364 = vmatprep.subr.mxu0 0.0
    %3365 = vmatpush2.msra.mxu0 0.0
    %3366 = vmatprep.subr.mxu0 0.0
    %3367 = vmatpush2.msra.mxu0 0.0
    %3368 = vmatprep.subr.mxu0 0.0
    %3369 = vmatpush2.msra.mxu0 0.0
    %3370 = vmatprep.subr.mxu0 0.0
    %3371 = vmatpush2.msra.mxu0 0.0
    %3372 = vmatprep.subr.mxu0 0.0
    %3373 = vmatpush2.msra.mxu0 0.0
    %3374 = vmatprep.subr.mxu0 0.0
    %3375 = vmatpush2.msra.mxu0 0.0
    %3376 = vmatprep.mubr.f32.mxu0 0.0
    %3377 = vmatmul.mubr.f32.gmra.mxu0 %v3308
    %v3378 = vpop.f32.mrf.mxu0
    %v3379 = vadd.f32 %v3299, %v3378
    %v3380 = vpop.f32.mrf.mxu0
    %3381 = vmatprep.mubr.f32.mxu0 0.0
    %3382 = vmatmul.mubr.f32.gmra.mxu0 %v3310
    %v3383 = vpop.f32.mrf.mxu0
    %v3384 = vadd.f32 %v3304, %v3383
    %v3385 = vpop.f32.mrf.mxu0
    %3386 = vdwg.mxu0
    %v3387 = vsel %vm395, %v3225, 0
    %v3390 = vsel %vm395, %v3227, 0
    %3392 = vmatprep.subr.mxu0 0.0
    %3393 = vmatpush1.msra.mxu0 0.0
    %3394 = vmatprep.subr.mxu0 0.0
    %3395 = vmatpush1.msra.mxu0 0.0
    %3396 = vmatprep.subr.mxu0 0.0
    %3397 = vmatpush1.msra.mxu0 0.0
    %3398 = vmatprep.subr.mxu0 0.0
    %3399 = vmatpush1.msra.mxu0 0.0
    %3400 = vmatprep.subr.mxu0 0.0
    %3401 = vmatpush1.msra.mxu0 0.0
    %3402 = vmatprep.subr.mxu0 0.0
    %3403 = vmatpush1.msra.mxu0 0.0
    %3404 = vmatprep.subr.mxu0 0.0
    %3405 = vmatpush1.msra.mxu0 0.0
    %3406 = vmatprep.subr.mxu0 0.0
    %3407 = vmatpush1.msra.mxu0 0.0
    %3408 = vmatprep.subr.mxu0 0.0
    %3409 = vmatpush1.msra.mxu0 0.0
    %3410 = vmatprep.subr.mxu0 0.0
    %3411 = vmatpush1.msra.mxu0 0.0
    %3412 = vmatprep.subr.mxu0 0.0
    %3413 = vmatpush1.msra.mxu0 0.0
    %3414 = vmatprep.subr.mxu0 0.0
    %3415 = vmatpush1.msra.mxu0 0.0
    %3416 = vmatprep.subr.mxu0 0.0
    %3417 = vmatpush1.msra.mxu0 0.0
    %3418 = vmatprep.subr.mxu0 0.0
    %3419 = vmatpush1.msra.mxu0 0.0
    %3420 = vmatprep.subr.mxu0 0.0
    %3421 = vmatpush1.msra.mxu0 %v3214
    %3422 = vmatprep.subr.mxu0 0.0
    %3423 = vmatpush1.msra.mxu0 %v3213
    %3424 = vmatprep.subr.mxu0 0.0
    %3425 = vmatpush2.msra.mxu0 0.0
    %3426 = vmatprep.subr.mxu0 0.0
    %3427 = vmatpush2.msra.mxu0 0.0
    %3428 = vmatprep.subr.mxu0 0.0
    %3429 = vmatpush2.msra.mxu0 0.0
    %3430 = vmatprep.subr.mxu0 0.0
    %3431 = vmatpush2.msra.mxu0 0.0
    %3432 = vmatprep.subr.mxu0 0.0
    %3433 = vmatpush2.msra.mxu0 0.0
    %3434 = vmatprep.subr.mxu0 0.0
    %3435 = vmatpush2.msra.mxu0 0.0
    %3436 = vmatprep.subr.mxu0 0.0
    %3437 = vmatpush2.msra.mxu0 0.0
    %3438 = vmatprep.subr.mxu0 0.0
    %3439 = vmatpush2.msra.mxu0 0.0
    %3440 = vmatprep.subr.mxu0 0.0
    %3441 = vmatpush2.msra.mxu0 0.0
    %3442 = vmatprep.subr.mxu0 0.0
    %3443 = vmatpush2.msra.mxu0 0.0
    %3444 = vmatprep.subr.mxu0 0.0
    %3445 = vmatpush2.msra.mxu0 0.0
    %3446 = vmatprep.subr.mxu0 0.0
    %3447 = vmatpush2.msra.mxu0 0.0
    %3448 = vmatprep.subr.mxu0 0.0
    %3449 = vmatpush2.msra.mxu0 0.0
    %3450 = vmatprep.subr.mxu0 0.0
    %3451 = vmatpush2.msra.mxu0 0.0
    %3452 = vmatprep.subr.mxu0 0.0
    %3453 = vmatpush2.msra.mxu0 0.0
    %3454 = vmatprep.subr.mxu0 0.0
    %3455 = vmatpush2.msra.mxu0 0.0
    %3456 = vmatprep.mubr.f32.mxu0 0.0
    %3457 = vmatmul.mubr.f32.gmra.mxu0 %v3387
    %v3458 = vpop.f32.mrf.mxu0
    %v3459 = vadd.f32 0.0, %v3458
    %v3460 = vpop.f32.mrf.mxu0
    %3461 = vmatprep.mubr.f32.mxu0 0.0
    %3462 = vmatmul.mubr.f32.gmra.mxu0 %v3390
    %v3463 = vpop.f32.mrf.mxu0
    %v3464 = vadd.f32 0.0, %v3463
    %v3465 = vpop.f32.mrf.mxu0
    %3466 = vdwg.mxu0
    %v3467 = vadd.f32 %v3379, %v3459
    %v3468 = vadd.f32 %v3384, %v3464
    %v3469 = vlaneseq
    %v3470 = vshrl.u32 %v3469, 7
    %v3471 = vsub.s32 0, %v3470
    %v3472 = vrot.slane %v3215, %v3471
    %v3473 = vadd.f32 %v3467, %v3472
    %v3474 = vadd.f32 %v3468, %v3472
    %v3475 = vmax.f32 %v3473, 0.0
    %v3476 = vmax.f32 %v3474, 0.0
    %v3477 = vmul.f32 %v3475, %v2927
    %v3478 = vmul.f32 %v3476, %v2928
    %v3479 = vld [vmem:[%s6 + $0x90] sm:$0xff]
    %v3480 = vld [vmem:[%s6 + $0x98] sm:$0xff]
    %v3481 = vld [vmem:[%s5 + $0x14] sm:$0x1]
    %v3482 = vmul.u32 %v140, 8
    %vm3483 = vcmp.ge.s32.totalorder %v143, %v3482
    %v3484 = vadd.s32 %v3482, 5
    %vm3485 = vcmp.lt.s32.totalorder %v143, %v3484
    %vm3486 = vmand %vm3483, %vm3485
    %v3487 = vsel %vm3486, 0.2, 0.0
    %v3489 = vsel %vm395, %v3487, 0
    %3491 = vmatprep.subr.mxu0 0.0
    %3492 = vmatpush1.msra.mxu0 0.0
    %3493 = vmatprep.subr.mxu0 0.0
    %3494 = vmatpush1.msra.mxu0 0.0
    %3495 = vmatprep.subr.mxu0 0.0
    %3496 = vmatpush1.msra.mxu0 0.0
    %3497 = vmatprep.subr.mxu0 0.0
    %3498 = vmatpush1.msra.mxu0 0.0
    %3499 = vmatprep.subr.mxu0 0.0
    %3500 = vmatpush1.msra.mxu0 0.0
    %3501 = vmatprep.subr.mxu0 0.0
    %3502 = vmatpush1.msra.mxu0 0.0
    %3503 = vmatprep.subr.mxu0 0.0
    %3504 = vmatpush1.msra.mxu0 0.0
    %3505 = vmatprep.subr.mxu0 0.0
    %3506 = vmatpush1.msra.mxu0 0.0
    %3507 = vmatprep.subr.mxu0 0.0
    %3508 = vmatpush1.msra.mxu0 0.0
    %3509 = vmatprep.subr.mxu0 0.0
    %3510 = vmatpush1.msra.mxu0 0.0
    %3511 = vmatprep.subr.mxu0 0.0
    %3512 = vmatpush1.msra.mxu0 0.0
    %3513 = vmatprep.subr.mxu0 0.0
    %3514 = vmatpush1.msra.mxu0 0.0
    %3515 = vmatprep.subr.mxu0 0.0
    %3516 = vmatpush1.msra.mxu0 0.0
    %3517 = vmatprep.subr.mxu0 0.0
    %3518 = vmatpush1.msra.mxu0 0.0
    %3519 = vmatprep.subr.mxu0 0.0
    %3520 = vmatpush1.msra.mxu0 %v3478
    %3521 = vmatprep.subr.mxu0 0.0
    %3522 = vmatpush1.msra.mxu0 %v3477
    %3523 = vmatprep.subr.mxu0 0.0
    %3524 = vmatpush2.msra.mxu0 0.0
    %3525 = vmatprep.subr.mxu0 0.0
    %3526 = vmatpush2.msra.mxu0 0.0
    %3527 = vmatprep.subr.mxu0 0.0
    %3528 = vmatpush2.msra.mxu0 0.0
    %3529 = vmatprep.subr.mxu0 0.0
    %3530 = vmatpush2.msra.mxu0 0.0
    %3531 = vmatprep.subr.mxu0 0.0
    %3532 = vmatpush2.msra.mxu0 0.0
    %3533 = vmatprep.subr.mxu0 0.0
    %3534 = vmatpush2.msra.mxu0 0.0
    %3535 = vmatprep.subr.mxu0 0.0
    %3536 = vmatpush2.msra.mxu0 0.0
    %3537 = vmatprep.subr.mxu0 0.0
    %3538 = vmatpush2.msra.mxu0 0.0
    %3539 = vmatprep.subr.mxu0 0.0
    %3540 = vmatpush2.msra.mxu0 0.0
    %3541 = vmatprep.subr.mxu0 0.0
    %3542 = vmatpush2.msra.mxu0 0.0
    %3543 = vmatprep.subr.mxu0 0.0
    %3544 = vmatpush2.msra.mxu0 0.0
    %3545 = vmatprep.subr.mxu0 0.0
    %3546 = vmatpush2.msra.mxu0 0.0
    %3547 = vmatprep.subr.mxu0 0.0
    %3548 = vmatpush2.msra.mxu0 0.0
    %3549 = vmatprep.subr.mxu0 0.0
    %3550 = vmatpush2.msra.mxu0 0.0
    %3551 = vmatprep.subr.mxu0 0.0
    %3552 = vmatpush2.msra.mxu0 0.0
    %3553 = vmatprep.subr.mxu0 0.0
    %3554 = vmatpush2.msra.mxu0 0.0
    %3555 = vmatprep.mubr.f32.mxu0 0.0
    %3556 = vmatmul.mubr.f32.gmra.mxu0 %v3489
    %v3557 = vpop.f32.mrf.mxu0
    %v3558 = vadd.f32 0.0, %v3557
    %v3559 = vpop.f32.mrf.mxu0
    %3560 = vdwg.mxu0
    %v3561 = vlaneseq
    %v3562 = vshrl.u32 %v3561, 7
    %v3563 = vsub.s32 0, %v3562
    %v3564 = vrot.slane %v3481, %v3563
    %v3566 = vsel %vm395, %v3558, 0
    %3568 = vmatprep.subr.mxu0 0.0
    %3569 = vmatpush1.msra.mxu0 0.0
    %3570 = vmatprep.subr.mxu0 0.0
    %3571 = vmatpush1.msra.mxu0 0.0
    %3572 = vmatprep.subr.mxu0 0.0
    %3573 = vmatpush1.msra.mxu0 0.0
    %3574 = vmatprep.subr.mxu0 0.0
    %3575 = vmatpush1.msra.mxu0 0.0
    %3576 = vmatprep.subr.mxu0 0.0
    %3577 = vmatpush1.msra.mxu0 0.0
    %3578 = vmatprep.subr.mxu0 0.0
    %3579 = vmatpush1.msra.mxu0 0.0
    %3580 = vmatprep.subr.mxu0 0.0
    %3581 = vmatpush1.msra.mxu0 0.0
    %3582 = vmatprep.subr.mxu0 0.0
    %3583 = vmatpush1.msra.mxu0 0.0
    %3584 = vmatprep.subr.mxu0 0.0
    %3585 = vmatpush1.msra.mxu0 0.0
    %3586 = vmatprep.subr.mxu0 0.0
    %3587 = vmatpush1.msra.mxu0 0.0
    %3588 = vmatprep.subr.mxu0 0.0
    %3589 = vmatpush1.msra.mxu0 0.0
    %3590 = vmatprep.subr.mxu0 0.0
    %3591 = vmatpush1.msra.mxu0 0.0
    %3592 = vmatprep.subr.mxu0 0.0
    %3593 = vmatpush1.msra.mxu0 0.0
    %3594 = vmatprep.subr.mxu0 0.0
    %3595 = vmatpush1.msra.mxu0 0.0
    %3596 = vmatprep.subr.mxu0 0.0
    %3597 = vmatpush1.msra.mxu0 %v3480
    %3598 = vmatprep.subr.mxu0 0.0
    %3599 = vmatpush1.msra.mxu0 %v3479
    %3600 = vmatprep.subr.mxu0 0.0
    %3601 = vmatpush2.msra.mxu0 0.0
    %3602 = vmatprep.subr.mxu0 0.0
    %3603 = vmatpush2.msra.mxu0 0.0
    %3604 = vmatprep.subr.mxu0 0.0
    %3605 = vmatpush2.msra.mxu0 0.0
    %3606 = vmatprep.subr.mxu0 0.0
    %3607 = vmatpush2.msra.mxu0 0.0
    %3608 = vmatprep.subr.mxu0 0.0
    %3609 = vmatpush2.msra.mxu0 0.0
    %3610 = vmatprep.subr.mxu0 0.0
    %3611 = vmatpush2.msra.mxu0 0.0
    %3612 = vmatprep.subr.mxu0 0.0
    %3613 = vmatpush2.msra.mxu0 0.0
    %3614 = vmatprep.subr.mxu0 0.0
    %3615 = vmatpush2.msra.mxu0 0.0
    %3616 = vmatprep.subr.mxu0 0.0
    %3617 = vmatpush2.msra.mxu0 0.0
    %3618 = vmatprep.subr.mxu0 0.0
    %3619 = vmatpush2.msra.mxu0 0.0
    %3620 = vmatprep.subr.mxu0 0.0
    %3621 = vmatpush2.msra.mxu0 0.0
    %3622 = vmatprep.subr.mxu0 0.0
    %3623 = vmatpush2.msra.mxu0 0.0
    %3624 = vmatprep.subr.mxu0 0.0
    %3625 = vmatpush2.msra.mxu0 0.0
    %3626 = vmatprep.subr.mxu0 0.0
    %3627 = vmatpush2.msra.mxu0 0.0
    %3628 = vmatprep.subr.mxu0 0.0
    %3629 = vmatpush2.msra.mxu0 0.0
    %3630 = vmatprep.subr.mxu0 0.0
    %3631 = vmatpush2.msra.mxu0 0.0
    %3632 = vmatprep.mubr.f32.mxu0 0.0
    %3633 = vmatmul.mubr.f32.gmra.mxu0 %v3566
    %v3634 = vpop.f32.mrf.mxu0
    %v3635 = vadd.f32 %v3564, %v3634
    %v3636 = vpop.f32.mrf.mxu0
    %3637 = vdwg.mxu0
    %vm3638 = vcmask 9216
    %3639 = vst.msk [vmem:[#allocation2] sm:$0x3] %vm3638, %v3635
    // Predicated region
    $region30: #{vit_with_custom_cnn_forward.1} parent=1 // pred_check
      _
    $region31: #{vit_with_custom_cnn_forward.1} parent=1 // pred_check_branch
      %3641 = sbr.rel (0) target = $region33
    $region32: #{vit_with_custom_cnn_forward.1} parent=1 // pred_region
      %s3643 = ssub.s32 32, 32
      %3644 = vsyncadd [#allocation3], %s3643
      %s3646 = sshll.u32 [#allocation2], 4
      %s3647 = int_to_ptr.vmem [resolvable:$true] %s3646
      %3649 = dma.vmem_to_hbm [thread:$0]  %s3647, 32, %s7, [#allocation3]
    $region33: #{vit_with_custom_cnn_forward.1} parent=1 // pred_fallthru
      _
    // Predicated region
    $region34: #{vit_with_custom_cnn_forward.1} parent=1 // pred_check
      _
    $region35: #{vit_with_custom_cnn_forward.1} parent=1 // pred_check_branch
      %3651 = sbr.rel (0) target = $region37
    $region36: #{vit_with_custom_cnn_forward.1} parent=1 // pred_region
      %3652 = dma.done [#allocation3], 32
    $region37: #{vit_with_custom_cnn_forward.1} parent=1 // pred_fallthru
      _
    %3653 = vsyncpa [#allocation3], 1

</llo_original>
